<compile_context>
chip_gen: v5e
topology: v5e:2x2
jax: 0.10.0
libtpu: 0.0.40
codegen_flags: <defaults>
</compile_context>

<pallas_src>
import functools

import jax
import jax.numpy as jnp
import numpy as np
from jax.experimental import pallas as pl
from jax.experimental.pallas import tpu as pltpu


def _layer_norm_f32(x, gamma, beta, eps=1e-5):
    # Matches torch.nn.LayerNorm (biased variance), computed in float32.
    mean = jnp.mean(x, axis=-1, keepdims=True)
    var = jnp.mean(jnp.square(x - mean), axis=-1, keepdims=True)
    return (x - mean) * jax.lax.rsqrt(var + eps) * gamma + beta


def _block_kernel(x_ref, g1_ref, bt1_ref, w_in_ref, b_in_ref, w_out_ref,
                  b_out_ref, g2_ref, bt2_ref, w_fc_ref, b_fc_ref, w_pj_ref,
                  b_pj_ref, o_ref, *, n_head):
    bt, L, E = x_ref.shape                      # (Bt, L, E) block
    dh = E // n_head
    bh = bt * n_head
    rows = bt * L
    bf16 = jnp.bfloat16
    f32 = jnp.float32

    x = x_ref[...].astype(f32).reshape(rows, E)        # flatten batch rows

    # ---- LayerNorm 1 (f32) ----
    h1 = _layer_norm_f32(x, g1_ref[...], bt1_ref[...])

    # ---- Fused QKV projection: bf16 on the MXU, f32 accumulation.
    # The 1/sqrt(dh) scale is already folded into the Q columns of w_in/b_in.
    # Cast the whole (rows, 3E) result to bf16 once (largest temp, halved).
    qkv = (jnp.dot(h1.astype(bf16), w_in_ref[...],
                   preferred_element_type=f32) + b_in_ref[...]).astype(bf16)

    # ---- Multi-head self-attention: one batched matmul over all heads ----
    def split_heads(t):                      # (rows, E) -> (Bt*H, L, dh)
        return (t.reshape(bt, L, n_head, dh)
                 .transpose(0, 2, 1, 3)
                 .reshape(bh, L, dh))

    q = split_heads(qkv[:, :E])
    k = split_heads(qkv[:, E:2 * E])
    v = split_heads(qkv[:, 2 * E:])

    # scores = q @ k^T over all (batch, head) pairs at once   -> (BH, L, L)
    s = jax.lax.dot_general(q, k, (((2,), (2,)), ((0,), (0,))),
                            preferred_element_type=f32)
    s = s - jnp.max(s, axis=-1, keepdims=True)
    p = jnp.exp(s)
    p = p * pl.reciprocal(jnp.sum(p, axis=-1, keepdims=True),
                          approx=True)                        # EUP divide
    o = jax.lax.dot_general(p.astype(bf16), v, (((2,), (1,)), ((0,), (0,))),
                            preferred_element_type=f32)       # (BH, L, dh)

    # back to (rows, E): one relayout for the whole block, lane-dense
    attn_heads = (o.reshape(bt, n_head, L, dh)
                   .transpose(0, 2, 1, 3)
                   .reshape(rows, E)).astype(bf16)

    # ---- Output projection + residual 1 ----
    attn = jnp.dot(attn_heads, w_out_ref[...],
                   preferred_element_type=f32) + b_out_ref[...]
    x1 = x + attn

    # ---- LayerNorm 2 + MLP (c_fc -> QuickGELU -> c_proj) + residual 2 ----
    h2 = _layer_norm_f32(x1, g2_ref[...], bt2_ref[...])
    f = jnp.dot(h2.astype(bf16), w_fc_ref[...],
                preferred_element_type=f32) + b_fc_ref[...]
    f = f * jax.nn.sigmoid(1.702 * f)                         # QuickGELU (f32)
    mlp = jnp.dot(f.astype(bf16), w_pj_ref[...],
                  preferred_element_type=f32) + b_pj_ref[...]
    y = x1 + mlp

    o_ref[...] = y.reshape(bt, L, E).astype(o_ref.dtype)


def _pick_batch_block(n, seq_len, target_rows=256):
    """Largest divisor Bt of n with Bt*seq_len roughly <= target_rows.

    Keeps at least two grid steps whenever n >= 2 so the 'parallel' batch axis
    can be split across v7x's two TensorCores (negligible cost on v5e/v6e).
    """
    bt = max(1, min(n, max(1, target_rows // max(seq_len, 1))))
    if n >= 2:
        bt = min(bt, max(1, n // 2))
    while n % bt:
        bt -= 1
    return bt


def _vmem_limit_bytes():
    """~85% of physical VMEM, capped at ~110 MiB (v5e/v6e); ~54 MiB on v7x."""
    cap = None
    try:
        info = pltpu.get_tpu_info()
        cap = getattr(info, "vmem_capacity_bytes", None)
    except Exception:
        cap = None
    if not cap:
        cap = 128 * 1024 * 1024
    return min(int(cap * 0.85), 110 * 1024 * 1024)


def self_attention_block_nle(x_nle, params, n_head, *, target_rows=256):
    """x_nle: (N, L, E) batch-major; returns (N, L, E)."""
    N, L, E = x_nle.shape
    assert E % n_head == 0
    Bt = _pick_batch_block(N, L, target_rows=target_rows)
    grid = (N // Bt,)

    # Constant operands: fetched once, single-buffered (no wasted double buf).
    const = lambda shape: pl.BlockSpec(shape, lambda i: (0, 0),
                                       pipeline_mode=pl.Buffered(1))
    in_specs = [
        pl.BlockSpec((Bt, L, E), lambda i: (i, 0, 0)),   # x (streamed per step)
        const((1, E)),                                   # ln_1 gamma (f32)
        const((1, E)),                                   # ln_1 beta  (f32)
        const((E, 3 * E)),                               # W_qkv^T    (bf16, Q pre-scaled)
        const((1, 3 * E)),                               # b_qkv      (f32, Q pre-scaled)
        const((E, E)),                                   # W_out^T    (bf16)
        const((1, E)),                                   # b_out      (f32)
        const((1, E)),                                   # ln_2 gamma (f32)
        const((1, E)),                                   # ln_2 beta  (f32)
        const((E, 4 * E)),                               # W_fc^T     (bf16)
        const((1, 4 * E)),                               # b_fc       (f32)
        const((4 * E, E)),                               # W_proj^T   (bf16)
        const((1, E)),                                   # b_proj     (f32)
    ]

    return pl.pallas_call(
        functools.partial(_block_kernel, n_head=n_head),
        out_shape=jax.ShapeDtypeStruct((N, L, E), x_nle.dtype),
        grid=grid,
        in_specs=in_specs,
        out_specs=pl.BlockSpec((Bt, L, E), lambda i: (i, 0, 0)),
        compiler_params=pltpu.CompilerParams(
            dimension_semantics=("parallel",),     # megacore batch sharding
            vmem_limit_bytes=_vmem_limit_bytes()),
    )(x_nle, params["g1"], params["bt1"], params["w_in"], params["b_in"],
      params["w_out"], params["b_out"], params["g2"], params["bt2"],
      params["w_fc"], params["b_fc"], params["w_pj"], params["b_pj"])


def self_attention_block(x_lne, params, n_head):
    """x_lne: (L, N, E) like PyTorch nn.MultiheadAttention; returns (L, N, E).

    If the surrounding model can keep activations batch-major, call
    self_attention_block_nle directly and skip both HBM-round-trip transposes.
    """
    x_nle = jnp.transpose(x_lne, (1, 0, 2))
    y = self_attention_block_nle(x_nle, params, n_head)
    return jnp.transpose(y, (1, 0, 2))


# ----------------------------------------------------------------------------
# Parameter handling: PyTorch-layout params -> one-time host-side re-layout.
# ----------------------------------------------------------------------------
def init_torch_params(key, d_model):
    """Parameters in the layout torch stores them (nn.MultiheadAttention etc)."""
    E = d_model
    ks = jax.random.split(key, 8)
    return {
        "ln1_w": jnp.ones((E,), jnp.float32),
        "ln1_b": jnp.zeros((E,), jnp.float32),
        "in_proj_weight": 0.02 * jax.random.normal(ks[0], (3 * E, E), jnp.float32),
        "in_proj_bias": 0.02 * jax.random.normal(ks[1], (3 * E,), jnp.float32),
        "out_proj_weight": 0.02 * jax.random.normal(ks[2], (E, E), jnp.float32),
        "out_proj_bias": 0.02 * jax.random.normal(ks[3], (E,), jnp.float32),
        "ln2_w": jnp.ones((E,), jnp.float32),
        "ln2_b": jnp.zeros((E,), jnp.float32),
        "c_fc_weight": 0.02 * jax.random.normal(ks[4], (4 * E, E), jnp.float32),
        "c_fc_bias": 0.02 * jax.random.normal(ks[5], (4 * E,), jnp.float32),
        "c_proj_weight": 0.02 * jax.random.normal(ks[6], (E, 4 * E), jnp.float32),
        "c_proj_bias": 0.02 * jax.random.normal(ks[7], (E,), jnp.float32),
    }


def prepare_params(tp, n_head):
    """One-time host-side re-layout:
       * transpose weights to [K, N] for the MXU, cast big weights to bf16,
       * fold the 1/sqrt(dh) attention scale into the Q third of w_in/b_in."""
    E = tp["out_proj_weight"].shape[0]
    dh = E // n_head
    scale = 1.0 / float(dh) ** 0.5
    bf16 = jnp.bfloat16

    w_in = tp["in_proj_weight"].T                              # (E, 3E)
    w_in = jnp.concatenate([w_in[:, :E] * scale, w_in[:, E:]], axis=1)
    b_in = tp["in_proj_bias"]
    b_in = jnp.concatenate([b_in[:E] * scale, b_in[E:]])

    return {
        "g1": tp["ln1_w"].reshape(1, E).astype(jnp.float32),
        "bt1": tp["ln1_b"].reshape(1, E).astype(jnp.float32),
        "w_in": w_in.astype(bf16),                             # (E, 3E)
        "b_in": b_in.reshape(1, 3 * E).astype(jnp.float32),
        "w_out": tp["out_proj_weight"].T.astype(bf16),         # (E, E)
        "b_out": tp["out_proj_bias"].reshape(1, E).astype(jnp.float32),
        "g2": tp["ln2_w"].reshape(1, E).astype(jnp.float32),
        "bt2": tp["ln2_b"].reshape(1, E).astype(jnp.float32),
        "w_fc": tp["c_fc_weight"].T.astype(bf16),              # (E, 4E)
        "b_fc": tp["c_fc_bias"].reshape(1, 4 * E).astype(jnp.float32),
        "w_pj": tp["c_proj_weight"].T.astype(bf16),            # (4E, E)
        "b_pj": tp["c_proj_bias"].reshape(1, E).astype(jnp.float32),
    }


# ----------------------------------------------------------------------------
# Pure-JAX reference using the same mixed-precision recipe (sanity check).
# ----------------------------------------------------------------------------
def reference_block(x_lne, params, n_head):
    xf = jnp.transpose(x_lne, (1, 0, 2)).astype(jnp.float32)    # (N, L, E)
    N, L, E = xf.shape
    H, dh = n_head, E // n_head
    bf16 = jnp.bfloat16

    h = _layer_norm_f32(xf, params["g1"], params["bt1"])
    # scale already folded into w_in/b_in
    qkv = (jnp.einsum("nle,ef->nlf", h.astype(bf16), params["w_in"],
                      preferred_element_type=jnp.float32)
           + params["b_in"]).astype(bf16)
    q, k, v = qkv[..., :E], qkv[..., E:2 * E], qkv[..., 2 * E:]
    q = q.reshape(N, L, H, dh).transpose(0, 2, 1, 3)
    k = k.reshape(N, L, H, dh).transpose(0, 2, 1, 3)
    v = v.reshape(N, L, H, dh).transpose(0, 2, 1, 3)
    s = jnp.einsum("nhld,nhmd->nhlm", q, k,
                   preferred_element_type=jnp.float32)
    p = jax.nn.softmax(s, axis=-1)
    o = jnp.einsum("nhlm,nhmd->nhld", p.astype(bf16), v,
                   preferred_element_type=jnp.float32)
    o = o.transpose(0, 2, 1, 3).reshape(N, L, E).astype(bf16)
    attn = jnp.einsum("nle,ef->nlf", o, params["w_out"],
                      preferred_element_type=jnp.float32) + params["b_out"]
    x1 = xf + attn
    h2 = _layer_norm_f32(x1, params["g2"], params["bt2"])
    f = jnp.einsum("nle,ef->nlf", h2.astype(bf16), params["w_fc"],
                   preferred_element_type=jnp.float32) + params["b_fc"]
    f = f * jax.nn.sigmoid(1.702 * f)
    mlp = jnp.einsum("nlf,fe->nle", f.astype(bf16), params["w_pj"],
                     preferred_element_type=jnp.float32) + params["b_pj"]
    y = x1 + mlp
    return jnp.transpose(y, (1, 0, 2)).astype(x_lne.dtype)


if __name__ == "__main__":
    d_model, n_head = 64, 4
    seq_len, batch = 16, 4

    key = jax.random.PRNGKey(0)
    kx, kp = jax.random.split(key)
    # PyTorch MultiheadAttention default layout: (L, N, E)
    x = jax.random.normal(kx, (seq_len, batch, d_model), jnp.float32)

    torch_params = init_torch_params(kp, d_model)
    params = prepare_params(torch_params, n_head)

    y = jax.block_until_ready(self_attention_block(x, params, n_head))
    y_ref = jax.block_until_ready(reference_block(x, params, n_head))

    np.testing.assert_allclose(np.asarray(y), np.asarray(y_ref),
                               rtol=2e-2, atol=2e-2)
    print("KERNEL_OK")
</pallas_src>

<mosaic_0001>
module attributes {stable_mosaic.version = 11 : i64} {
  func.func @_block_kernel(%arg0: i32, %arg1: memref<2x16x64xf32, #tpu.memory_space<vmem>>, %arg2: memref<1x64xf32, #tpu.memory_space<vmem>>, %arg3: memref<1x64xf32, #tpu.memory_space<vmem>>, %arg4: memref<64x192xbf16, #tpu.memory_space<vmem>>, %arg5: memref<1x192xf32, #tpu.memory_space<vmem>>, %arg6: memref<64x64xbf16, #tpu.memory_space<vmem>>, %arg7: memref<1x64xf32, #tpu.memory_space<vmem>>, %arg8: memref<1x64xf32, #tpu.memory_space<vmem>>, %arg9: memref<1x64xf32, #tpu.memory_space<vmem>>, %arg10: memref<64x256xbf16, #tpu.memory_space<vmem>>, %arg11: memref<1x256xf32, #tpu.memory_space<vmem>>, %arg12: memref<256x64xbf16, #tpu.memory_space<vmem>>, %arg13: memref<1x64xf32, #tpu.memory_space<vmem>>, %arg14: memref<2x16x64xf32, #tpu.memory_space<vmem>>) attributes {dimension_semantics = [#tpu.dimension_semantics<parallel>], iteration_bounds = array<i64: 2>, scalar_prefetch = 0 : i64, scratch_operands = 0 : i64, tpu.core_type = #tpu.core_type<tc>, window_params = [{transform_indices = @transform_0, window_bounds = array<i64: 2, 16, 64>}, {pipeline_mode = #tpu.pipeline_mode<synchronous>, transform_indices = @transform_1, window_bounds = array<i64: 1, 64>}, {pipeline_mode = #tpu.pipeline_mode<synchronous>, transform_indices = @transform_2, window_bounds = array<i64: 1, 64>}, {pipeline_mode = #tpu.pipeline_mode<synchronous>, transform_indices = @transform_3, window_bounds = array<i64: 64, 192>}, {pipeline_mode = #tpu.pipeline_mode<synchronous>, transform_indices = @transform_4, window_bounds = array<i64: 1, 192>}, {pipeline_mode = #tpu.pipeline_mode<synchronous>, transform_indices = @transform_5, window_bounds = array<i64: 64, 64>}, {pipeline_mode = #tpu.pipeline_mode<synchronous>, transform_indices = @transform_6, window_bounds = array<i64: 1, 64>}, {pipeline_mode = #tpu.pipeline_mode<synchronous>, transform_indices = @transform_7, window_bounds = array<i64: 1, 64>}, {pipeline_mode = #tpu.pipeline_mode<synchronous>, transform_indices = @transform_8, window_bounds = array<i64: 1, 64>}, {pipeline_mode = #tpu.pipeline_mode<synchronous>, transform_indices = @transform_9, window_bounds = array<i64: 64, 256>}, {pipeline_mode = #tpu.pipeline_mode<synchronous>, transform_indices = @transform_10, window_bounds = array<i64: 1, 256>}, {pipeline_mode = #tpu.pipeline_mode<synchronous>, transform_indices = @transform_11, window_bounds = array<i64: 256, 64>}, {pipeline_mode = #tpu.pipeline_mode<synchronous>, transform_indices = @transform_12, window_bounds = array<i64: 1, 64>}, {transform_indices = @transform_13, window_bounds = array<i64: 2, 16, 64>}]} {
    %c0 = arith.constant 0 : index
    %c0_0 = arith.constant 0 : index
    %c0_1 = arith.constant 0 : index
    %0 = vector.load %arg1[%c0, %c0_0, %c0_1] : memref<2x16x64xf32, #tpu.memory_space<vmem>>, vector<2x16x64xf32>
    %1 = vector.shape_cast %0 : vector<2x16x64xf32> to vector<32x64xf32>
    %c0_2 = arith.constant 0 : index
    %c0_3 = arith.constant 0 : index
    %2 = vector.load %arg2[%c0_2, %c0_3] : memref<1x64xf32, #tpu.memory_space<vmem>>, vector<1x64xf32>
    %c0_4 = arith.constant 0 : index
    %c0_5 = arith.constant 0 : index
    %3 = vector.load %arg3[%c0_4, %c0_5] : memref<1x64xf32, #tpu.memory_space<vmem>>, vector<1x64xf32>
    %cst = arith.constant dense<0.000000e+00> : vector<32xf32>
    %4 = vector.multi_reduction <add>, %1, %cst [1] : vector<32x64xf32> to vector<32xf32>
    %5 = vector.shape_cast %4 : vector<32xf32> to vector<32x1xf32>
    %cst_6 = arith.constant 6.400000e+01 : f32
    %6 = vector.broadcast %cst_6 : f32 to vector<32x1xf32>
    %7 = arith.divf %5, %6 : vector<32x1xf32>
    %8 = vector.broadcast %7 : vector<32x1xf32> to vector<32x64xf32>
    %9 = arith.subf %1, %8 : vector<32x64xf32>
    %10 = arith.mulf %9, %9 : vector<32x64xf32>
    %cst_7 = arith.constant dense<0.000000e+00> : vector<32xf32>
    %11 = vector.multi_reduction <add>, %10, %cst_7 [1] : vector<32x64xf32> to vector<32xf32>
    %12 = vector.shape_cast %11 : vector<32xf32> to vector<32x1xf32>
    %cst_8 = arith.constant 6.400000e+01 : f32
    %13 = vector.broadcast %cst_8 : f32 to vector<32x1xf32>
    %14 = arith.divf %12, %13 : vector<32x1xf32>
    %15 = vector.broadcast %7 : vector<32x1xf32> to vector<32x64xf32>
    %16 = arith.subf %1, %15 : vector<32x64xf32>
    %cst_9 = arith.constant 9.99999974E-6 : f32
    %17 = vector.broadcast %cst_9 : f32 to vector<32x1xf32>
    %18 = arith.addf %14, %17 : vector<32x1xf32>
    %19 = math.rsqrt %18 : vector<32x1xf32>
    %20 = vector.broadcast %19 : vector<32x1xf32> to vector<32x64xf32>
    %21 = arith.mulf %16, %20 : vector<32x64xf32>
    %22 = vector.broadcast %2 : vector<1x64xf32> to vector<32x64xf32>
    %23 = arith.mulf %21, %22 : vector<32x64xf32>
    %24 = vector.broadcast %3 : vector<1x64xf32> to vector<32x64xf32>
    %25 = arith.addf %23, %24 : vector<32x64xf32>
    %26 = arith.truncf %25 : vector<32x64xf32> to vector<32x64xbf16>
    %c0_10 = arith.constant 0 : index
    %c0_11 = arith.constant 0 : index
    %27 = vector.load %arg4[%c0_10, %c0_11] : memref<64x192xbf16, #tpu.memory_space<vmem>>, vector<64x192xbf16>
    %cst_12 = arith.constant dense<0.000000e+00> : vector<32x192xf32>
    %28 = tpu.matmul %26, %27, %cst_12 {dimension_numbers = #tpu.dot_dimension_numbers<[1], [0], [0], [1], [0, 0, 1, 1], [], []>} : vector<32x64xbf16>, vector<64x192xbf16>, vector<32x192xf32> -> vector<32x192xf32>
    %c0_13 = arith.constant 0 : index
    %c0_14 = arith.constant 0 : index
    %29 = vector.load %arg5[%c0_13, %c0_14] : memref<1x192xf32, #tpu.memory_space<vmem>>, vector<1x192xf32>
    %30 = vector.broadcast %29 : vector<1x192xf32> to vector<32x192xf32>
    %31 = arith.addf %28, %30 : vector<32x192xf32>
    %32 = arith.truncf %31 : vector<32x192xf32> to vector<32x192xbf16>
    %33 = vector.extract_strided_slice %32 {offsets = [0, 0], sizes = [32, 64], strides = [1, 1]} : vector<32x192xbf16> to vector<32x64xbf16>
    %34 = vector.shape_cast %33 : vector<32x64xbf16> to vector<2x16x4x16xbf16>
    %35 = tpu.transpose %34, [0, 2, 1, 3] : vector<2x16x4x16xbf16> -> vector<2x4x16x16xbf16>
    %36 = vector.shape_cast %35 : vector<2x4x16x16xbf16> to vector<8x16x16xbf16>
    %37 = vector.extract_strided_slice %32 {offsets = [0, 64], sizes = [32, 64], strides = [1, 1]} : vector<32x192xbf16> to vector<32x64xbf16>
    %38 = vector.shape_cast %37 : vector<32x64xbf16> to vector<2x16x4x16xbf16>
    %39 = tpu.transpose %38, [0, 2, 1, 3] : vector<2x16x4x16xbf16> -> vector<2x4x16x16xbf16>
    %40 = vector.shape_cast %39 : vector<2x4x16x16xbf16> to vector<8x16x16xbf16>
    %41 = vector.extract_strided_slice %32 {offsets = [0, 128], sizes = [32, 64], strides = [1, 1]} : vector<32x192xbf16> to vector<32x64xbf16>
    %42 = vector.shape_cast %41 : vector<32x64xbf16> to vector<2x16x4x16xbf16>
    %43 = tpu.transpose %42, [0, 2, 1, 3] : vector<2x16x4x16xbf16> -> vector<2x4x16x16xbf16>
    %44 = vector.shape_cast %43 : vector<2x4x16x16xbf16> to vector<8x16x16xbf16>
    %cst_15 = arith.constant dense<0.000000e+00> : vector<8x16x16xf32>
    %45 = tpu.matmul %36, %40, %cst_15 {dimension_numbers = #tpu.dot_dimension_numbers<[2], [2], [1], [1], [0, 0, 0, 1, 1, 1], [0], [0]>} : vector<8x16x16xbf16>, vector<8x16x16xbf16>, vector<8x16x16xf32> -> vector<8x16x16xf32>
    %cst_16 = arith.constant dense<0xFF800000> : vector<8x16xf32>
    %46 = vector.multi_reduction <maximumf>, %45, %cst_16 [2] : vector<8x16x16xf32> to vector<8x16xf32>
    %47 = vector.shape_cast %46 : vector<8x16xf32> to vector<8x16x1xf32>
    %48 = vector.broadcast %47 : vector<8x16x1xf32> to vector<8x16x16xf32>
    %49 = arith.subf %45, %48 : vector<8x16x16xf32>
    %50 = math.exp %49 : vector<8x16x16xf32>
    %cst_17 = arith.constant dense<0.000000e+00> : vector<8x16xf32>
    %51 = vector.multi_reduction <add>, %50, %cst_17 [2] : vector<8x16x16xf32> to vector<8x16xf32>
    %52 = vector.shape_cast %51 : vector<8x16xf32> to vector<8x16x1xf32>
    %53 = tpu.reciprocal %52 {approx = true} : vector<8x16x1xf32> -> vector<8x16x1xf32>
    %54 = vector.broadcast %53 : vector<8x16x1xf32> to vector<8x16x16xf32>
    %55 = arith.mulf %50, %54 : vector<8x16x16xf32>
    %56 = arith.truncf %55 : vector<8x16x16xf32> to vector<8x16x16xbf16>
    %cst_18 = arith.constant dense<0.000000e+00> : vector<8x16x16xf32>
    %57 = tpu.matmul %56, %44, %cst_18 {dimension_numbers = #tpu.dot_dimension_numbers<[2], [1], [1], [2], [0, 0, 0, 1, 1, 2], [0], [0]>} : vector<8x16x16xbf16>, vector<8x16x16xbf16>, vector<8x16x16xf32> -> vector<8x16x16xf32>
    %58 = vector.shape_cast %57 : vector<8x16x16xf32> to vector<2x4x16x16xf32>
    %59 = tpu.transpose %58, [0, 2, 1, 3] : vector<2x4x16x16xf32> -> vector<2x16x4x16xf32>
    %60 = vector.shape_cast %59 : vector<2x16x4x16xf32> to vector<32x64xf32>
    %61 = arith.truncf %60 : vector<32x64xf32> to vector<32x64xbf16>
    %c0_19 = arith.constant 0 : index
    %c0_20 = arith.constant 0 : index
    %62 = vector.load %arg6[%c0_19, %c0_20] : memref<64x64xbf16, #tpu.memory_space<vmem>>, vector<64x64xbf16>
    %cst_21 = arith.constant dense<0.000000e+00> : vector<32x64xf32>
    %63 = tpu.matmul %61, %62, %cst_21 {dimension_numbers = #tpu.dot_dimension_numbers<[1], [0], [0], [1], [0, 0, 1, 1], [], []>} : vector<32x64xbf16>, vector<64x64xbf16>, vector<32x64xf32> -> vector<32x64xf32>
    %c0_22 = arith.constant 0 : index
    %c0_23 = arith.constant 0 : index
    %64 = vector.load %arg7[%c0_22, %c0_23] : memref<1x64xf32, #tpu.memory_space<vmem>>, vector<1x64xf32>
    %65 = vector.broadcast %64 : vector<1x64xf32> to vector<32x64xf32>
    %66 = arith.addf %63, %65 : vector<32x64xf32>
    %67 = arith.addf %1, %66 : vector<32x64xf32>
    %c0_24 = arith.constant 0 : index
    %c0_25 = arith.constant 0 : index
    %68 = vector.load %arg8[%c0_24, %c0_25] : memref<1x64xf32, #tpu.memory_space<vmem>>, vector<1x64xf32>
    %c0_26 = arith.constant 0 : index
    %c0_27 = arith.constant 0 : index
    %69 = vector.load %arg9[%c0_26, %c0_27] : memref<1x64xf32, #tpu.memory_space<vmem>>, vector<1x64xf32>
    %cst_28 = arith.constant dense<0.000000e+00> : vector<32xf32>
    %70 = vector.multi_reduction <add>, %67, %cst_28 [1] : vector<32x64xf32> to vector<32xf32>
    %71 = vector.shape_cast %70 : vector<32xf32> to vector<32x1xf32>
    %cst_29 = arith.constant 6.400000e+01 : f32
    %72 = vector.broadcast %cst_29 : f32 to vector<32x1xf32>
    %73 = arith.divf %71, %72 : vector<32x1xf32>
    %74 = vector.broadcast %73 : vector<32x1xf32> to vector<32x64xf32>
    %75 = arith.subf %67, %74 : vector<32x64xf32>
    %76 = arith.mulf %75, %75 : vector<32x64xf32>
    %cst_30 = arith.constant dense<0.000000e+00> : vector<32xf32>
    %77 = vector.multi_reduction <add>, %76, %cst_30 [1] : vector<32x64xf32> to vector<32xf32>
    %78 = vector.shape_cast %77 : vector<32xf32> to vector<32x1xf32>
    %cst_31 = arith.constant 6.400000e+01 : f32
    %79 = vector.broadcast %cst_31 : f32 to vector<32x1xf32>
    %80 = arith.divf %78, %79 : vector<32x1xf32>
    %81 = vector.broadcast %73 : vector<32x1xf32> to vector<32x64xf32>
    %82 = arith.subf %67, %81 : vector<32x64xf32>
    %cst_32 = arith.constant 9.99999974E-6 : f32
    %83 = vector.broadcast %cst_32 : f32 to vector<32x1xf32>
    %84 = arith.addf %80, %83 : vector<32x1xf32>
    %85 = math.rsqrt %84 : vector<32x1xf32>
    %86 = vector.broadcast %85 : vector<32x1xf32> to vector<32x64xf32>
    %87 = arith.mulf %82, %86 : vector<32x64xf32>
    %88 = vector.broadcast %68 : vector<1x64xf32> to vector<32x64xf32>
    %89 = arith.mulf %87, %88 : vector<32x64xf32>
    %90 = vector.broadcast %69 : vector<1x64xf32> to vector<32x64xf32>
    %91 = arith.addf %89, %90 : vector<32x64xf32>
    %92 = arith.truncf %91 : vector<32x64xf32> to vector<32x64xbf16>
    %c0_33 = arith.constant 0 : index
    %c0_34 = arith.constant 0 : index
    %93 = vector.load %arg10[%c0_33, %c0_34] : memref<64x256xbf16, #tpu.memory_space<vmem>>, vector<64x256xbf16>
    %cst_35 = arith.constant dense<0.000000e+00> : vector<32x256xf32>
    %94 = tpu.matmul %92, %93, %cst_35 {dimension_numbers = #tpu.dot_dimension_numbers<[1], [0], [0], [1], [0, 0, 1, 1], [], []>} : vector<32x64xbf16>, vector<64x256xbf16>, vector<32x256xf32> -> vector<32x256xf32>
    %c0_36 = arith.constant 0 : index
    %c0_37 = arith.constant 0 : index
    %95 = vector.load %arg11[%c0_36, %c0_37] : memref<1x256xf32, #tpu.memory_space<vmem>>, vector<1x256xf32>
    %96 = vector.broadcast %95 : vector<1x256xf32> to vector<32x256xf32>
    %97 = arith.addf %94, %96 : vector<32x256xf32>
    %cst_38 = arith.constant 1.702000e+00 : f32
    %98 = vector.broadcast %cst_38 : f32 to vector<32x256xf32>
    %99 = arith.mulf %98, %97 : vector<32x256xf32>
    %100 = arith.negf %99 : vector<32x256xf32>
    %101 = math.exp %100 : vector<32x256xf32>
    %cst_39 = arith.constant 1.000000e+00 : f32
    %102 = vector.broadcast %cst_39 : f32 to vector<32x256xf32>
    %103 = arith.addf %102, %101 : vector<32x256xf32>
    %104 = arith.divf %102, %103 : vector<32x256xf32>
    %105 = arith.mulf %97, %104 : vector<32x256xf32>
    %106 = arith.truncf %105 : vector<32x256xf32> to vector<32x256xbf16>
    %c0_40 = arith.constant 0 : index
    %c0_41 = arith.constant 0 : index
    %107 = vector.load %arg12[%c0_40, %c0_41] : memref<256x64xbf16, #tpu.memory_space<vmem>>, vector<256x64xbf16>
    %cst_42 = arith.constant dense<0.000000e+00> : vector<32x64xf32>
    %108 = tpu.matmul %106, %107, %cst_42 {dimension_numbers = #tpu.dot_dimension_numbers<[1], [0], [0], [1], [0, 0, 1, 1], [], []>} : vector<32x256xbf16>, vector<256x64xbf16>, vector<32x64xf32> -> vector<32x64xf32>
    %c0_43 = arith.constant 0 : index
    %c0_44 = arith.constant 0 : index
    %109 = vector.load %arg13[%c0_43, %c0_44] : memref<1x64xf32, #tpu.memory_space<vmem>>, vector<1x64xf32>
    %110 = vector.broadcast %109 : vector<1x64xf32> to vector<32x64xf32>
    %111 = arith.addf %108, %110 : vector<32x64xf32>
    %112 = arith.addf %67, %111 : vector<32x64xf32>
    %113 = vector.shape_cast %112 : vector<32x64xf32> to vector<2x16x64xf32>
    %c0_45 = arith.constant 0 : index
    %c0_46 = arith.constant 0 : index
    %c0_47 = arith.constant 0 : index
    %114 = vector.load %arg14[%c0_45, %c0_46, %c0_47] : memref<2x16x64xf32, #tpu.memory_space<vmem>>, vector<2x16x64xf32>
    tpu.vector_store %arg14[%c0_45, %c0_46, %c0_47], %113 {strides = array<i32>} : memref<2x16x64xf32, #tpu.memory_space<vmem>>, vector<2x16x64xf32>,
    return
  }
  func.func @transform_0(%arg0: i32) -> (i32, i32, i32) {
    %c0_i32 = arith.constant 0 : i32
    %c0_i32_0 = arith.constant 0 : i32
    %c0_i32_1 = arith.constant 0 : i32
    return %arg0, %c0_i32, %c0_i32_0 : i32, i32, i32
  }
  func.func @transform_1(%arg0: i32) -> (i32, i32) {
    %c0_i32 = arith.constant 0 : i32
    %c0_i32_0 = arith.constant 0 : i32
    %c0_i32_1 = arith.constant 0 : i32
    return %c0_i32, %c0_i32_0 : i32, i32
  }
  func.func @transform_2(%arg0: i32) -> (i32, i32) {
    %c0_i32 = arith.constant 0 : i32
    %c0_i32_0 = arith.constant 0 : i32
    %c0_i32_1 = arith.constant 0 : i32
    return %c0_i32, %c0_i32_0 : i32, i32
  }
  func.func @transform_3(%arg0: i32) -> (i32, i32) {
    %c0_i32 = arith.constant 0 : i32
    %c0_i32_0 = arith.constant 0 : i32
    %c0_i32_1 = arith.constant 0 : i32
    return %c0_i32, %c0_i32_0 : i32, i32
  }
  func.func @transform_4(%arg0: i32) -> (i32, i32) {
    %c0_i32 = arith.constant 0 : i32
    %c0_i32_0 = arith.constant 0 : i32
    %c0_i32_1 = arith.constant 0 : i32
    return %c0_i32, %c0_i32_0 : i32, i32
  }
  func.func @transform_5(%arg0: i32) -> (i32, i32) {
    %c0_i32 = arith.constant 0 : i32
    %c0_i32_0 = arith.constant 0 : i32
    %c0_i32_1 = arith.constant 0 : i32
    return %c0_i32, %c0_i32_0 : i32, i32
  }
  func.func @transform_6(%arg0: i32) -> (i32, i32) {
    %c0_i32 = arith.constant 0 : i32
    %c0_i32_0 = arith.constant 0 : i32
    %c0_i32_1 = arith.constant 0 : i32
    return %c0_i32, %c0_i32_0 : i32, i32
  }
  func.func @transform_7(%arg0: i32) -> (i32, i32) {
    %c0_i32 = arith.constant 0 : i32
    %c0_i32_0 = arith.constant 0 : i32
    %c0_i32_1 = arith.constant 0 : i32
    return %c0_i32, %c0_i32_0 : i32, i32
  }
  func.func @transform_8(%arg0: i32) -> (i32, i32) {
    %c0_i32 = arith.constant 0 : i32
    %c0_i32_0 = arith.constant 0 : i32
    %c0_i32_1 = arith.constant 0 : i32
    return %c0_i32, %c0_i32_0 : i32, i32
  }
  func.func @transform_9(%arg0: i32) -> (i32, i32) {
    %c0_i32 = arith.constant 0 : i32
    %c0_i32_0 = arith.constant 0 : i32
    %c0_i32_1 = arith.constant 0 : i32
    return %c0_i32, %c0_i32_0 : i32, i32
  }
  func.func @transform_10(%arg0: i32) -> (i32, i32) {
    %c0_i32 = arith.constant 0 : i32
    %c0_i32_0 = arith.constant 0 : i32
    %c0_i32_1 = arith.constant 0 : i32
    return %c0_i32, %c0_i32_0 : i32, i32
  }
  func.func @transform_11(%arg0: i32) -> (i32, i32) {
    %c0_i32 = arith.constant 0 : i32
    %c0_i32_0 = arith.constant 0 : i32
    %c0_i32_1 = arith.constant 0 : i32
    return %c0_i32, %c0_i32_0 : i32, i32
  }
  func.func @transform_12(%arg0: i32) -> (i32, i32) {
    %c0_i32 = arith.constant 0 : i32
    %c0_i32_0 = arith.constant 0 : i32
    %c0_i32_1 = arith.constant 0 : i32
    return %c0_i32, %c0_i32_0 : i32, i32
  }
  func.func @transform_13(%arg0: i32) -> (i32, i32, i32) {
    %c0_i32 = arith.constant 0 : i32
    %c0_i32_0 = arith.constant 0 : i32
    %c0_i32_1 = arith.constant 0 : i32
    return %arg0, %c0_i32, %c0_i32_0 : i32, i32, i32
  }
}

</mosaic_0001>

<llo_original>
// kernel: tpu_custom_call.1
$region0: #{tpu_custom_call.1}
  #allocation0 [shape = 'u32[]', space=smem, size = 0x4, offset = 0x4, fixed_abs, tag = 'smem constant byte address 0x4 - core index']
  #allocation1 [shape = 'u32[72,128]{1,0:T(1,128)}', space=vmem, size = 0x9000, scoped, tag = 'internal scratch']
  %s0 = inlined_call_operand.vmem [shape: f32[4,16,64], index: 0, kind: input, shape index: {}]
  %s1 = inlined_call_operand.hbm [shape: f32[1,64], index: 1, kind: input, shape index: {}]
  %s2 = inlined_call_operand.hbm [shape: f32[1,64], index: 2, kind: input, shape index: {}]
  %s3 = inlined_call_operand.vmem [shape: bf16[64,192], index: 3, kind: input, shape index: {}]
  %s4 = inlined_call_operand.vmem [shape: f32[1,192], index: 4, kind: input, shape index: {}]
  %s5 = inlined_call_operand.hbm [shape: bf16[64,64], index: 5, kind: input, shape index: {}]
  %s6 = inlined_call_operand.vmem [shape: f32[1,64], index: 6, kind: input, shape index: {}]
  %s7 = inlined_call_operand.hbm [shape: f32[1,64], index: 7, kind: input, shape index: {}]
  %s8 = inlined_call_operand.hbm [shape: f32[1,64], index: 8, kind: input, shape index: {}]
  %s9 = inlined_call_operand.vmem [shape: bf16[64,256], index: 9, kind: input, shape index: {}]
  %s10 = inlined_call_operand.vmem [shape: f32[1,256], index: 10, kind: input, shape index: {}]
  %s11 = inlined_call_operand.vmem [shape: bf16[256,64], index: 11, kind: input, shape index: {}]
  %s12 = inlined_call_operand.vmem [shape: f32[1,64], index: 12, kind: input, shape index: {}]
  %s13 = inlined_call_operand.hbm [shape: f32[4,16,64], index: 13, kind: output, shape index: {}]
  %s14 = sld [smem:[#allocation0]]
  $region105: #{tpu_custom_call.1} parent=0
    _
  %s16 = ssub.s32 1, %s14
  %s17 = scalar_select 0, %s16, %s14
  $region1: #{tpu_custom_call.1} parent=0
    #allocation2 [shape = 'u8[512]{0}', space=vmem, size = 0x400, scoped, tag = 'input window, operand 1, single buffered']
    #allocation3 [shape = 's32[2]{0}', space=sflag, size = 0x8, scoped, tag = 'scoped memory for tpu_custom_call.1']
    #allocation4 [shape = 's32[2]{0}', space=sflag, size = 0x8, scoped, tag = 'scoped memory for tpu_custom_call.1']
    #allocation5 [shape = 'u8[512]{0}', space=vmem, size = 0x400, scoped, tag = 'input window, operand 2, single buffered']
    #allocation6 [shape = 's32[1]{0}', space=sflag, size = 0x4, scoped, tag = 'scoped memory for tpu_custom_call.1']
    #allocation7 [shape = 'u8[16384]{0}', space=vmem, size = 0x4000, scoped, tag = 'input window, operand 5, single buffered']
    #allocation8 [shape = 'u8[512]{0}', space=vmem, size = 0x400, scoped, tag = 'input window, operand 7, single buffered']
    #allocation9 [shape = 's32[1]{0}', space=sflag, size = 0x4, scoped, tag = 'scoped memory for tpu_custom_call.1']
    #allocation10 [shape = 'u8[512]{0}', space=vmem, size = 0x400, scoped, tag = 'input window, operand 8, single buffered']
    #allocation11 [shape = 'u8[32768]{0}', space=vmem, size = 0x8000, scoped, tag = 'output window, operand 0']
    %18 = vsyncpa [#allocation3], 0
    %19 = vsyncpa [#allocation6], 0
    %20 = vsyncpa [#allocation9], 0
    %21 = vsyncpa [#allocation4], 0
    %s22 = scalar_lea.sflag [#allocation4], 1
    %23 = vsyncpa %s22, 0
    loop: start=0, step=1, limit=4
    $region2: #{tpu_custom_call.1} parent=1 // loop_pre_header
      _
    $region3: #{tpu_custom_call.1} parent=1 // loop_header
      %s25 = sphi 0, %s29
      %p26 = scmp.ge.s32.totalorder %s25, 4
      %s35 = sphi 0, %s37
      %s38 = sphi 0, %s35
      %s39 = sphi 0, %s38
      %s55 = sphi 0, %s39
      %s59 = sphi 0, %s59
      %s61 = sphi 0, %s59
      %s62 = sphi 0, %s61
      %s76 = sphi 0, %s62
      %s80 = sphi 0, %s80
      %s82 = sphi 0, %s80
      %s83 = sphi 0, %s82
      %s97 = sphi 0, %s83
      %s101 = sphi 0, %s101
      %s103 = sphi 0, %s101
      %s104 = sphi 0, %s103
      %s118 = sphi 0, %s104
      %s122 = sphi 0, %s122
      %s124 = sphi 0, %s122
      %s125 = sphi 0, %s124
      %s139 = sphi 0, %s125
      %s143 = sphi 0, %s143
      %s145 = sphi 0, %s143
      %s146 = sphi 0, %s145
      %s160 = sphi 0, %s146
      %s164 = sphi 0, %s164
      %s166 = sphi 0, %s164
      %s167 = sphi 0, %s166
      %s181 = sphi 0, %s167
      %s185 = sphi 0, %s185
      %s187 = sphi 0, %s185
      %s188 = sphi 0, %s187
      %s202 = sphi 0, %s188
      %s206 = sphi 0, %s206
      %s208 = sphi 0, %s206
      %s209 = sphi 0, %s208
      %s223 = sphi 0, %s209
      %s227 = sphi 0, %s227
      %s229 = sphi 0, %s227
      %s230 = sphi 0, %s229
      %s244 = sphi 0, %s230
      %s248 = sphi 0, %s248
      %s250 = sphi 0, %s248
      %s251 = sphi 0, %s250
      %s265 = sphi 0, %s251
      %s269 = sphi 0, %s269
      %s271 = sphi 0, %s269
      %s272 = sphi 0, %s271
      %s286 = sphi 0, %s272
      %s290 = sphi 0, %s290
      %s292 = sphi 0, %s290
      %s293 = sphi 0, %s292
      %s307 = sphi 0, %s293
      %s313 = sphi 0, %s315
      %s316 = sphi 0, %s313
      %s317 = sphi 0, %s316
      %s333 = sphi 0, %s317
    $region4: #{tpu_custom_call.1} parent=1 // loop_header_branch
      %28 = sbr.rel (%p26) target = $region8
    $region5: #{tpu_custom_call.1} parent=1 // loop_body
      %s30 = ssub.s32 %s25, 1
      %s31 = ssub.s32 %s25, 2
      %s32 = sadd.s32 %s25, 1
      %s33 = ssub.s32 %s25, %s32
      %p34 = scmp.eq.s32.totalorder %s33, 0
      %s36 = sadd.s32 %s35, 1
      %s37 = scalar_select %p34, %s35, %s36
      %p40 = pneg %p34
      %p41 = scmp.eq.s32.totalorder %s25, 1
      %p42 = por %p40, %p41
      %p43 = scmp.ne.s32.totalorder %s35, %s38
      %p44 = scmp.eq.s32.totalorder %s25, 0
      %p45 = por %p43, %p44
      %p46 = scmp.ne.s32.totalorder %s35, %s38
      %p47 = scmp.eq.s32.totalorder %s30, 1
      %p48 = por %p46, %p47
      %p49 = scmp.ne.s32.totalorder %s38, %s39
      %p50 = scmp.eq.s32.totalorder %s30, 0
      %p51 = por %p49, %p50
      %p52 = scmp.ne.s32.totalorder %s38, %s39
      %p53 = scmp.eq.s32.totalorder %s31, 1
      %p54 = por %p52, %p53
      %p56 = scmp.ne.s32.totalorder %s39, %s55
      %p57 = scmp.eq.s32.totalorder %s31, 0
      %p58 = por %p56, %p57
      %s60 = sadd.s32 %s59, 1
      %p63 = scmp.eq.s32.totalorder %s25, 1
      %p64 = scmp.ne.s32.totalorder %s59, %s61
      %p65 = scmp.eq.s32.totalorder %s25, 0
      %p66 = por %p64, %p65
      %p67 = scmp.ne.s32.totalorder %s59, %s61
      %p68 = scmp.eq.s32.totalorder %s30, 1
      %p69 = por %p67, %p68
      %p70 = scmp.ne.s32.totalorder %s61, %s62
      %p71 = scmp.eq.s32.totalorder %s30, 0
      %p72 = por %p70, %p71
      %p73 = scmp.ne.s32.totalorder %s61, %s62
      %p74 = scmp.eq.s32.totalorder %s31, 1
      %p75 = por %p73, %p74
      %p77 = scmp.ne.s32.totalorder %s62, %s76
      %p78 = scmp.eq.s32.totalorder %s31, 0
      %p79 = por %p77, %p78
      %s81 = sadd.s32 %s80, 1
      %p84 = scmp.eq.s32.totalorder %s25, 1
      %p85 = scmp.ne.s32.totalorder %s80, %s82
      %p86 = scmp.eq.s32.totalorder %s25, 0
      %p87 = por %p85, %p86
      %p88 = scmp.ne.s32.totalorder %s80, %s82
      %p89 = scmp.eq.s32.totalorder %s30, 1
      %p90 = por %p88, %p89
      %p91 = scmp.ne.s32.totalorder %s82, %s83
      %p92 = scmp.eq.s32.totalorder %s30, 0
      %p93 = por %p91, %p92
      %p94 = scmp.ne.s32.totalorder %s82, %s83
      %p95 = scmp.eq.s32.totalorder %s31, 1
      %p96 = por %p94, %p95
      %p98 = scmp.ne.s32.totalorder %s83, %s97
      %p99 = scmp.eq.s32.totalorder %s31, 0
      %p100 = por %p98, %p99
      %s102 = sadd.s32 %s101, 1
      %p105 = scmp.eq.s32.totalorder %s25, 1
      %p106 = scmp.ne.s32.totalorder %s101, %s103
      %p107 = scmp.eq.s32.totalorder %s25, 0
      %p108 = por %p106, %p107
      %p109 = scmp.ne.s32.totalorder %s101, %s103
      %p110 = scmp.eq.s32.totalorder %s30, 1
      %p111 = por %p109, %p110
      %p112 = scmp.ne.s32.totalorder %s103, %s104
      %p113 = scmp.eq.s32.totalorder %s30, 0
      %p114 = por %p112, %p113
      %p115 = scmp.ne.s32.totalorder %s103, %s104
      %p116 = scmp.eq.s32.totalorder %s31, 1
      %p117 = por %p115, %p116
      %p119 = scmp.ne.s32.totalorder %s104, %s118
      %p120 = scmp.eq.s32.totalorder %s31, 0
      %p121 = por %p119, %p120
      %s123 = sadd.s32 %s122, 1
      %p126 = scmp.eq.s32.totalorder %s25, 1
      %p127 = scmp.ne.s32.totalorder %s122, %s124
      %p128 = scmp.eq.s32.totalorder %s25, 0
      %p129 = por %p127, %p128
      %p130 = scmp.ne.s32.totalorder %s122, %s124
      %p131 = scmp.eq.s32.totalorder %s30, 1
      %p132 = por %p130, %p131
      %p133 = scmp.ne.s32.totalorder %s124, %s125
      %p134 = scmp.eq.s32.totalorder %s30, 0
      %p135 = por %p133, %p134
      %p136 = scmp.ne.s32.totalorder %s124, %s125
      %p137 = scmp.eq.s32.totalorder %s31, 1
      %p138 = por %p136, %p137
      %p140 = scmp.ne.s32.totalorder %s125, %s139
      %p141 = scmp.eq.s32.totalorder %s31, 0
      %p142 = por %p140, %p141
      %s144 = sadd.s32 %s143, 1
      %p147 = scmp.eq.s32.totalorder %s25, 1
      %p148 = scmp.ne.s32.totalorder %s143, %s145
      %p149 = scmp.eq.s32.totalorder %s25, 0
      %p150 = por %p148, %p149
      %p151 = scmp.ne.s32.totalorder %s143, %s145
      %p152 = scmp.eq.s32.totalorder %s30, 1
      %p153 = por %p151, %p152
      %p154 = scmp.ne.s32.totalorder %s145, %s146
      %p155 = scmp.eq.s32.totalorder %s30, 0
      %p156 = por %p154, %p155
      %p157 = scmp.ne.s32.totalorder %s145, %s146
      %p158 = scmp.eq.s32.totalorder %s31, 1
      %p159 = por %p157, %p158
      %p161 = scmp.ne.s32.totalorder %s146, %s160
      %p162 = scmp.eq.s32.totalorder %s31, 0
      %p163 = por %p161, %p162
      %s165 = sadd.s32 %s164, 1
      %p168 = scmp.eq.s32.totalorder %s25, 1
      %p169 = scmp.ne.s32.totalorder %s164, %s166
      %p170 = scmp.eq.s32.totalorder %s25, 0
      %p171 = por %p169, %p170
      %p172 = scmp.ne.s32.totalorder %s164, %s166
      %p173 = scmp.eq.s32.totalorder %s30, 1
      %p174 = por %p172, %p173
      %p175 = scmp.ne.s32.totalorder %s166, %s167
      %p176 = scmp.eq.s32.totalorder %s30, 0
      %p177 = por %p175, %p176
      %p178 = scmp.ne.s32.totalorder %s166, %s167
      %p179 = scmp.eq.s32.totalorder %s31, 1
      %p180 = por %p178, %p179
      %p182 = scmp.ne.s32.totalorder %s167, %s181
      %p183 = scmp.eq.s32.totalorder %s31, 0
      %p184 = por %p182, %p183
      %s186 = sadd.s32 %s185, 1
      %p189 = scmp.eq.s32.totalorder %s25, 1
      %p190 = scmp.ne.s32.totalorder %s185, %s187
      %p191 = scmp.eq.s32.totalorder %s25, 0
      %p192 = por %p190, %p191
      %p193 = scmp.ne.s32.totalorder %s185, %s187
      %p194 = scmp.eq.s32.totalorder %s30, 1
      %p195 = por %p193, %p194
      %p196 = scmp.ne.s32.totalorder %s187, %s188
      %p197 = scmp.eq.s32.totalorder %s30, 0
      %p198 = por %p196, %p197
      %p199 = scmp.ne.s32.totalorder %s187, %s188
      %p200 = scmp.eq.s32.totalorder %s31, 1
      %p201 = por %p199, %p200
      %p203 = scmp.ne.s32.totalorder %s188, %s202
      %p204 = scmp.eq.s32.totalorder %s31, 0
      %p205 = por %p203, %p204
      %s207 = sadd.s32 %s206, 1
      %p210 = scmp.eq.s32.totalorder %s25, 1
      %p211 = scmp.ne.s32.totalorder %s206, %s208
      %p212 = scmp.eq.s32.totalorder %s25, 0
      %p213 = por %p211, %p212
      %p214 = scmp.ne.s32.totalorder %s206, %s208
      %p215 = scmp.eq.s32.totalorder %s30, 1
      %p216 = por %p214, %p215
      %p217 = scmp.ne.s32.totalorder %s208, %s209
      %p218 = scmp.eq.s32.totalorder %s30, 0
      %p219 = por %p217, %p218
      %p220 = scmp.ne.s32.totalorder %s208, %s209
      %p221 = scmp.eq.s32.totalorder %s31, 1
      %p222 = por %p220, %p221
      %p224 = scmp.ne.s32.totalorder %s209, %s223
      %p225 = scmp.eq.s32.totalorder %s31, 0
      %p226 = por %p224, %p225
      %s228 = sadd.s32 %s227, 1
      %p231 = scmp.eq.s32.totalorder %s25, 1
      %p232 = scmp.ne.s32.totalorder %s227, %s229
      %p233 = scmp.eq.s32.totalorder %s25, 0
      %p234 = por %p232, %p233
      %p235 = scmp.ne.s32.totalorder %s227, %s229
      %p236 = scmp.eq.s32.totalorder %s30, 1
      %p237 = por %p235, %p236
      %p238 = scmp.ne.s32.totalorder %s229, %s230
      %p239 = scmp.eq.s32.totalorder %s30, 0
      %p240 = por %p238, %p239
      %p241 = scmp.ne.s32.totalorder %s229, %s230
      %p242 = scmp.eq.s32.totalorder %s31, 1
      %p243 = por %p241, %p242
      %p245 = scmp.ne.s32.totalorder %s230, %s244
      %p246 = scmp.eq.s32.totalorder %s31, 0
      %p247 = por %p245, %p246
      %s249 = sadd.s32 %s248, 1
      %p252 = scmp.eq.s32.totalorder %s25, 1
      %p253 = scmp.ne.s32.totalorder %s248, %s250
      %p254 = scmp.eq.s32.totalorder %s25, 0
      %p255 = por %p253, %p254
      %p256 = scmp.ne.s32.totalorder %s248, %s250
      %p257 = scmp.eq.s32.totalorder %s30, 1
      %p258 = por %p256, %p257
      %p259 = scmp.ne.s32.totalorder %s250, %s251
      %p260 = scmp.eq.s32.totalorder %s30, 0
      %p261 = por %p259, %p260
      %p262 = scmp.ne.s32.totalorder %s250, %s251
      %p263 = scmp.eq.s32.totalorder %s31, 1
      %p264 = por %p262, %p263
      %p266 = scmp.ne.s32.totalorder %s251, %s265
      %p267 = scmp.eq.s32.totalorder %s31, 0
      %p268 = por %p266, %p267
      %s270 = sadd.s32 %s269, 1
      %p273 = scmp.eq.s32.totalorder %s25, 1
      %p274 = scmp.ne.s32.totalorder %s269, %s271
      %p275 = scmp.eq.s32.totalorder %s25, 0
      %p276 = por %p274, %p275
      %p277 = scmp.ne.s32.totalorder %s269, %s271
      %p278 = scmp.eq.s32.totalorder %s30, 1
      %p279 = por %p277, %p278
      %p280 = scmp.ne.s32.totalorder %s271, %s272
      %p281 = scmp.eq.s32.totalorder %s30, 0
      %p282 = por %p280, %p281
      %p283 = scmp.ne.s32.totalorder %s271, %s272
      %p284 = scmp.eq.s32.totalorder %s31, 1
      %p285 = por %p283, %p284
      %p287 = scmp.ne.s32.totalorder %s272, %s286
      %p288 = scmp.eq.s32.totalorder %s31, 0
      %p289 = por %p287, %p288
      %s291 = sadd.s32 %s290, 1
      %p294 = scmp.eq.s32.totalorder %s25, 1
      %p295 = scmp.ne.s32.totalorder %s290, %s292
      %p296 = scmp.eq.s32.totalorder %s25, 0
      %p297 = por %p295, %p296
      %p298 = scmp.ne.s32.totalorder %s290, %s292
      %p299 = scmp.eq.s32.totalorder %s30, 1
      %p300 = por %p298, %p299
      %p301 = scmp.ne.s32.totalorder %s292, %s293
      %p302 = scmp.eq.s32.totalorder %s30, 0
      %p303 = por %p301, %p302
      %p304 = scmp.ne.s32.totalorder %s292, %s293
      %p305 = scmp.eq.s32.totalorder %s31, 1
      %p306 = por %p304, %p305
      %p308 = scmp.ne.s32.totalorder %s293, %s307
      %p309 = scmp.eq.s32.totalorder %s31, 0
      %p310 = por %p308, %p309
      %s311 = ssub.s32 %s25, %s32
      %p312 = scmp.eq.s32.totalorder %s311, 0
      %s314 = sadd.s32 %s313, 1
      %s315 = scalar_select %p312, %s313, %s314
      %p318 = pneg %p312
      %p319 = scmp.eq.s32.totalorder %s25, 1
      %p320 = por %p318, %p319
      %p321 = scmp.ne.s32.totalorder %s313, %s316
      %p322 = scmp.eq.s32.totalorder %s25, 0
      %p323 = por %p321, %p322
      %p324 = scmp.ne.s32.totalorder %s313, %s316
      %p325 = scmp.eq.s32.totalorder %s30, 1
      %p326 = por %p324, %p325
      %p327 = scmp.ne.s32.totalorder %s316, %s317
      %p328 = scmp.eq.s32.totalorder %s30, 0
      %p329 = por %p327, %p328
      %p330 = scmp.ne.s32.totalorder %s316, %s317
      %p331 = scmp.eq.s32.totalorder %s31, 1
      %p332 = por %p330, %p331
      %p334 = scmp.ne.s32.totalorder %s317, %s333
      %p335 = scmp.eq.s32.totalorder %s31, 0
      %p336 = por %p334, %p335
      %p337 = scmp.le.s32.totalorder 1, %s25
      %p338 = scmp.lt.s32.totalorder %s25, 3
      %p339 = pnand %p337, %p338
      %p340 = pneg %p339
      // Predicated region
      $region9: #{tpu_custom_call.1} parent=5 // pred_check
        _
      $region10: #{tpu_custom_call.1} parent=5 // pred_check_branch
        %342 = sbr.rel (%p339) target = $region12
      $region11: #{tpu_custom_call.1} parent=5 // pred_region
        %s343 = ssub.s32 %s25, 1
        // Predicated region
        $region13: #{tpu_custom_call.1} parent=11 // pred_check
          %p344 = pneg %p72
        $region14: #{tpu_custom_call.1} parent=11 // pred_check_branch
          %346 = sbr.rel (%p344) target = $region16
        $region15: #{tpu_custom_call.1} parent=11 // pred_region
          %348 = vsyncadd [#allocation3], 0
          %s350 = sshll.u32 %s1, 4
          %s351 = int_to_ptr.hbm [resolvable:$true] %s350
          %s352 = sshll.u32 [#allocation2], 4
          %s353 = int_to_ptr.vmem [resolvable:$true] %s352
          %355 = dma.hbm_to_vmem [thread:$0]  %s351, 16, %s353, [#allocation3]
        $region16: #{tpu_custom_call.1} parent=11 // pred_fallthru
          _
        // Predicated region
        $region17: #{tpu_custom_call.1} parent=11 // pred_check
          %p356 = pneg %p93
        $region18: #{tpu_custom_call.1} parent=11 // pred_check_branch
          %358 = sbr.rel (%p356) target = $region20
        $region19: #{tpu_custom_call.1} parent=11 // pred_region
          %360 = vsyncadd [#allocation6], 0
          %s362 = sshll.u32 %s2, 4
          %s363 = int_to_ptr.hbm [resolvable:$true] %s362
          %s364 = sshll.u32 [#allocation5], 4
          %s365 = int_to_ptr.vmem [resolvable:$true] %s364
          %367 = dma.hbm_to_vmem [thread:$0]  %s363, 16, %s365, [#allocation6]
        $region20: #{tpu_custom_call.1} parent=11 // pred_fallthru
          _
        // Predicated region
        $region21: #{tpu_custom_call.1} parent=11 // pred_check
          %p368 = pneg %p114
        $region22: #{tpu_custom_call.1} parent=11 // pred_check_branch
          %370 = sbr.rel (%p368) target = $region24
        $region23: #{tpu_custom_call.1} parent=11 // pred_region
          _
        $region24: #{tpu_custom_call.1} parent=11 // pred_fallthru
          _
        // Predicated region
        $region25: #{tpu_custom_call.1} parent=11 // pred_check
          %p371 = pneg %p135
        $region26: #{tpu_custom_call.1} parent=11 // pred_check_branch
          %373 = sbr.rel (%p371) target = $region28
        $region27: #{tpu_custom_call.1} parent=11 // pred_region
          _
        $region28: #{tpu_custom_call.1} parent=11 // pred_fallthru
          _
        // Predicated region
        $region29: #{tpu_custom_call.1} parent=11 // pred_check
          %p374 = pneg %p156
        $region30: #{tpu_custom_call.1} parent=11 // pred_check_branch
          %376 = sbr.rel (%p374) target = $region32
        $region31: #{tpu_custom_call.1} parent=11 // pred_region
          %378 = vsyncadd [#allocation6], 0
          %s379 = sshll.u32 %s5, 4
          %s380 = int_to_ptr.hbm [resolvable:$true] %s379
          %s381 = sshll.u32 [#allocation7], 4
          %s382 = int_to_ptr.vmem [resolvable:$true] %s381
          %387 = dma.hbm_to_vmem [thread:$0]  %s380, 512, %s382, [#allocation6], 64, 64, 4
        $region32: #{tpu_custom_call.1} parent=11 // pred_fallthru
          _
        // Predicated region
        $region33: #{tpu_custom_call.1} parent=11 // pred_check
          %p388 = pneg %p177
        $region34: #{tpu_custom_call.1} parent=11 // pred_check_branch
          %390 = sbr.rel (%p388) target = $region36
        $region35: #{tpu_custom_call.1} parent=11 // pred_region
          _
        $region36: #{tpu_custom_call.1} parent=11 // pred_fallthru
          _
        // Predicated region
        $region37: #{tpu_custom_call.1} parent=11 // pred_check
          %p391 = pneg %p198
        $region38: #{tpu_custom_call.1} parent=11 // pred_check_branch
          %393 = sbr.rel (%p391) target = $region40
        $region39: #{tpu_custom_call.1} parent=11 // pred_region
          %395 = vsyncadd [#allocation9], 0
          %s397 = sshll.u32 %s7, 4
          %s398 = int_to_ptr.hbm [resolvable:$true] %s397
          %s399 = sshll.u32 [#allocation8], 4
          %s400 = int_to_ptr.vmem [resolvable:$true] %s399
          %402 = dma.hbm_to_vmem [thread:$0]  %s398, 16, %s400, [#allocation9]
        $region40: #{tpu_custom_call.1} parent=11 // pred_fallthru
          _
        // Predicated region
        $region41: #{tpu_custom_call.1} parent=11 // pred_check
          %p403 = pneg %p219
        $region42: #{tpu_custom_call.1} parent=11 // pred_check_branch
          %405 = sbr.rel (%p403) target = $region44
        $region43: #{tpu_custom_call.1} parent=11 // pred_region
          %407 = vsyncadd [#allocation9], 0
          %s409 = sshll.u32 %s8, 4
          %s410 = int_to_ptr.hbm [resolvable:$true] %s409
          %s411 = sshll.u32 [#allocation10], 4
          %s412 = int_to_ptr.vmem [resolvable:$true] %s411
          %414 = dma.hbm_to_vmem [thread:$0]  %s410, 16, %s412, [#allocation9]
        $region44: #{tpu_custom_call.1} parent=11 // pred_fallthru
          _
        // Predicated region
        $region45: #{tpu_custom_call.1} parent=11 // pred_check
          %p415 = pneg %p240
        $region46: #{tpu_custom_call.1} parent=11 // pred_check_branch
          %417 = sbr.rel (%p415) target = $region48
        $region47: #{tpu_custom_call.1} parent=11 // pred_region
          _
        $region48: #{tpu_custom_call.1} parent=11 // pred_fallthru
          _
        // Predicated region
        $region49: #{tpu_custom_call.1} parent=11 // pred_check
          %p418 = pneg %p261
        $region50: #{tpu_custom_call.1} parent=11 // pred_check_branch
          %420 = sbr.rel (%p418) target = $region52
        $region51: #{tpu_custom_call.1} parent=11 // pred_region
          _
        $region52: #{tpu_custom_call.1} parent=11 // pred_fallthru
          _
        // Predicated region
        $region53: #{tpu_custom_call.1} parent=11 // pred_check
          %p421 = pneg %p282
        $region54: #{tpu_custom_call.1} parent=11 // pred_check_branch
          %423 = sbr.rel (%p421) target = $region56
        $region55: #{tpu_custom_call.1} parent=11 // pred_region
          _
        $region56: #{tpu_custom_call.1} parent=11 // pred_fallthru
          _
        // Predicated region
        $region57: #{tpu_custom_call.1} parent=11 // pred_check
          %p424 = pneg %p303
        $region58: #{tpu_custom_call.1} parent=11 // pred_check_branch
          %426 = sbr.rel (%p424) target = $region60
        $region59: #{tpu_custom_call.1} parent=11 // pred_region
          _
        $region60: #{tpu_custom_call.1} parent=11 // pred_fallthru
          _
      $region12: #{tpu_custom_call.1} parent=5 // pred_fallthru
        _
      %p427 = scmp.lt.s32.totalorder %s25, 2
      // Predicated region
      $region61: #{tpu_custom_call.1} parent=5 // pred_check
        %p428 = pneg %p427
      $region62: #{tpu_custom_call.1} parent=5 // pred_check_branch
        %430 = sbr.rel (%p428) target = $region64
      $region63: #{tpu_custom_call.1} parent=5 // pred_region
        // Predicated region
        $region65: #{tpu_custom_call.1} parent=63 // pred_check
          %p431 = pneg %p45
        $region66: #{tpu_custom_call.1} parent=63 // pred_check_branch
          %433 = sbr.rel (%p431) target = $region68
        $region67: #{tpu_custom_call.1} parent=63 // pred_region
          %s434 = smul.u32 2, %s25
          %p435 = scmp.lt.s32.totalorder %s434, 3
          %s436 = scalar_select %p435, %s434, 3
          %s437 = smul.addr %s436, 2
          %s438 = smul.addr %s437, 8
          %s439 = scalar_lea.vmem %s0, %s438
          %s440 = smul.u32 2, %s25
        $region68: #{tpu_custom_call.1} parent=63 // pred_fallthru
          _
      $region64: #{tpu_custom_call.1} parent=5 // pred_fallthru
        _
      %p441 = scmp.le.s32.totalorder 1, %s25
      %p442 = scmp.lt.s32.totalorder %s25, 3
      %p443 = pnand %p441, %p442
      %p444 = pneg %p443
      // Predicated region
      $region69: #{tpu_custom_call.1} parent=5 // pred_check
        _
      $region70: #{tpu_custom_call.1} parent=5 // pred_check_branch
        %446 = sbr.rel (%p443) target = $region72
      $region71: #{tpu_custom_call.1} parent=5 // pred_region
        %s447 = ssub.s32 %s25, 1
        // Predicated region
        $region73: #{tpu_custom_call.1} parent=71 // pred_check
          %p448 = pneg %p72
        $region74: #{tpu_custom_call.1} parent=71 // pred_check_branch
          %450 = sbr.rel (%p448) target = $region76
        $region75: #{tpu_custom_call.1} parent=71 // pred_region
          %452 = dma.done [#allocation3], 16
        $region76: #{tpu_custom_call.1} parent=71 // pred_fallthru
          _
        // Predicated region
        $region77: #{tpu_custom_call.1} parent=71 // pred_check
          %p453 = pneg %p93
        $region78: #{tpu_custom_call.1} parent=71 // pred_check_branch
          %455 = sbr.rel (%p453) target = $region80
        $region79: #{tpu_custom_call.1} parent=71 // pred_region
          %457 = dma.done [#allocation6], 16
        $region80: #{tpu_custom_call.1} parent=71 // pred_fallthru
          _
        // Predicated region
        $region81: #{tpu_custom_call.1} parent=71 // pred_check
          %p458 = pneg %p156
        $region82: #{tpu_custom_call.1} parent=71 // pred_check_branch
          %460 = sbr.rel (%p458) target = $region84
        $region83: #{tpu_custom_call.1} parent=71 // pred_region
          %462 = dma.done [#allocation6], 512
        $region84: #{tpu_custom_call.1} parent=71 // pred_fallthru
          _
        // Predicated region
        $region85: #{tpu_custom_call.1} parent=71 // pred_check
          %p463 = pneg %p198
        $region86: #{tpu_custom_call.1} parent=71 // pred_check_branch
          %465 = sbr.rel (%p463) target = $region88
        $region87: #{tpu_custom_call.1} parent=71 // pred_region
          %467 = dma.done [#allocation9], 16
        $region88: #{tpu_custom_call.1} parent=71 // pred_fallthru
          _
        // Predicated region
        $region89: #{tpu_custom_call.1} parent=71 // pred_check
          %p468 = pneg %p219
        $region90: #{tpu_custom_call.1} parent=71 // pred_check_branch
          %470 = sbr.rel (%p468) target = $region92
        $region91: #{tpu_custom_call.1} parent=71 // pred_region
          %472 = dma.done [#allocation9], 16
        $region92: #{tpu_custom_call.1} parent=71 // pred_fallthru
          _
        %s473 = smul.u32 2, %s30
        %p474 = scmp.lt.s32.totalorder %s473, 3
        %s475 = scalar_select %p474, %s473, 3
        %s476 = smul.addr %s475, 2
        %s477 = smul.addr %s476, 8
        %s478 = scalar_lea.vmem %s0, %s477
        %p479 = pneg %p51
        %p480 = pneg %p48
        %p481 = pneg %p72
        %p482 = pneg %p69
        %p483 = pneg %p93
        %p484 = pneg %p90
        %p485 = pneg %p114
        %p486 = pneg %p111
        %p487 = pneg %p135
        %p488 = pneg %p132
        %p489 = pneg %p156
        %p490 = pneg %p153
        %p491 = pneg %p177
        %p492 = pneg %p174
        %p493 = pneg %p198
        %p494 = pneg %p195
        %p495 = pneg %p219
        %p496 = pneg %p216
        %p497 = pneg %p240
        %p498 = pneg %p237
        %p499 = pneg %p261
        %p500 = pneg %p258
        %p501 = pneg %p282
        %p502 = pneg %p279
        %p503 = pneg %p303
        %p504 = pneg %p300
        %p505 = pneg %p329
        %p506 = pneg %p326
        %s507 = sand.u32 %s316, 1
        %s508 = scalar_lea.sflag [#allocation4], %s507
        %s509 = sand.u32 %s316, 1
        %s510 = smul.addr %s509, 32
        %s511 = scalar_lea.vmem [#allocation11], %s510
        %s512 = smul.u32 2, %s30
        %p513 = scmp.lt.s32.totalorder %s512, 3
        %s514 = scalar_select %p513, %s512, 3
        %s515 = smul.addr %s514, 2
        %s516 = smul.addr %s515, 8
        %s517 = scalar_lea.vmem %s0, %s516
        %s518 = smul.u32 2, %s30
        %s519 = smul.u32 2, %s30
        %v521 = vld [vmem:[%s517] sm:$0xff]
        %v522 = vld [vmem:[%s517 + $0x8] sm:$0xff]
        %v523 = vld [vmem:[%s517 + $0x10] sm:$0xff]
        %v524 = vld [vmem:[%s517 + $0x18] sm:$0xff]
        %v525 = vld [vmem:[#allocation2] sm:$0x1]
        %v526 = vld [vmem:[#allocation5] sm:$0x1]
        %vm527 = vcmask 523264
        %v528 = vsel %vm527, %v521, 0.0
        %529 = vadd.xlane.f32.xlu0 %v528
        %v530 = vpop.xlane.xlu0 %529
        %v531 = vsel %vm527, %v522, 0.0
        %532 = vadd.xlane.f32.xlu0 %v531
        %v533 = vpop.xlane.xlu0 %532
        %v534 = vsel %vm527, %v523, 0.0
        %535 = vadd.xlane.f32.xlu0 %v534
        %v536 = vpop.xlane.xlu0 %535
        %v537 = vsel %vm527, %v524, 0.0
        %538 = vadd.xlane.f32.xlu0 %v537
        %v539 = vpop.xlane.xlu0 %538
        %v540 = vrcp.pop 64.0
        %v541 = vmul.f32 64.0, %v540
        %v542 = vsub.f32 1.0, %v541
        %v543 = vmul.f32 %v540, %v542
        %v544 = vadd.f32 %v540, %v543
        %vm545 = vweird.f32 %v540
        %v546 = vsel %vm545, %v540, %v544
        %v547 = vmul.f32 %v530, %v546
        %v548 = vmul.f32 %v533, %v546
        %v549 = vmul.f32 %v536, %v546
        %v550 = vmul.f32 %v539, %v546
        %v551 = vsub.f32 %v521, %v547
        %v552 = vsub.f32 %v522, %v548
        %v553 = vsub.f32 %v523, %v549
        %v554 = vsub.f32 %v524, %v550
        %v555 = vmul.f32 %v551, %v551
        %v556 = vmul.f32 %v552, %v552
        %v557 = vmul.f32 %v553, %v553
        %v558 = vmul.f32 %v554, %v554
        %v559 = vsel %vm527, %v555, 0.0
        %560 = vadd.xlane.f32.xlu0 %v559
        %v561 = vpop.xlane.xlu0 %560
        %v562 = vsel %vm527, %v556, 0.0
        %563 = vadd.xlane.f32.xlu0 %v562
        %v564 = vpop.xlane.xlu0 %563
        %v565 = vsel %vm527, %v557, 0.0
        %566 = vadd.xlane.f32.xlu0 %v565
        %v567 = vpop.xlane.xlu0 %566
        %v568 = vsel %vm527, %v558, 0.0
        %569 = vadd.xlane.f32.xlu0 %v568
        %v570 = vpop.xlane.xlu0 %569
        %v571 = vmul.f32 %v561, %v546
        %v572 = vmul.f32 %v564, %v546
        %v573 = vmul.f32 %v567, %v546
        %v574 = vmul.f32 %v570, %v546
        %v575 = vadd.f32 %v571, 1e-05
        %v576 = vadd.f32 %v572, 1e-05
        %v577 = vadd.f32 %v573, 1e-05
        %v578 = vadd.f32 %v574, 1e-05
        %v579 = vrsqrt.pop %v575
        %v580 = vmul.f32 %v579, %v575
        %v581 = vmul.f32 %v580, %v579
        %v582 = vmul.f32 0.5, %v581
        %v583 = vsub.f32 1.5, %v582
        %v584 = vmul.f32 %v579, %v583
        %vm585 = vweird.f32 %v575
        %vm586 = vweird.f32 %v579
        %vm587 = vmor %vm585, %vm586
        %v588 = vsel %vm587, %v579, %v584
        %v589 = vrsqrt.pop %v576
        %v590 = vmul.f32 %v589, %v576
        %v591 = vmul.f32 %v590, %v589
        %v592 = vmul.f32 0.5, %v591
        %v593 = vsub.f32 1.5, %v592
        %v594 = vmul.f32 %v589, %v593
        %vm595 = vweird.f32 %v576
        %vm596 = vweird.f32 %v589
        %vm597 = vmor %vm595, %vm596
        %v598 = vsel %vm597, %v589, %v594
        %v599 = vrsqrt.pop %v577
        %v600 = vmul.f32 %v599, %v577
        %v601 = vmul.f32 %v600, %v599
        %v602 = vmul.f32 0.5, %v601
        %v603 = vsub.f32 1.5, %v602
        %v604 = vmul.f32 %v599, %v603
        %vm605 = vweird.f32 %v577
        %vm606 = vweird.f32 %v599
        %vm607 = vmor %vm605, %vm606
        %v608 = vsel %vm607, %v599, %v604
        %v609 = vrsqrt.pop %v578
        %v610 = vmul.f32 %v609, %v578
        %v611 = vmul.f32 %v610, %v609
        %v612 = vmul.f32 0.5, %v611
        %v613 = vsub.f32 1.5, %v612
        %v614 = vmul.f32 %v609, %v613
        %vm615 = vweird.f32 %v578
        %vm616 = vweird.f32 %v609
        %vm617 = vmor %vm615, %vm616
        %v618 = vsel %vm617, %v609, %v614
        %v619 = vmul.f32 %v551, %v588
        %v620 = vmul.f32 %v552, %v598
        %v621 = vmul.f32 %v553, %v608
        %v622 = vmul.f32 %v554, %v618
        %v624 = vperm.slane %v525, 0
        %v626 = vmul.f32 %v619, %v624
        %v627 = vmul.f32 %v620, %v624
        %v628 = vmul.f32 %v621, %v624
        %v629 = vmul.f32 %v622, %v624
        %v631 = vperm.slane %v526, 0
        %v633 = vadd.f32 %v626, %v631
        %v634 = vadd.f32 %v627, %v631
        %v635 = vadd.f32 %v628, %v631
        %v636 = vadd.f32 %v629, %v631
        %v637 = vpack.c.bf16 %v634, %v633
        %v638 = vpack.c.bf16 %v636, %v635
        %v639 = vld [vmem:[%s3] sm:$0xff]
        %v640 = vld [vmem:[%s3 + $0x8] sm:$0xff]
        %v641 = vld [vmem:[%s3 + $0x10] sm:$0xff]
        %v642 = vld [vmem:[%s3 + $0x18] sm:$0xff]
        %v643 = vld [vmem:[%s3 + $0x20] sm:$0xff]
        %v644 = vld [vmem:[%s3 + $0x28] sm:$0xff]
        %v645 = vld [vmem:[%s3 + $0x30] sm:$0xff]
        %v646 = vld [vmem:[%s3 + $0x38] sm:$0xff]
        %v647 = vld [vmem:[%s4] sm:$0x3]
        %v649 = vperm.slane %v647, 0
        %v650 = vperm.slane %v647, 1
        %v661 = vunpack.c.l.b16 %v639
        %v662 = vunpack.c.h.b16 %v639
        %v663 = vunpack.c.l.b16 %v640
        %v664 = vunpack.c.h.b16 %v640
        %v665 = vunpack.c.l.b16 %v641
        %v666 = vunpack.c.h.b16 %v641
        %v667 = vunpack.c.l.b16 %v642
        %v668 = vunpack.c.h.b16 %v642
        %v669 = vunpack.c.l.b16 %v643
        %v670 = vunpack.c.h.b16 %v643
        %v671 = vunpack.c.l.b16 %v644
        %v672 = vunpack.c.h.b16 %v644
        %v673 = vunpack.c.l.b16 %v645
        %v674 = vunpack.c.h.b16 %v645
        %v675 = vunpack.c.l.b16 %v646
        %v676 = vunpack.c.h.b16 %v646
        %v677 = vpack.c.b16 %v663, %v661
        %v678 = vpack.c.b16 %v664, %v662
        %v679 = vpack.c.b16 %v667, %v665
        %v680 = vpack.c.b16 %v668, %v666
        %v681 = vpack.c.b16 %v671, %v669
        %v682 = vpack.c.b16 %v672, %v670
        %v683 = vpack.c.b16 %v675, %v673
        %v684 = vpack.c.b16 %v676, %v674
        %v694 = vsel %vm527, %v637, 0
        %v697 = vsel %vm527, %v638, 0
        %699 = vmatpush.bf16.msra.mxu0 0
        %700 = vmatpush.bf16.msra.mxu0 0
        %701 = vmatpush.bf16.msra.mxu0 0
        %702 = vmatpush.bf16.msra.mxu0 0
        %703 = vmatpush.bf16.msra.mxu0 %v683
        %704 = vmatpush.bf16.msra.mxu0 %v681
        %705 = vmatpush.bf16.msra.mxu0 %v679
        %706 = vmatpush.bf16.msra.mxu0 %v677
        %707 = vmatmul.bf16.gmra.mxu0 %v694
        %v708 = vpop.f32.mrf.mxu0
        %v709 = vadd.f32 %v649, %v708
        %v710 = vpop.f32.mrf.mxu0
        %v711 = vadd.f32 %v649, %v710
        %712 = vmatmul.bf16.gmra.mxu0 %v697
        %v713 = vpop.f32.mrf.mxu0
        %v714 = vadd.f32 %v649, %v713
        %v715 = vpop.f32.mrf.mxu0
        %v716 = vadd.f32 %v649, %v715
        %717 = vdwg.mxu0
        %718 = vmatpush.bf16.msra.mxu0 0
        %719 = vmatpush.bf16.msra.mxu0 0
        %720 = vmatpush.bf16.msra.mxu0 0
        %721 = vmatpush.bf16.msra.mxu0 0
        %722 = vmatpush.bf16.msra.mxu0 %v684
        %723 = vmatpush.bf16.msra.mxu0 %v682
        %724 = vmatpush.bf16.msra.mxu0 %v680
        %725 = vmatpush.bf16.msra.mxu0 %v678
        %726 = vmatmul.bf16.gmra.mxu0 %v694
        %v727 = vpop.f32.mrf.mxu0
        %v728 = vadd.f32 %v650, %v727
        %v729 = vpop.f32.mrf.mxu0
        %v730 = vadd.f32 %v650, %v729
        %731 = vmatmul.bf16.gmra.mxu0 %v697
        %v732 = vpop.f32.mrf.mxu0
        %v733 = vadd.f32 %v650, %v732
        %v734 = vpop.f32.mrf.mxu0
        %v735 = vadd.f32 %v650, %v734
        %736 = vdwg.mxu0
        %v737 = vpack.c.bf16 %v728, %v709
        %v738 = vpack.c.bf16 %v730, %v711
        %v739 = vpack.c.bf16 %v733, %v714
        %v740 = vpack.c.bf16 %v735, %v716
        %745 = vrot.lane.b32.xlu0 %v737, 112
        %v746 = vpop.permute.xlu0 %745
        %747 = vrot.lane.b32.xlu0 %v738, 112
        %v748 = vpop.permute.xlu0 %747
        %749 = vrot.lane.b32.xlu0 %v739, 112
        %v750 = vpop.permute.xlu0 %749
        %751 = vrot.lane.b32.xlu0 %v740, 112
        %v752 = vpop.permute.xlu0 %751
        %753 = vrot.lane.b32.xlu0 %v737, 96
        %v754 = vpop.permute.xlu0 %753
        %755 = vrot.lane.b32.xlu0 %v738, 96
        %v756 = vpop.permute.xlu0 %755
        %757 = vrot.lane.b32.xlu0 %v739, 96
        %v758 = vpop.permute.xlu0 %757
        %759 = vrot.lane.b32.xlu0 %v740, 96
        %v760 = vpop.permute.xlu0 %759
        %761 = vrot.lane.b32.xlu0 %v737, 80
        %v762 = vpop.permute.xlu0 %761
        %763 = vrot.lane.b32.xlu0 %v738, 80
        %v764 = vpop.permute.xlu0 %763
        %765 = vrot.lane.b32.xlu0 %v739, 80
        %v766 = vpop.permute.xlu0 %765
        %767 = vrot.lane.b32.xlu0 %v740, 80
        %v768 = vpop.permute.xlu0 %767
        %v771 = vpack.i.b16 %v746, %v737
        %v772 = vshrl.u32 %v737, 16
        %v773 = vshrl.u32 %v746, 16
        %v774 = vpack.i.b16 %v773, %v772
        %v777 = vpack.i.b16 %v762, %v754
        %v778 = vshrl.u32 %v754, 16
        %v779 = vshrl.u32 %v762, 16
        %v780 = vpack.i.b16 %v779, %v778
        %v783 = vpack.i.b16 %v748, %v738
        %v784 = vshrl.u32 %v738, 16
        %v785 = vshrl.u32 %v748, 16
        %v786 = vpack.i.b16 %v785, %v784
        %v789 = vpack.i.b16 %v764, %v756
        %v790 = vshrl.u32 %v756, 16
        %v791 = vshrl.u32 %v764, 16
        %v792 = vpack.i.b16 %v791, %v790
        %v795 = vpack.i.b16 %v750, %v739
        %v796 = vshrl.u32 %v739, 16
        %v797 = vshrl.u32 %v750, 16
        %v798 = vpack.i.b16 %v797, %v796
        %v801 = vpack.i.b16 %v766, %v758
        %v802 = vshrl.u32 %v758, 16
        %v803 = vshrl.u32 %v766, 16
        %v804 = vpack.i.b16 %v803, %v802
        %v807 = vpack.i.b16 %v752, %v740
        %v808 = vshrl.u32 %v740, 16
        %v809 = vshrl.u32 %v752, 16
        %v810 = vpack.i.b16 %v809, %v808
        %v813 = vpack.i.b16 %v768, %v760
        %v814 = vshrl.u32 %v760, 16
        %v815 = vshrl.u32 %v768, 16
        %v816 = vpack.i.b16 %v815, %v814
        %v819 = vunpack.c.l.s4 1983009808
        %v820 = vunpack.c.0.s8 %v819
        %v821 = vperm.slane %v771, %v820
        %v824 = vunpack.c.l.s4 1983009808
        %v825 = vunpack.c.0.s8 %v824
        %v826 = vperm.slane %v777, %v825
        %v827 = vrot.slane %v826, 4
        %vm828 = vcmask 1047556
        %v829 = vsel %vm828, %v827, %v821
        %v830 = vrot.slane %v821, 4
        %v831 = vsel %vm828, %v826, %v830
        %v833 = vunpack.c.l.s4 1934713408
        %v834 = vunpack.c.0.s8 %v833
        %v835 = vperm.slane %v829, %v834
        %v837 = vunpack.c.l.s4 1934713408
        %v838 = vunpack.c.0.s8 %v837
        %v839 = vperm.slane %v831, %v838
        %v840 = vrot.slane %v835, 4
        %v841 = vsel %vm828, 0, %v840
        %v842 = vrot.slane %v839, 4
        %v843 = vsel %vm828, 0, %v842
        %v846 = vunpack.c.l.s4 1983009808
        %v847 = vunpack.c.0.s8 %v846
        %v848 = vperm.slane %v774, %v847
        %v851 = vunpack.c.l.s4 1983009808
        %v852 = vunpack.c.0.s8 %v851
        %v853 = vperm.slane %v780, %v852
        %v854 = vrot.slane %v853, 4
        %v855 = vsel %vm828, %v854, %v848
        %v856 = vrot.slane %v848, 4
        %v857 = vsel %vm828, %v853, %v856
        %v859 = vunpack.c.l.s4 1934713408
        %v860 = vunpack.c.0.s8 %v859
        %v861 = vperm.slane %v855, %v860
        %v863 = vunpack.c.l.s4 1934713408
        %v864 = vunpack.c.0.s8 %v863
        %v865 = vperm.slane %v857, %v864
        %v866 = vrot.slane %v861, 4
        %v867 = vsel %vm828, 0, %v866
        %v868 = vrot.slane %v865, 4
        %v869 = vsel %vm828, 0, %v868
        %v872 = vunpack.c.l.s4 1983009808
        %v873 = vunpack.c.0.s8 %v872
        %v874 = vperm.slane %v783, %v873
        %v877 = vunpack.c.l.s4 1983009808
        %v878 = vunpack.c.0.s8 %v877
        %v879 = vperm.slane %v789, %v878
        %v880 = vrot.slane %v879, 4
        %v881 = vsel %vm828, %v880, %v874
        %v882 = vrot.slane %v874, 4
        %v883 = vsel %vm828, %v879, %v882
        %v885 = vunpack.c.l.s4 1934713408
        %v886 = vunpack.c.0.s8 %v885
        %v887 = vperm.slane %v881, %v886
        %v889 = vunpack.c.l.s4 1934713408
        %v890 = vunpack.c.0.s8 %v889
        %v891 = vperm.slane %v883, %v890
        %v892 = vrot.slane %v887, 4
        %v893 = vsel %vm828, 0, %v892
        %v894 = vrot.slane %v891, 4
        %v895 = vsel %vm828, 0, %v894
        %v898 = vunpack.c.l.s4 1983009808
        %v899 = vunpack.c.0.s8 %v898
        %v900 = vperm.slane %v786, %v899
        %v903 = vunpack.c.l.s4 1983009808
        %v904 = vunpack.c.0.s8 %v903
        %v905 = vperm.slane %v792, %v904
        %v906 = vrot.slane %v905, 4
        %v907 = vsel %vm828, %v906, %v900
        %v908 = vrot.slane %v900, 4
        %v909 = vsel %vm828, %v905, %v908
        %v911 = vunpack.c.l.s4 1934713408
        %v912 = vunpack.c.0.s8 %v911
        %v913 = vperm.slane %v907, %v912
        %v915 = vunpack.c.l.s4 1934713408
        %v916 = vunpack.c.0.s8 %v915
        %v917 = vperm.slane %v909, %v916
        %v918 = vrot.slane %v913, 4
        %v919 = vsel %vm828, 0, %v918
        %v920 = vrot.slane %v917, 4
        %v921 = vsel %vm828, 0, %v920
        %v924 = vunpack.c.l.s4 1983009808
        %v925 = vunpack.c.0.s8 %v924
        %v926 = vperm.slane %v795, %v925
        %v929 = vunpack.c.l.s4 1983009808
        %v930 = vunpack.c.0.s8 %v929
        %v931 = vperm.slane %v801, %v930
        %v932 = vrot.slane %v931, 4
        %v933 = vsel %vm828, %v932, %v926
        %v934 = vrot.slane %v926, 4
        %v935 = vsel %vm828, %v931, %v934
        %v937 = vunpack.c.l.s4 1934713408
        %v938 = vunpack.c.0.s8 %v937
        %v939 = vperm.slane %v933, %v938
        %v941 = vunpack.c.l.s4 1934713408
        %v942 = vunpack.c.0.s8 %v941
        %v943 = vperm.slane %v935, %v942
        %v944 = vrot.slane %v939, 4
        %v945 = vsel %vm828, 0, %v944
        %v946 = vrot.slane %v943, 4
        %v947 = vsel %vm828, 0, %v946
        %v950 = vunpack.c.l.s4 1983009808
        %v951 = vunpack.c.0.s8 %v950
        %v952 = vperm.slane %v798, %v951
        %v955 = vunpack.c.l.s4 1983009808
        %v956 = vunpack.c.0.s8 %v955
        %v957 = vperm.slane %v804, %v956
        %v958 = vrot.slane %v957, 4
        %v959 = vsel %vm828, %v958, %v952
        %v960 = vrot.slane %v952, 4
        %v961 = vsel %vm828, %v957, %v960
        %v963 = vunpack.c.l.s4 1934713408
        %v964 = vunpack.c.0.s8 %v963
        %v965 = vperm.slane %v959, %v964
        %v967 = vunpack.c.l.s4 1934713408
        %v968 = vunpack.c.0.s8 %v967
        %v969 = vperm.slane %v961, %v968
        %v970 = vrot.slane %v965, 4
        %v971 = vsel %vm828, 0, %v970
        %v972 = vrot.slane %v969, 4
        %v973 = vsel %vm828, 0, %v972
        %v976 = vunpack.c.l.s4 1983009808
        %v977 = vunpack.c.0.s8 %v976
        %v978 = vperm.slane %v807, %v977
        %v981 = vunpack.c.l.s4 1983009808
        %v982 = vunpack.c.0.s8 %v981
        %v983 = vperm.slane %v813, %v982
        %v984 = vrot.slane %v983, 4
        %v985 = vsel %vm828, %v984, %v978
        %v986 = vrot.slane %v978, 4
        %v987 = vsel %vm828, %v983, %v986
        %v989 = vunpack.c.l.s4 1934713408
        %v990 = vunpack.c.0.s8 %v989
        %v991 = vperm.slane %v985, %v990
        %v993 = vunpack.c.l.s4 1934713408
        %v994 = vunpack.c.0.s8 %v993
        %v995 = vperm.slane %v987, %v994
        %v996 = vrot.slane %v991, 4
        %v997 = vsel %vm828, 0, %v996
        %v998 = vrot.slane %v995, 4
        %v999 = vsel %vm828, 0, %v998
        %v1002 = vunpack.c.l.s4 1983009808
        %v1003 = vunpack.c.0.s8 %v1002
        %v1004 = vperm.slane %v810, %v1003
        %v1007 = vunpack.c.l.s4 1983009808
        %v1008 = vunpack.c.0.s8 %v1007
        %v1009 = vperm.slane %v816, %v1008
        %v1010 = vrot.slane %v1009, 4
        %v1011 = vsel %vm828, %v1010, %v1004
        %v1012 = vrot.slane %v1004, 4
        %v1013 = vsel %vm828, %v1009, %v1012
        %v1015 = vunpack.c.l.s4 1934713408
        %v1016 = vunpack.c.0.s8 %v1015
        %v1017 = vperm.slane %v1011, %v1016
        %v1019 = vunpack.c.l.s4 1934713408
        %v1020 = vunpack.c.0.s8 %v1019
        %v1021 = vperm.slane %v1013, %v1020
        %v1022 = vrot.slane %v1017, 4
        %v1023 = vsel %vm828, 0, %v1022
        %v1024 = vrot.slane %v1021, 4
        %v1025 = vsel %vm828, 0, %v1024
        %v1026 = vsel %vm828, %v842, %v835
        %v1028 = vunpack.c.l.s4 1983009808
        %v1029 = vunpack.c.0.s8 %v1028
        %v1030 = vperm.slane %v1026, %v1029
        %v1031 = vrot.slane %v843, 4
        %v1032 = vsel %vm828, %v1031, %v841
        %v1034 = vunpack.c.l.s4 1983009808
        %v1035 = vunpack.c.0.s8 %v1034
        %v1036 = vperm.slane %v1032, %v1035
        %v1037 = vrot.slane %v1036, 4
        %v1038 = vsel %vm828, %v1037, %v1030
        %v1040 = vunpack.c.l.s4 1934713408
        %v1041 = vunpack.c.0.s8 %v1040
        %v1042 = vperm.slane %v1038, %v1041
        %v1043 = vrot.slane %v1042, 4
        %v1044 = vsel %vm828, 0, %v1043
        %v1045 = vsel %vm828, %v868, %v861
        %v1047 = vunpack.c.l.s4 1983009808
        %v1048 = vunpack.c.0.s8 %v1047
        %v1049 = vperm.slane %v1045, %v1048
        %v1050 = vrot.slane %v869, 4
        %v1051 = vsel %vm828, %v1050, %v867
        %v1053 = vunpack.c.l.s4 1983009808
        %v1054 = vunpack.c.0.s8 %v1053
        %v1055 = vperm.slane %v1051, %v1054
        %v1056 = vrot.slane %v1055, 4
        %v1057 = vsel %vm828, %v1056, %v1049
        %v1059 = vunpack.c.l.s4 1934713408
        %v1060 = vunpack.c.0.s8 %v1059
        %v1061 = vperm.slane %v1057, %v1060
        %v1062 = vrot.slane %v1061, 4
        %v1063 = vsel %vm828, 0, %v1062
        %v1064 = vsel %vm828, %v894, %v887
        %v1066 = vunpack.c.l.s4 1983009808
        %v1067 = vunpack.c.0.s8 %v1066
        %v1068 = vperm.slane %v1064, %v1067
        %v1069 = vrot.slane %v895, 4
        %v1070 = vsel %vm828, %v1069, %v893
        %v1072 = vunpack.c.l.s4 1983009808
        %v1073 = vunpack.c.0.s8 %v1072
        %v1074 = vperm.slane %v1070, %v1073
        %v1075 = vrot.slane %v1074, 4
        %v1076 = vsel %vm828, %v1075, %v1068
        %v1078 = vunpack.c.l.s4 1934713408
        %v1079 = vunpack.c.0.s8 %v1078
        %v1080 = vperm.slane %v1076, %v1079
        %v1081 = vrot.slane %v1080, 4
        %v1082 = vsel %vm828, 0, %v1081
        %v1083 = vsel %vm828, %v920, %v913
        %v1085 = vunpack.c.l.s4 1983009808
        %v1086 = vunpack.c.0.s8 %v1085
        %v1087 = vperm.slane %v1083, %v1086
        %v1088 = vrot.slane %v921, 4
        %v1089 = vsel %vm828, %v1088, %v919
        %v1091 = vunpack.c.l.s4 1983009808
        %v1092 = vunpack.c.0.s8 %v1091
        %v1093 = vperm.slane %v1089, %v1092
        %v1094 = vrot.slane %v1093, 4
        %v1095 = vsel %vm828, %v1094, %v1087
        %v1097 = vunpack.c.l.s4 1934713408
        %v1098 = vunpack.c.0.s8 %v1097
        %v1099 = vperm.slane %v1095, %v1098
        %v1100 = vrot.slane %v1099, 4
        %v1101 = vsel %vm828, 0, %v1100
        %v1102 = vsel %vm828, %v946, %v939
        %v1104 = vunpack.c.l.s4 1983009808
        %v1105 = vunpack.c.0.s8 %v1104
        %v1106 = vperm.slane %v1102, %v1105
        %v1107 = vrot.slane %v947, 4
        %v1108 = vsel %vm828, %v1107, %v945
        %v1110 = vunpack.c.l.s4 1983009808
        %v1111 = vunpack.c.0.s8 %v1110
        %v1112 = vperm.slane %v1108, %v1111
        %v1113 = vrot.slane %v1112, 4
        %v1114 = vsel %vm828, %v1113, %v1106
        %v1116 = vunpack.c.l.s4 1934713408
        %v1117 = vunpack.c.0.s8 %v1116
        %v1118 = vperm.slane %v1114, %v1117
        %v1119 = vrot.slane %v1118, 4
        %v1120 = vsel %vm828, 0, %v1119
        %v1121 = vsel %vm828, %v972, %v965
        %v1123 = vunpack.c.l.s4 1983009808
        %v1124 = vunpack.c.0.s8 %v1123
        %v1125 = vperm.slane %v1121, %v1124
        %v1126 = vrot.slane %v973, 4
        %v1127 = vsel %vm828, %v1126, %v971
        %v1129 = vunpack.c.l.s4 1983009808
        %v1130 = vunpack.c.0.s8 %v1129
        %v1131 = vperm.slane %v1127, %v1130
        %v1132 = vrot.slane %v1131, 4
        %v1133 = vsel %vm828, %v1132, %v1125
        %v1135 = vunpack.c.l.s4 1934713408
        %v1136 = vunpack.c.0.s8 %v1135
        %v1137 = vperm.slane %v1133, %v1136
        %v1138 = vrot.slane %v1137, 4
        %v1139 = vsel %vm828, 0, %v1138
        %v1140 = vsel %vm828, %v998, %v991
        %v1142 = vunpack.c.l.s4 1983009808
        %v1143 = vunpack.c.0.s8 %v1142
        %v1144 = vperm.slane %v1140, %v1143
        %v1145 = vrot.slane %v999, 4
        %v1146 = vsel %vm828, %v1145, %v997
        %v1148 = vunpack.c.l.s4 1983009808
        %v1149 = vunpack.c.0.s8 %v1148
        %v1150 = vperm.slane %v1146, %v1149
        %v1151 = vrot.slane %v1150, 4
        %v1152 = vsel %vm828, %v1151, %v1144
        %v1154 = vunpack.c.l.s4 1934713408
        %v1155 = vunpack.c.0.s8 %v1154
        %v1156 = vperm.slane %v1152, %v1155
        %v1157 = vrot.slane %v1156, 4
        %v1158 = vsel %vm828, 0, %v1157
        %v1159 = vsel %vm828, %v1024, %v1017
        %v1161 = vunpack.c.l.s4 1983009808
        %v1162 = vunpack.c.0.s8 %v1161
        %v1163 = vperm.slane %v1159, %v1162
        %v1164 = vrot.slane %v1025, 4
        %v1165 = vsel %vm828, %v1164, %v1023
        %v1167 = vunpack.c.l.s4 1983009808
        %v1168 = vunpack.c.0.s8 %v1167
        %v1169 = vperm.slane %v1165, %v1168
        %v1170 = vrot.slane %v1169, 4
        %v1171 = vsel %vm828, %v1170, %v1163
        %v1173 = vunpack.c.l.s4 1934713408
        %v1174 = vunpack.c.0.s8 %v1173
        %v1175 = vperm.slane %v1171, %v1174
        %v1176 = vrot.slane %v1175, 4
        %v1177 = vsel %vm828, 0, %v1176
        %v1180 = vpack.i.b16 %v1061, %v1042
        %v1181 = vshrl.u32 %v1042, 16
        %v1182 = vshrl.u32 %v1061, 16
        %v1183 = vpack.i.b16 %v1182, %v1181
        %v1186 = vpack.i.b16 %v1063, %v1044
        %v1187 = vshrl.u32 %v1044, 16
        %v1188 = vshrl.u32 %v1063, 16
        %v1189 = vpack.i.b16 %v1188, %v1187
        %v1192 = vpack.i.b16 %v1099, %v1080
        %v1193 = vshrl.u32 %v1080, 16
        %v1194 = vshrl.u32 %v1099, 16
        %v1195 = vpack.i.b16 %v1194, %v1193
        %v1198 = vpack.i.b16 %v1101, %v1082
        %v1199 = vshrl.u32 %v1082, 16
        %v1200 = vshrl.u32 %v1101, 16
        %v1201 = vpack.i.b16 %v1200, %v1199
        %v1204 = vpack.i.b16 %v1137, %v1118
        %v1205 = vshrl.u32 %v1118, 16
        %v1206 = vshrl.u32 %v1137, 16
        %v1207 = vpack.i.b16 %v1206, %v1205
        %v1210 = vpack.i.b16 %v1139, %v1120
        %v1211 = vshrl.u32 %v1120, 16
        %v1212 = vshrl.u32 %v1139, 16
        %v1213 = vpack.i.b16 %v1212, %v1211
        %v1216 = vpack.i.b16 %v1175, %v1156
        %v1217 = vshrl.u32 %v1156, 16
        %v1218 = vshrl.u32 %v1175, 16
        %v1219 = vpack.i.b16 %v1218, %v1217
        %v1222 = vpack.i.b16 %v1177, %v1158
        %v1223 = vshrl.u32 %v1158, 16
        %v1224 = vshrl.u32 %v1177, 16
        %v1225 = vpack.i.b16 %v1224, %v1223
        %1226 = vrot.lane.b32.xlu0 %v737, 64
        %v1227 = vpop.permute.xlu0 %1226
        %1228 = vrot.lane.b32.xlu0 %v738, 64
        %v1229 = vpop.permute.xlu0 %1228
        %1230 = vrot.lane.b32.xlu0 %v739, 64
        %v1231 = vpop.permute.xlu0 %1230
        %1232 = vrot.lane.b32.xlu0 %v740, 64
        %v1233 = vpop.permute.xlu0 %1232
        %1234 = vrot.lane.b32.xlu0 %v746, 64
        %v1235 = vpop.permute.xlu0 %1234
        %1236 = vrot.lane.b32.xlu0 %v748, 64
        %v1237 = vpop.permute.xlu0 %1236
        %1238 = vrot.lane.b32.xlu0 %v750, 64
        %v1239 = vpop.permute.xlu0 %1238
        %1240 = vrot.lane.b32.xlu0 %v752, 64
        %v1241 = vpop.permute.xlu0 %1240
        %1242 = vrot.lane.b32.xlu0 %v754, 64
        %v1243 = vpop.permute.xlu0 %1242
        %1244 = vrot.lane.b32.xlu0 %v756, 64
        %v1245 = vpop.permute.xlu0 %1244
        %1246 = vrot.lane.b32.xlu0 %v758, 64
        %v1247 = vpop.permute.xlu0 %1246
        %1248 = vrot.lane.b32.xlu0 %v760, 64
        %v1249 = vpop.permute.xlu0 %1248
        %1250 = vrot.lane.b32.xlu0 %v762, 64
        %v1251 = vpop.permute.xlu0 %1250
        %1252 = vrot.lane.b32.xlu0 %v764, 64
        %v1253 = vpop.permute.xlu0 %1252
        %1254 = vrot.lane.b32.xlu0 %v766, 64
        %v1255 = vpop.permute.xlu0 %1254
        %1256 = vrot.lane.b32.xlu0 %v768, 64
        %v1257 = vpop.permute.xlu0 %1256
        %v1260 = vpack.i.b16 %v1235, %v1227
        %v1261 = vshrl.u32 %v1227, 16
        %v1262 = vshrl.u32 %v1235, 16
        %v1263 = vpack.i.b16 %v1262, %v1261
        %v1266 = vpack.i.b16 %v1251, %v1243
        %v1267 = vshrl.u32 %v1243, 16
        %v1268 = vshrl.u32 %v1251, 16
        %v1269 = vpack.i.b16 %v1268, %v1267
        %v1272 = vpack.i.b16 %v1237, %v1229
        %v1273 = vshrl.u32 %v1229, 16
        %v1274 = vshrl.u32 %v1237, 16
        %v1275 = vpack.i.b16 %v1274, %v1273
        %v1278 = vpack.i.b16 %v1253, %v1245
        %v1279 = vshrl.u32 %v1245, 16
        %v1280 = vshrl.u32 %v1253, 16
        %v1281 = vpack.i.b16 %v1280, %v1279
        %v1284 = vpack.i.b16 %v1239, %v1231
        %v1285 = vshrl.u32 %v1231, 16
        %v1286 = vshrl.u32 %v1239, 16
        %v1287 = vpack.i.b16 %v1286, %v1285
        %v1290 = vpack.i.b16 %v1255, %v1247
        %v1291 = vshrl.u32 %v1247, 16
        %v1292 = vshrl.u32 %v1255, 16
        %v1293 = vpack.i.b16 %v1292, %v1291
        %v1296 = vpack.i.b16 %v1241, %v1233
        %v1297 = vshrl.u32 %v1233, 16
        %v1298 = vshrl.u32 %v1241, 16
        %v1299 = vpack.i.b16 %v1298, %v1297
        %v1302 = vpack.i.b16 %v1257, %v1249
        %v1303 = vshrl.u32 %v1249, 16
        %v1304 = vshrl.u32 %v1257, 16
        %v1305 = vpack.i.b16 %v1304, %v1303
        %v1308 = vunpack.c.l.s4 1983009808
        %v1309 = vunpack.c.0.s8 %v1308
        %v1310 = vperm.slane %v1260, %v1309
        %v1313 = vunpack.c.l.s4 1983009808
        %v1314 = vunpack.c.0.s8 %v1313
        %v1315 = vperm.slane %v1266, %v1314
        %v1316 = vrot.slane %v1315, 4
        %v1317 = vsel %vm828, %v1316, %v1310
        %v1318 = vrot.slane %v1310, 4
        %v1319 = vsel %vm828, %v1315, %v1318
        %v1321 = vunpack.c.l.s4 1934713408
        %v1322 = vunpack.c.0.s8 %v1321
        %v1323 = vperm.slane %v1317, %v1322
        %v1325 = vunpack.c.l.s4 1934713408
        %v1326 = vunpack.c.0.s8 %v1325
        %v1327 = vperm.slane %v1319, %v1326
        %v1328 = vrot.slane %v1323, 4
        %v1329 = vsel %vm828, 0, %v1328
        %v1330 = vrot.slane %v1327, 4
        %v1331 = vsel %vm828, 0, %v1330
        %v1334 = vunpack.c.l.s4 1983009808
        %v1335 = vunpack.c.0.s8 %v1334
        %v1336 = vperm.slane %v1263, %v1335
        %v1339 = vunpack.c.l.s4 1983009808
        %v1340 = vunpack.c.0.s8 %v1339
        %v1341 = vperm.slane %v1269, %v1340
        %v1342 = vrot.slane %v1341, 4
        %v1343 = vsel %vm828, %v1342, %v1336
        %v1344 = vrot.slane %v1336, 4
        %v1345 = vsel %vm828, %v1341, %v1344
        %v1347 = vunpack.c.l.s4 1934713408
        %v1348 = vunpack.c.0.s8 %v1347
        %v1349 = vperm.slane %v1343, %v1348
        %v1351 = vunpack.c.l.s4 1934713408
        %v1352 = vunpack.c.0.s8 %v1351
        %v1353 = vperm.slane %v1345, %v1352
        %v1354 = vrot.slane %v1349, 4
        %v1355 = vsel %vm828, 0, %v1354
        %v1356 = vrot.slane %v1353, 4
        %v1357 = vsel %vm828, 0, %v1356
        %v1360 = vunpack.c.l.s4 1983009808
        %v1361 = vunpack.c.0.s8 %v1360
        %v1362 = vperm.slane %v1272, %v1361
        %v1365 = vunpack.c.l.s4 1983009808
        %v1366 = vunpack.c.0.s8 %v1365
        %v1367 = vperm.slane %v1278, %v1366
        %v1368 = vrot.slane %v1367, 4
        %v1369 = vsel %vm828, %v1368, %v1362
        %v1370 = vrot.slane %v1362, 4
        %v1371 = vsel %vm828, %v1367, %v1370
        %v1373 = vunpack.c.l.s4 1934713408
        %v1374 = vunpack.c.0.s8 %v1373
        %v1375 = vperm.slane %v1369, %v1374
        %v1377 = vunpack.c.l.s4 1934713408
        %v1378 = vunpack.c.0.s8 %v1377
        %v1379 = vperm.slane %v1371, %v1378
        %v1380 = vrot.slane %v1375, 4
        %v1381 = vsel %vm828, 0, %v1380
        %v1382 = vrot.slane %v1379, 4
        %v1383 = vsel %vm828, 0, %v1382
        %v1386 = vunpack.c.l.s4 1983009808
        %v1387 = vunpack.c.0.s8 %v1386
        %v1388 = vperm.slane %v1275, %v1387
        %v1391 = vunpack.c.l.s4 1983009808
        %v1392 = vunpack.c.0.s8 %v1391
        %v1393 = vperm.slane %v1281, %v1392
        %v1394 = vrot.slane %v1393, 4
        %v1395 = vsel %vm828, %v1394, %v1388
        %v1396 = vrot.slane %v1388, 4
        %v1397 = vsel %vm828, %v1393, %v1396
        %v1399 = vunpack.c.l.s4 1934713408
        %v1400 = vunpack.c.0.s8 %v1399
        %v1401 = vperm.slane %v1395, %v1400
        %v1403 = vunpack.c.l.s4 1934713408
        %v1404 = vunpack.c.0.s8 %v1403
        %v1405 = vperm.slane %v1397, %v1404
        %v1406 = vrot.slane %v1401, 4
        %v1407 = vsel %vm828, 0, %v1406
        %v1408 = vrot.slane %v1405, 4
        %v1409 = vsel %vm828, 0, %v1408
        %v1412 = vunpack.c.l.s4 1983009808
        %v1413 = vunpack.c.0.s8 %v1412
        %v1414 = vperm.slane %v1284, %v1413
        %v1417 = vunpack.c.l.s4 1983009808
        %v1418 = vunpack.c.0.s8 %v1417
        %v1419 = vperm.slane %v1290, %v1418
        %v1420 = vrot.slane %v1419, 4
        %v1421 = vsel %vm828, %v1420, %v1414
        %v1422 = vrot.slane %v1414, 4
        %v1423 = vsel %vm828, %v1419, %v1422
        %v1425 = vunpack.c.l.s4 1934713408
        %v1426 = vunpack.c.0.s8 %v1425
        %v1427 = vperm.slane %v1421, %v1426
        %v1429 = vunpack.c.l.s4 1934713408
        %v1430 = vunpack.c.0.s8 %v1429
        %v1431 = vperm.slane %v1423, %v1430
        %v1432 = vrot.slane %v1427, 4
        %v1433 = vsel %vm828, 0, %v1432
        %v1434 = vrot.slane %v1431, 4
        %v1435 = vsel %vm828, 0, %v1434
        %v1438 = vunpack.c.l.s4 1983009808
        %v1439 = vunpack.c.0.s8 %v1438
        %v1440 = vperm.slane %v1287, %v1439
        %v1443 = vunpack.c.l.s4 1983009808
        %v1444 = vunpack.c.0.s8 %v1443
        %v1445 = vperm.slane %v1293, %v1444
        %v1446 = vrot.slane %v1445, 4
        %v1447 = vsel %vm828, %v1446, %v1440
        %v1448 = vrot.slane %v1440, 4
        %v1449 = vsel %vm828, %v1445, %v1448
        %v1451 = vunpack.c.l.s4 1934713408
        %v1452 = vunpack.c.0.s8 %v1451
        %v1453 = vperm.slane %v1447, %v1452
        %v1455 = vunpack.c.l.s4 1934713408
        %v1456 = vunpack.c.0.s8 %v1455
        %v1457 = vperm.slane %v1449, %v1456
        %v1458 = vrot.slane %v1453, 4
        %v1459 = vsel %vm828, 0, %v1458
        %v1460 = vrot.slane %v1457, 4
        %v1461 = vsel %vm828, 0, %v1460
        %v1464 = vunpack.c.l.s4 1983009808
        %v1465 = vunpack.c.0.s8 %v1464
        %v1466 = vperm.slane %v1296, %v1465
        %v1469 = vunpack.c.l.s4 1983009808
        %v1470 = vunpack.c.0.s8 %v1469
        %v1471 = vperm.slane %v1302, %v1470
        %v1472 = vrot.slane %v1471, 4
        %v1473 = vsel %vm828, %v1472, %v1466
        %v1474 = vrot.slane %v1466, 4
        %v1475 = vsel %vm828, %v1471, %v1474
        %v1477 = vunpack.c.l.s4 1934713408
        %v1478 = vunpack.c.0.s8 %v1477
        %v1479 = vperm.slane %v1473, %v1478
        %v1481 = vunpack.c.l.s4 1934713408
        %v1482 = vunpack.c.0.s8 %v1481
        %v1483 = vperm.slane %v1475, %v1482
        %v1484 = vrot.slane %v1479, 4
        %v1485 = vsel %vm828, 0, %v1484
        %v1486 = vrot.slane %v1483, 4
        %v1487 = vsel %vm828, 0, %v1486
        %v1490 = vunpack.c.l.s4 1983009808
        %v1491 = vunpack.c.0.s8 %v1490
        %v1492 = vperm.slane %v1299, %v1491
        %v1495 = vunpack.c.l.s4 1983009808
        %v1496 = vunpack.c.0.s8 %v1495
        %v1497 = vperm.slane %v1305, %v1496
        %v1498 = vrot.slane %v1497, 4
        %v1499 = vsel %vm828, %v1498, %v1492
        %v1500 = vrot.slane %v1492, 4
        %v1501 = vsel %vm828, %v1497, %v1500
        %v1503 = vunpack.c.l.s4 1934713408
        %v1504 = vunpack.c.0.s8 %v1503
        %v1505 = vperm.slane %v1499, %v1504
        %v1507 = vunpack.c.l.s4 1934713408
        %v1508 = vunpack.c.0.s8 %v1507
        %v1509 = vperm.slane %v1501, %v1508
        %v1510 = vrot.slane %v1505, 4
        %v1511 = vsel %vm828, 0, %v1510
        %v1512 = vrot.slane %v1509, 4
        %v1513 = vsel %vm828, 0, %v1512
        %v1514 = vsel %vm828, %v1330, %v1323
        %v1516 = vunpack.c.l.s4 1983009808
        %v1517 = vunpack.c.0.s8 %v1516
        %v1518 = vperm.slane %v1514, %v1517
        %v1519 = vrot.slane %v1331, 4
        %v1520 = vsel %vm828, %v1519, %v1329
        %v1522 = vunpack.c.l.s4 1983009808
        %v1523 = vunpack.c.0.s8 %v1522
        %v1524 = vperm.slane %v1520, %v1523
        %v1525 = vrot.slane %v1524, 4
        %v1526 = vsel %vm828, %v1525, %v1518
        %v1528 = vunpack.c.l.s4 1934713408
        %v1529 = vunpack.c.0.s8 %v1528
        %v1530 = vperm.slane %v1526, %v1529
        %v1531 = vrot.slane %v1530, 4
        %v1532 = vsel %vm828, 0, %v1531
        %v1533 = vsel %vm828, %v1356, %v1349
        %v1535 = vunpack.c.l.s4 1983009808
        %v1536 = vunpack.c.0.s8 %v1535
        %v1537 = vperm.slane %v1533, %v1536
        %v1538 = vrot.slane %v1357, 4
        %v1539 = vsel %vm828, %v1538, %v1355
        %v1541 = vunpack.c.l.s4 1983009808
        %v1542 = vunpack.c.0.s8 %v1541
        %v1543 = vperm.slane %v1539, %v1542
        %v1544 = vrot.slane %v1543, 4
        %v1545 = vsel %vm828, %v1544, %v1537
        %v1547 = vunpack.c.l.s4 1934713408
        %v1548 = vunpack.c.0.s8 %v1547
        %v1549 = vperm.slane %v1545, %v1548
        %v1550 = vrot.slane %v1549, 4
        %v1551 = vsel %vm828, 0, %v1550
        %v1552 = vsel %vm828, %v1382, %v1375
        %v1554 = vunpack.c.l.s4 1983009808
        %v1555 = vunpack.c.0.s8 %v1554
        %v1556 = vperm.slane %v1552, %v1555
        %v1557 = vrot.slane %v1383, 4
        %v1558 = vsel %vm828, %v1557, %v1381
        %v1560 = vunpack.c.l.s4 1983009808
        %v1561 = vunpack.c.0.s8 %v1560
        %v1562 = vperm.slane %v1558, %v1561
        %v1563 = vrot.slane %v1562, 4
        %v1564 = vsel %vm828, %v1563, %v1556
        %v1566 = vunpack.c.l.s4 1934713408
        %v1567 = vunpack.c.0.s8 %v1566
        %v1568 = vperm.slane %v1564, %v1567
        %v1569 = vrot.slane %v1568, 4
        %v1570 = vsel %vm828, 0, %v1569
        %v1571 = vsel %vm828, %v1408, %v1401
        %v1573 = vunpack.c.l.s4 1983009808
        %v1574 = vunpack.c.0.s8 %v1573
        %v1575 = vperm.slane %v1571, %v1574
        %v1576 = vrot.slane %v1409, 4
        %v1577 = vsel %vm828, %v1576, %v1407
        %v1579 = vunpack.c.l.s4 1983009808
        %v1580 = vunpack.c.0.s8 %v1579
        %v1581 = vperm.slane %v1577, %v1580
        %v1582 = vrot.slane %v1581, 4
        %v1583 = vsel %vm828, %v1582, %v1575
        %v1585 = vunpack.c.l.s4 1934713408
        %v1586 = vunpack.c.0.s8 %v1585
        %v1587 = vperm.slane %v1583, %v1586
        %v1588 = vrot.slane %v1587, 4
        %v1589 = vsel %vm828, 0, %v1588
        %v1590 = vsel %vm828, %v1434, %v1427
        %v1592 = vunpack.c.l.s4 1983009808
        %v1593 = vunpack.c.0.s8 %v1592
        %v1594 = vperm.slane %v1590, %v1593
        %v1595 = vrot.slane %v1435, 4
        %v1596 = vsel %vm828, %v1595, %v1433
        %v1598 = vunpack.c.l.s4 1983009808
        %v1599 = vunpack.c.0.s8 %v1598
        %v1600 = vperm.slane %v1596, %v1599
        %v1601 = vrot.slane %v1600, 4
        %v1602 = vsel %vm828, %v1601, %v1594
        %v1604 = vunpack.c.l.s4 1934713408
        %v1605 = vunpack.c.0.s8 %v1604
        %v1606 = vperm.slane %v1602, %v1605
        %v1607 = vrot.slane %v1606, 4
        %v1608 = vsel %vm828, 0, %v1607
        %v1609 = vsel %vm828, %v1460, %v1453
        %v1611 = vunpack.c.l.s4 1983009808
        %v1612 = vunpack.c.0.s8 %v1611
        %v1613 = vperm.slane %v1609, %v1612
        %v1614 = vrot.slane %v1461, 4
        %v1615 = vsel %vm828, %v1614, %v1459
        %v1617 = vunpack.c.l.s4 1983009808
        %v1618 = vunpack.c.0.s8 %v1617
        %v1619 = vperm.slane %v1615, %v1618
        %v1620 = vrot.slane %v1619, 4
        %v1621 = vsel %vm828, %v1620, %v1613
        %v1623 = vunpack.c.l.s4 1934713408
        %v1624 = vunpack.c.0.s8 %v1623
        %v1625 = vperm.slane %v1621, %v1624
        %v1626 = vrot.slane %v1625, 4
        %v1627 = vsel %vm828, 0, %v1626
        %v1628 = vsel %vm828, %v1486, %v1479
        %v1630 = vunpack.c.l.s4 1983009808
        %v1631 = vunpack.c.0.s8 %v1630
        %v1632 = vperm.slane %v1628, %v1631
        %v1633 = vrot.slane %v1487, 4
        %v1634 = vsel %vm828, %v1633, %v1485
        %v1636 = vunpack.c.l.s4 1983009808
        %v1637 = vunpack.c.0.s8 %v1636
        %v1638 = vperm.slane %v1634, %v1637
        %v1639 = vrot.slane %v1638, 4
        %v1640 = vsel %vm828, %v1639, %v1632
        %v1642 = vunpack.c.l.s4 1934713408
        %v1643 = vunpack.c.0.s8 %v1642
        %v1644 = vperm.slane %v1640, %v1643
        %v1645 = vrot.slane %v1644, 4
        %v1646 = vsel %vm828, 0, %v1645
        %v1647 = vsel %vm828, %v1512, %v1505
        %v1649 = vunpack.c.l.s4 1983009808
        %v1650 = vunpack.c.0.s8 %v1649
        %v1651 = vperm.slane %v1647, %v1650
        %v1652 = vrot.slane %v1513, 4
        %v1653 = vsel %vm828, %v1652, %v1511
        %v1655 = vunpack.c.l.s4 1983009808
        %v1656 = vunpack.c.0.s8 %v1655
        %v1657 = vperm.slane %v1653, %v1656
        %v1658 = vrot.slane %v1657, 4
        %v1659 = vsel %vm828, %v1658, %v1651
        %v1661 = vunpack.c.l.s4 1934713408
        %v1662 = vunpack.c.0.s8 %v1661
        %v1663 = vperm.slane %v1659, %v1662
        %v1664 = vrot.slane %v1663, 4
        %v1665 = vsel %vm828, 0, %v1664
        %v1668 = vpack.i.b16 %v1549, %v1530
        %v1669 = vshrl.u32 %v1530, 16
        %v1670 = vshrl.u32 %v1549, 16
        %v1671 = vpack.i.b16 %v1670, %v1669
        %v1674 = vpack.i.b16 %v1551, %v1532
        %v1675 = vshrl.u32 %v1532, 16
        %v1676 = vshrl.u32 %v1551, 16
        %v1677 = vpack.i.b16 %v1676, %v1675
        %v1680 = vpack.i.b16 %v1587, %v1568
        %v1681 = vshrl.u32 %v1568, 16
        %v1682 = vshrl.u32 %v1587, 16
        %v1683 = vpack.i.b16 %v1682, %v1681
        %v1686 = vpack.i.b16 %v1589, %v1570
        %v1687 = vshrl.u32 %v1570, 16
        %v1688 = vshrl.u32 %v1589, 16
        %v1689 = vpack.i.b16 %v1688, %v1687
        %v1692 = vpack.i.b16 %v1625, %v1606
        %v1693 = vshrl.u32 %v1606, 16
        %v1694 = vshrl.u32 %v1625, 16
        %v1695 = vpack.i.b16 %v1694, %v1693
        %v1698 = vpack.i.b16 %v1627, %v1608
        %v1699 = vshrl.u32 %v1608, 16
        %v1700 = vshrl.u32 %v1627, 16
        %v1701 = vpack.i.b16 %v1700, %v1699
        %v1704 = vpack.i.b16 %v1663, %v1644
        %v1705 = vshrl.u32 %v1644, 16
        %v1706 = vshrl.u32 %v1663, 16
        %v1707 = vpack.i.b16 %v1706, %v1705
        %v1710 = vpack.i.b16 %v1665, %v1646
        %v1711 = vshrl.u32 %v1646, 16
        %v1712 = vshrl.u32 %v1665, 16
        %v1713 = vpack.i.b16 %v1712, %v1711
        %v1714 = vrot.slane %v737, 4
        %v1715 = vrot.slane %v738, 4
        %v1716 = vrot.slane %v739, 4
        %v1717 = vrot.slane %v740, 4
        %v1718 = vrot.slane %v746, 4
        %v1719 = vrot.slane %v748, 4
        %v1720 = vrot.slane %v750, 4
        %v1721 = vrot.slane %v752, 4
        %v1722 = vrot.slane %v754, 4
        %v1723 = vrot.slane %v756, 4
        %v1724 = vrot.slane %v758, 4
        %v1725 = vrot.slane %v760, 4
        %v1726 = vrot.slane %v762, 4
        %v1727 = vrot.slane %v764, 4
        %v1728 = vrot.slane %v766, 4
        %v1729 = vrot.slane %v768, 4
        %v1732 = vpack.i.b16 %v1718, %v1714
        %v1733 = vshrl.u32 %v1714, 16
        %v1734 = vshrl.u32 %v1718, 16
        %v1735 = vpack.i.b16 %v1734, %v1733
        %v1738 = vpack.i.b16 %v1726, %v1722
        %v1739 = vshrl.u32 %v1722, 16
        %v1740 = vshrl.u32 %v1726, 16
        %v1741 = vpack.i.b16 %v1740, %v1739
        %v1744 = vpack.i.b16 %v1719, %v1715
        %v1745 = vshrl.u32 %v1715, 16
        %v1746 = vshrl.u32 %v1719, 16
        %v1747 = vpack.i.b16 %v1746, %v1745
        %v1750 = vpack.i.b16 %v1727, %v1723
        %v1751 = vshrl.u32 %v1723, 16
        %v1752 = vshrl.u32 %v1727, 16
        %v1753 = vpack.i.b16 %v1752, %v1751
        %v1756 = vpack.i.b16 %v1720, %v1716
        %v1757 = vshrl.u32 %v1716, 16
        %v1758 = vshrl.u32 %v1720, 16
        %v1759 = vpack.i.b16 %v1758, %v1757
        %v1762 = vpack.i.b16 %v1728, %v1724
        %v1763 = vshrl.u32 %v1724, 16
        %v1764 = vshrl.u32 %v1728, 16
        %v1765 = vpack.i.b16 %v1764, %v1763
        %v1768 = vpack.i.b16 %v1721, %v1717
        %v1769 = vshrl.u32 %v1717, 16
        %v1770 = vshrl.u32 %v1721, 16
        %v1771 = vpack.i.b16 %v1770, %v1769
        %v1774 = vpack.i.b16 %v1729, %v1725
        %v1775 = vshrl.u32 %v1725, 16
        %v1776 = vshrl.u32 %v1729, 16
        %v1777 = vpack.i.b16 %v1776, %v1775
        %v1780 = vunpack.c.l.s4 1983009808
        %v1781 = vunpack.c.0.s8 %v1780
        %v1782 = vperm.slane %v1732, %v1781
        %v1785 = vunpack.c.l.s4 1983009808
        %v1786 = vunpack.c.0.s8 %v1785
        %v1787 = vperm.slane %v1738, %v1786
        %v1788 = vrot.slane %v1787, 4
        %v1789 = vsel %vm828, %v1788, %v1782
        %v1790 = vrot.slane %v1782, 4
        %v1791 = vsel %vm828, %v1787, %v1790
        %v1793 = vunpack.c.l.s4 1934713408
        %v1794 = vunpack.c.0.s8 %v1793
        %v1795 = vperm.slane %v1789, %v1794
        %v1797 = vunpack.c.l.s4 1934713408
        %v1798 = vunpack.c.0.s8 %v1797
        %v1799 = vperm.slane %v1791, %v1798
        %v1800 = vrot.slane %v1795, 4
        %v1801 = vsel %vm828, 0, %v1800
        %v1802 = vrot.slane %v1799, 4
        %v1803 = vsel %vm828, 0, %v1802
        %v1806 = vunpack.c.l.s4 1983009808
        %v1807 = vunpack.c.0.s8 %v1806
        %v1808 = vperm.slane %v1735, %v1807
        %v1811 = vunpack.c.l.s4 1983009808
        %v1812 = vunpack.c.0.s8 %v1811
        %v1813 = vperm.slane %v1741, %v1812
        %v1814 = vrot.slane %v1813, 4
        %v1815 = vsel %vm828, %v1814, %v1808
        %v1816 = vrot.slane %v1808, 4
        %v1817 = vsel %vm828, %v1813, %v1816
        %v1819 = vunpack.c.l.s4 1934713408
        %v1820 = vunpack.c.0.s8 %v1819
        %v1821 = vperm.slane %v1815, %v1820
        %v1823 = vunpack.c.l.s4 1934713408
        %v1824 = vunpack.c.0.s8 %v1823
        %v1825 = vperm.slane %v1817, %v1824
        %v1826 = vrot.slane %v1821, 4
        %v1827 = vsel %vm828, 0, %v1826
        %v1828 = vrot.slane %v1825, 4
        %v1829 = vsel %vm828, 0, %v1828
        %v1832 = vunpack.c.l.s4 1983009808
        %v1833 = vunpack.c.0.s8 %v1832
        %v1834 = vperm.slane %v1744, %v1833
        %v1837 = vunpack.c.l.s4 1983009808
        %v1838 = vunpack.c.0.s8 %v1837
        %v1839 = vperm.slane %v1750, %v1838
        %v1840 = vrot.slane %v1839, 4
        %v1841 = vsel %vm828, %v1840, %v1834
        %v1842 = vrot.slane %v1834, 4
        %v1843 = vsel %vm828, %v1839, %v1842
        %v1845 = vunpack.c.l.s4 1934713408
        %v1846 = vunpack.c.0.s8 %v1845
        %v1847 = vperm.slane %v1841, %v1846
        %v1849 = vunpack.c.l.s4 1934713408
        %v1850 = vunpack.c.0.s8 %v1849
        %v1851 = vperm.slane %v1843, %v1850
        %v1852 = vrot.slane %v1847, 4
        %v1853 = vsel %vm828, 0, %v1852
        %v1854 = vrot.slane %v1851, 4
        %v1855 = vsel %vm828, 0, %v1854
        %v1858 = vunpack.c.l.s4 1983009808
        %v1859 = vunpack.c.0.s8 %v1858
        %v1860 = vperm.slane %v1747, %v1859
        %v1863 = vunpack.c.l.s4 1983009808
        %v1864 = vunpack.c.0.s8 %v1863
        %v1865 = vperm.slane %v1753, %v1864
        %v1866 = vrot.slane %v1865, 4
        %v1867 = vsel %vm828, %v1866, %v1860
        %v1868 = vrot.slane %v1860, 4
        %v1869 = vsel %vm828, %v1865, %v1868
        %v1871 = vunpack.c.l.s4 1934713408
        %v1872 = vunpack.c.0.s8 %v1871
        %v1873 = vperm.slane %v1867, %v1872
        %v1875 = vunpack.c.l.s4 1934713408
        %v1876 = vunpack.c.0.s8 %v1875
        %v1877 = vperm.slane %v1869, %v1876
        %v1878 = vrot.slane %v1873, 4
        %v1879 = vsel %vm828, 0, %v1878
        %v1880 = vrot.slane %v1877, 4
        %v1881 = vsel %vm828, 0, %v1880
        %v1884 = vunpack.c.l.s4 1983009808
        %v1885 = vunpack.c.0.s8 %v1884
        %v1886 = vperm.slane %v1756, %v1885
        %v1889 = vunpack.c.l.s4 1983009808
        %v1890 = vunpack.c.0.s8 %v1889
        %v1891 = vperm.slane %v1762, %v1890
        %v1892 = vrot.slane %v1891, 4
        %v1893 = vsel %vm828, %v1892, %v1886
        %v1894 = vrot.slane %v1886, 4
        %v1895 = vsel %vm828, %v1891, %v1894
        %v1897 = vunpack.c.l.s4 1934713408
        %v1898 = vunpack.c.0.s8 %v1897
        %v1899 = vperm.slane %v1893, %v1898
        %v1901 = vunpack.c.l.s4 1934713408
        %v1902 = vunpack.c.0.s8 %v1901
        %v1903 = vperm.slane %v1895, %v1902
        %v1904 = vrot.slane %v1899, 4
        %v1905 = vsel %vm828, 0, %v1904
        %v1906 = vrot.slane %v1903, 4
        %v1907 = vsel %vm828, 0, %v1906
        %v1910 = vunpack.c.l.s4 1983009808
        %v1911 = vunpack.c.0.s8 %v1910
        %v1912 = vperm.slane %v1759, %v1911
        %v1915 = vunpack.c.l.s4 1983009808
        %v1916 = vunpack.c.0.s8 %v1915
        %v1917 = vperm.slane %v1765, %v1916
        %v1918 = vrot.slane %v1917, 4
        %v1919 = vsel %vm828, %v1918, %v1912
        %v1920 = vrot.slane %v1912, 4
        %v1921 = vsel %vm828, %v1917, %v1920
        %v1923 = vunpack.c.l.s4 1934713408
        %v1924 = vunpack.c.0.s8 %v1923
        %v1925 = vperm.slane %v1919, %v1924
        %v1927 = vunpack.c.l.s4 1934713408
        %v1928 = vunpack.c.0.s8 %v1927
        %v1929 = vperm.slane %v1921, %v1928
        %v1930 = vrot.slane %v1925, 4
        %v1931 = vsel %vm828, 0, %v1930
        %v1932 = vrot.slane %v1929, 4
        %v1933 = vsel %vm828, 0, %v1932
        %v1936 = vunpack.c.l.s4 1983009808
        %v1937 = vunpack.c.0.s8 %v1936
        %v1938 = vperm.slane %v1768, %v1937
        %v1941 = vunpack.c.l.s4 1983009808
        %v1942 = vunpack.c.0.s8 %v1941
        %v1943 = vperm.slane %v1774, %v1942
        %v1944 = vrot.slane %v1943, 4
        %v1945 = vsel %vm828, %v1944, %v1938
        %v1946 = vrot.slane %v1938, 4
        %v1947 = vsel %vm828, %v1943, %v1946
        %v1949 = vunpack.c.l.s4 1934713408
        %v1950 = vunpack.c.0.s8 %v1949
        %v1951 = vperm.slane %v1945, %v1950
        %v1953 = vunpack.c.l.s4 1934713408
        %v1954 = vunpack.c.0.s8 %v1953
        %v1955 = vperm.slane %v1947, %v1954
        %v1956 = vrot.slane %v1951, 4
        %v1957 = vsel %vm828, 0, %v1956
        %v1958 = vrot.slane %v1955, 4
        %v1959 = vsel %vm828, 0, %v1958
        %v1962 = vunpack.c.l.s4 1983009808
        %v1963 = vunpack.c.0.s8 %v1962
        %v1964 = vperm.slane %v1771, %v1963
        %v1967 = vunpack.c.l.s4 1983009808
        %v1968 = vunpack.c.0.s8 %v1967
        %v1969 = vperm.slane %v1777, %v1968
        %v1970 = vrot.slane %v1969, 4
        %v1971 = vsel %vm828, %v1970, %v1964
        %v1972 = vrot.slane %v1964, 4
        %v1973 = vsel %vm828, %v1969, %v1972
        %v1975 = vunpack.c.l.s4 1934713408
        %v1976 = vunpack.c.0.s8 %v1975
        %v1977 = vperm.slane %v1971, %v1976
        %v1979 = vunpack.c.l.s4 1934713408
        %v1980 = vunpack.c.0.s8 %v1979
        %v1981 = vperm.slane %v1973, %v1980
        %v1982 = vrot.slane %v1977, 4
        %v1983 = vsel %vm828, 0, %v1982
        %v1984 = vrot.slane %v1981, 4
        %v1985 = vsel %vm828, 0, %v1984
        %v1986 = vsel %vm828, %v1802, %v1795
        %v1988 = vunpack.c.l.s4 1983009808
        %v1989 = vunpack.c.0.s8 %v1988
        %v1990 = vperm.slane %v1986, %v1989
        %v1991 = vrot.slane %v1803, 4
        %v1992 = vsel %vm828, %v1991, %v1801
        %v1994 = vunpack.c.l.s4 1983009808
        %v1995 = vunpack.c.0.s8 %v1994
        %v1996 = vperm.slane %v1992, %v1995
        %v1997 = vrot.slane %v1996, 4
        %v1998 = vsel %vm828, %v1997, %v1990
        %v2000 = vunpack.c.l.s4 1934713408
        %v2001 = vunpack.c.0.s8 %v2000
        %v2002 = vperm.slane %v1998, %v2001
        %v2003 = vrot.slane %v2002, 4
        %v2004 = vsel %vm828, 0, %v2003
        %v2005 = vsel %vm828, %v1828, %v1821
        %v2007 = vunpack.c.l.s4 1983009808
        %v2008 = vunpack.c.0.s8 %v2007
        %v2009 = vperm.slane %v2005, %v2008
        %v2010 = vrot.slane %v1829, 4
        %v2011 = vsel %vm828, %v2010, %v1827
        %v2013 = vunpack.c.l.s4 1983009808
        %v2014 = vunpack.c.0.s8 %v2013
        %v2015 = vperm.slane %v2011, %v2014
        %v2016 = vrot.slane %v2015, 4
        %v2017 = vsel %vm828, %v2016, %v2009
        %v2019 = vunpack.c.l.s4 1934713408
        %v2020 = vunpack.c.0.s8 %v2019
        %v2021 = vperm.slane %v2017, %v2020
        %v2022 = vrot.slane %v2021, 4
        %v2023 = vsel %vm828, 0, %v2022
        %v2024 = vsel %vm828, %v1854, %v1847
        %v2026 = vunpack.c.l.s4 1983009808
        %v2027 = vunpack.c.0.s8 %v2026
        %v2028 = vperm.slane %v2024, %v2027
        %v2029 = vrot.slane %v1855, 4
        %v2030 = vsel %vm828, %v2029, %v1853
        %v2032 = vunpack.c.l.s4 1983009808
        %v2033 = vunpack.c.0.s8 %v2032
        %v2034 = vperm.slane %v2030, %v2033
        %v2035 = vrot.slane %v2034, 4
        %v2036 = vsel %vm828, %v2035, %v2028
        %v2038 = vunpack.c.l.s4 1934713408
        %v2039 = vunpack.c.0.s8 %v2038
        %v2040 = vperm.slane %v2036, %v2039
        %v2041 = vrot.slane %v2040, 4
        %v2042 = vsel %vm828, 0, %v2041
        %v2043 = vsel %vm828, %v1880, %v1873
        %v2045 = vunpack.c.l.s4 1983009808
        %v2046 = vunpack.c.0.s8 %v2045
        %v2047 = vperm.slane %v2043, %v2046
        %v2048 = vrot.slane %v1881, 4
        %v2049 = vsel %vm828, %v2048, %v1879
        %v2051 = vunpack.c.l.s4 1983009808
        %v2052 = vunpack.c.0.s8 %v2051
        %v2053 = vperm.slane %v2049, %v2052
        %v2054 = vrot.slane %v2053, 4
        %v2055 = vsel %vm828, %v2054, %v2047
        %v2057 = vunpack.c.l.s4 1934713408
        %v2058 = vunpack.c.0.s8 %v2057
        %v2059 = vperm.slane %v2055, %v2058
        %v2060 = vrot.slane %v2059, 4
        %v2061 = vsel %vm828, 0, %v2060
        %v2062 = vsel %vm828, %v1906, %v1899
        %v2064 = vunpack.c.l.s4 1983009808
        %v2065 = vunpack.c.0.s8 %v2064
        %v2066 = vperm.slane %v2062, %v2065
        %v2067 = vrot.slane %v1907, 4
        %v2068 = vsel %vm828, %v2067, %v1905
        %v2070 = vunpack.c.l.s4 1983009808
        %v2071 = vunpack.c.0.s8 %v2070
        %v2072 = vperm.slane %v2068, %v2071
        %v2073 = vrot.slane %v2072, 4
        %v2074 = vsel %vm828, %v2073, %v2066
        %v2076 = vunpack.c.l.s4 1934713408
        %v2077 = vunpack.c.0.s8 %v2076
        %v2078 = vperm.slane %v2074, %v2077
        %v2079 = vrot.slane %v2078, 4
        %v2080 = vsel %vm828, 0, %v2079
        %v2081 = vsel %vm828, %v1932, %v1925
        %v2083 = vunpack.c.l.s4 1983009808
        %v2084 = vunpack.c.0.s8 %v2083
        %v2085 = vperm.slane %v2081, %v2084
        %v2086 = vrot.slane %v1933, 4
        %v2087 = vsel %vm828, %v2086, %v1931
        %v2089 = vunpack.c.l.s4 1983009808
        %v2090 = vunpack.c.0.s8 %v2089
        %v2091 = vperm.slane %v2087, %v2090
        %v2092 = vrot.slane %v2091, 4
        %v2093 = vsel %vm828, %v2092, %v2085
        %v2095 = vunpack.c.l.s4 1934713408
        %v2096 = vunpack.c.0.s8 %v2095
        %v2097 = vperm.slane %v2093, %v2096
        %v2098 = vrot.slane %v2097, 4
        %v2099 = vsel %vm828, 0, %v2098
        %v2100 = vsel %vm828, %v1958, %v1951
        %v2102 = vunpack.c.l.s4 1983009808
        %v2103 = vunpack.c.0.s8 %v2102
        %v2104 = vperm.slane %v2100, %v2103
        %v2105 = vrot.slane %v1959, 4
        %v2106 = vsel %vm828, %v2105, %v1957
        %v2108 = vunpack.c.l.s4 1983009808
        %v2109 = vunpack.c.0.s8 %v2108
        %v2110 = vperm.slane %v2106, %v2109
        %v2111 = vrot.slane %v2110, 4
        %v2112 = vsel %vm828, %v2111, %v2104
        %v2114 = vunpack.c.l.s4 1934713408
        %v2115 = vunpack.c.0.s8 %v2114
        %v2116 = vperm.slane %v2112, %v2115
        %v2117 = vrot.slane %v2116, 4
        %v2118 = vsel %vm828, 0, %v2117
        %v2119 = vsel %vm828, %v1984, %v1977
        %v2121 = vunpack.c.l.s4 1983009808
        %v2122 = vunpack.c.0.s8 %v2121
        %v2123 = vperm.slane %v2119, %v2122
        %v2124 = vrot.slane %v1985, 4
        %v2125 = vsel %vm828, %v2124, %v1983
        %v2127 = vunpack.c.l.s4 1983009808
        %v2128 = vunpack.c.0.s8 %v2127
        %v2129 = vperm.slane %v2125, %v2128
        %v2130 = vrot.slane %v2129, 4
        %v2131 = vsel %vm828, %v2130, %v2123
        %v2133 = vunpack.c.l.s4 1934713408
        %v2134 = vunpack.c.0.s8 %v2133
        %v2135 = vperm.slane %v2131, %v2134
        %v2136 = vrot.slane %v2135, 4
        %v2137 = vsel %vm828, 0, %v2136
        %v2140 = vpack.i.b16 %v2021, %v2002
        %v2141 = vshrl.u32 %v2002, 16
        %v2142 = vshrl.u32 %v2021, 16
        %v2143 = vpack.i.b16 %v2142, %v2141
        %v2146 = vpack.i.b16 %v2023, %v2004
        %v2147 = vshrl.u32 %v2004, 16
        %v2148 = vshrl.u32 %v2023, 16
        %v2149 = vpack.i.b16 %v2148, %v2147
        %v2152 = vpack.i.b16 %v2059, %v2040
        %v2153 = vshrl.u32 %v2040, 16
        %v2154 = vshrl.u32 %v2059, 16
        %v2155 = vpack.i.b16 %v2154, %v2153
        %v2158 = vpack.i.b16 %v2061, %v2042
        %v2159 = vshrl.u32 %v2042, 16
        %v2160 = vshrl.u32 %v2061, 16
        %v2161 = vpack.i.b16 %v2160, %v2159
        %v2164 = vpack.i.b16 %v2097, %v2078
        %v2165 = vshrl.u32 %v2078, 16
        %v2166 = vshrl.u32 %v2097, 16
        %v2167 = vpack.i.b16 %v2166, %v2165
        %v2170 = vpack.i.b16 %v2099, %v2080
        %v2171 = vshrl.u32 %v2080, 16
        %v2172 = vshrl.u32 %v2099, 16
        %v2173 = vpack.i.b16 %v2172, %v2171
        %v2176 = vpack.i.b16 %v2135, %v2116
        %v2177 = vshrl.u32 %v2116, 16
        %v2178 = vshrl.u32 %v2135, 16
        %v2179 = vpack.i.b16 %v2178, %v2177
        %v2182 = vpack.i.b16 %v2137, %v2118
        %v2183 = vshrl.u32 %v2118, 16
        %v2184 = vshrl.u32 %v2137, 16
        %v2185 = vpack.i.b16 %v2184, %v2183
        %v2186 = vunpack.c.l.b16 %v1180
        %v2187 = vunpack.c.l.b16 %v1192
        %v2188 = vpack.c.b16 %v2187, %v2186
        %v2189 = vunpack.c.l.b16 %v1668
        %v2190 = vunpack.c.l.b16 %v1680
        %v2191 = vpack.c.b16 %v2190, %v2189
        %vm2192 = vcmask 130048
        %v2194 = vsel %vm2192, %v2188, 0
        %v2197 = vsel %vm2192, %v2191, 0
        %2199 = vmatpush.bf16.xpose.msra.mxu0 0
        %2200 = vmatpush.bf16.xpose.msra.mxu0 0
        %2201 = vmatpush.bf16.xpose.msra.mxu0 0
        %2202 = vmatpush.bf16.xpose.msra.mxu0 0
        %2203 = vmatpush.bf16.xpose.msra.mxu0 0
        %2204 = vmatpush.bf16.xpose.msra.mxu0 0
        %2205 = vmatpush.bf16.xpose.msra.mxu0 0
        %2206 = vmatpush.bf16.xpose.msra.mxu0 %v2197
        %2207 = vmatmul.bf16.gmra.mxu0 %v2194
        %v2208 = vpop.f32.mrf.mxu0
        %v2209 = vadd.f32 0.0, %v2208
        %v2210 = vpop.f32.mrf.mxu0
        %v2211 = vadd.f32 0.0, %v2210
        %2212 = vdwg.mxu0
        %v2213 = vunpack.c.l.b16 %v1183
        %v2214 = vunpack.c.l.b16 %v1195
        %v2215 = vpack.c.b16 %v2214, %v2213
        %v2216 = vunpack.c.l.b16 %v1671
        %v2217 = vunpack.c.l.b16 %v1683
        %v2218 = vpack.c.b16 %v2217, %v2216
        %v2220 = vsel %vm2192, %v2215, 0
        %v2223 = vsel %vm2192, %v2218, 0
        %2225 = vmatpush.bf16.xpose.msra.mxu0 0
        %2226 = vmatpush.bf16.xpose.msra.mxu0 0
        %2227 = vmatpush.bf16.xpose.msra.mxu0 0
        %2228 = vmatpush.bf16.xpose.msra.mxu0 0
        %2229 = vmatpush.bf16.xpose.msra.mxu0 0
        %2230 = vmatpush.bf16.xpose.msra.mxu0 0
        %2231 = vmatpush.bf16.xpose.msra.mxu0 0
        %2232 = vmatpush.bf16.xpose.msra.mxu0 %v2223
        %2233 = vmatmul.bf16.gmra.mxu0 %v2220
        %v2234 = vpop.f32.mrf.mxu0
        %v2235 = vadd.f32 0.0, %v2234
        %v2236 = vpop.f32.mrf.mxu0
        %v2237 = vadd.f32 0.0, %v2236
        %2238 = vdwg.mxu0
        %v2239 = vunpack.c.l.b16 %v1186
        %v2240 = vunpack.c.l.b16 %v1198
        %v2241 = vpack.c.b16 %v2240, %v2239
        %v2242 = vunpack.c.l.b16 %v1674
        %v2243 = vunpack.c.l.b16 %v1686
        %v2244 = vpack.c.b16 %v2243, %v2242
        %v2246 = vsel %vm2192, %v2241, 0
        %v2249 = vsel %vm2192, %v2244, 0
        %2251 = vmatpush.bf16.xpose.msra.mxu0 0
        %2252 = vmatpush.bf16.xpose.msra.mxu0 0
        %2253 = vmatpush.bf16.xpose.msra.mxu0 0
        %2254 = vmatpush.bf16.xpose.msra.mxu0 0
        %2255 = vmatpush.bf16.xpose.msra.mxu0 0
        %2256 = vmatpush.bf16.xpose.msra.mxu0 0
        %2257 = vmatpush.bf16.xpose.msra.mxu0 0
        %2258 = vmatpush.bf16.xpose.msra.mxu0 %v2249
        %2259 = vmatmul.bf16.gmra.mxu0 %v2246
        %v2260 = vpop.f32.mrf.mxu0
        %v2261 = vadd.f32 0.0, %v2260
        %v2262 = vpop.f32.mrf.mxu0
        %v2263 = vadd.f32 0.0, %v2262
        %2264 = vdwg.mxu0
        %v2265 = vunpack.c.l.b16 %v1189
        %v2266 = vunpack.c.l.b16 %v1201
        %v2267 = vpack.c.b16 %v2266, %v2265
        %v2268 = vunpack.c.l.b16 %v1677
        %v2269 = vunpack.c.l.b16 %v1689
        %v2270 = vpack.c.b16 %v2269, %v2268
        %v2272 = vsel %vm2192, %v2267, 0
        %v2275 = vsel %vm2192, %v2270, 0
        %2277 = vmatpush.bf16.xpose.msra.mxu0 0
        %2278 = vmatpush.bf16.xpose.msra.mxu0 0
        %2279 = vmatpush.bf16.xpose.msra.mxu0 0
        %2280 = vmatpush.bf16.xpose.msra.mxu0 0
        %2281 = vmatpush.bf16.xpose.msra.mxu0 0
        %2282 = vmatpush.bf16.xpose.msra.mxu0 0
        %2283 = vmatpush.bf16.xpose.msra.mxu0 0
        %2284 = vmatpush.bf16.xpose.msra.mxu0 %v2275
        %2285 = vmatmul.bf16.gmra.mxu0 %v2272
        %v2286 = vpop.f32.mrf.mxu0
        %v2287 = vadd.f32 0.0, %v2286
        %v2288 = vpop.f32.mrf.mxu0
        %v2289 = vadd.f32 0.0, %v2288
        %2290 = vdwg.mxu0
        %v2291 = vunpack.c.l.b16 %v1204
        %v2292 = vunpack.c.l.b16 %v1216
        %v2293 = vpack.c.b16 %v2292, %v2291
        %v2294 = vunpack.c.l.b16 %v1692
        %v2295 = vunpack.c.l.b16 %v1704
        %v2296 = vpack.c.b16 %v2295, %v2294
        %v2298 = vsel %vm2192, %v2293, 0
        %v2301 = vsel %vm2192, %v2296, 0
        %2303 = vmatpush.bf16.xpose.msra.mxu0 0
        %2304 = vmatpush.bf16.xpose.msra.mxu0 0
        %2305 = vmatpush.bf16.xpose.msra.mxu0 0
        %2306 = vmatpush.bf16.xpose.msra.mxu0 0
        %2307 = vmatpush.bf16.xpose.msra.mxu0 0
        %2308 = vmatpush.bf16.xpose.msra.mxu0 0
        %2309 = vmatpush.bf16.xpose.msra.mxu0 0
        %2310 = vmatpush.bf16.xpose.msra.mxu0 %v2301
        %2311 = vmatmul.bf16.gmra.mxu0 %v2298
        %v2312 = vpop.f32.mrf.mxu0
        %v2313 = vadd.f32 0.0, %v2312
        %v2314 = vpop.f32.mrf.mxu0
        %v2315 = vadd.f32 0.0, %v2314
        %2316 = vdwg.mxu0
        %v2317 = vunpack.c.l.b16 %v1207
        %v2318 = vunpack.c.l.b16 %v1219
        %v2319 = vpack.c.b16 %v2318, %v2317
        %v2320 = vunpack.c.l.b16 %v1695
        %v2321 = vunpack.c.l.b16 %v1707
        %v2322 = vpack.c.b16 %v2321, %v2320
        %v2324 = vsel %vm2192, %v2319, 0
        %v2327 = vsel %vm2192, %v2322, 0
        %2329 = vmatpush.bf16.xpose.msra.mxu0 0
        %2330 = vmatpush.bf16.xpose.msra.mxu0 0
        %2331 = vmatpush.bf16.xpose.msra.mxu0 0
        %2332 = vmatpush.bf16.xpose.msra.mxu0 0
        %2333 = vmatpush.bf16.xpose.msra.mxu0 0
        %2334 = vmatpush.bf16.xpose.msra.mxu0 0
        %2335 = vmatpush.bf16.xpose.msra.mxu0 0
        %2336 = vmatpush.bf16.xpose.msra.mxu0 %v2327
        %2337 = vmatmul.bf16.gmra.mxu0 %v2324
        %v2338 = vpop.f32.mrf.mxu0
        %v2339 = vadd.f32 0.0, %v2338
        %v2340 = vpop.f32.mrf.mxu0
        %v2341 = vadd.f32 0.0, %v2340
        %2342 = vdwg.mxu0
        %v2343 = vunpack.c.l.b16 %v1210
        %v2344 = vunpack.c.l.b16 %v1222
        %v2345 = vpack.c.b16 %v2344, %v2343
        %v2346 = vunpack.c.l.b16 %v1698
        %v2347 = vunpack.c.l.b16 %v1710
        %v2348 = vpack.c.b16 %v2347, %v2346
        %v2350 = vsel %vm2192, %v2345, 0
        %v2353 = vsel %vm2192, %v2348, 0
        %2355 = vmatpush.bf16.xpose.msra.mxu0 0
        %2356 = vmatpush.bf16.xpose.msra.mxu0 0
        %2357 = vmatpush.bf16.xpose.msra.mxu0 0
        %2358 = vmatpush.bf16.xpose.msra.mxu0 0
        %2359 = vmatpush.bf16.xpose.msra.mxu0 0
        %2360 = vmatpush.bf16.xpose.msra.mxu0 0
        %2361 = vmatpush.bf16.xpose.msra.mxu0 0
        %2362 = vmatpush.bf16.xpose.msra.mxu0 %v2353
        %2363 = vmatmul.bf16.gmra.mxu0 %v2350
        %v2364 = vpop.f32.mrf.mxu0
        %v2365 = vadd.f32 0.0, %v2364
        %v2366 = vpop.f32.mrf.mxu0
        %v2367 = vadd.f32 0.0, %v2366
        %2368 = vdwg.mxu0
        %v2369 = vunpack.c.l.b16 %v1213
        %v2370 = vunpack.c.l.b16 %v1225
        %v2371 = vpack.c.b16 %v2370, %v2369
        %v2372 = vunpack.c.l.b16 %v1701
        %v2373 = vunpack.c.l.b16 %v1713
        %v2374 = vpack.c.b16 %v2373, %v2372
        %v2376 = vsel %vm2192, %v2371, 0
        %v2379 = vsel %vm2192, %v2374, 0
        %2381 = vmatpush.bf16.xpose.msra.mxu0 0
        %2382 = vmatpush.bf16.xpose.msra.mxu0 0
        %2383 = vmatpush.bf16.xpose.msra.mxu0 0
        %2384 = vmatpush.bf16.xpose.msra.mxu0 0
        %2385 = vmatpush.bf16.xpose.msra.mxu0 0
        %2386 = vmatpush.bf16.xpose.msra.mxu0 0
        %2387 = vmatpush.bf16.xpose.msra.mxu0 0
        %2388 = vmatpush.bf16.xpose.msra.mxu0 %v2379
        %2389 = vmatmul.bf16.gmra.mxu0 %v2376
        %v2390 = vpop.f32.mrf.mxu0
        %v2391 = vadd.f32 0.0, %v2390
        %v2392 = vpop.f32.mrf.mxu0
        %v2393 = vadd.f32 0.0, %v2392
        %2394 = vdwg.mxu0
        %v2395 = vsel %vm2192, %v2209, -inf
        %2396 = vmax.xlane.f32.xlu0 %v2395
        %v2397 = vpop.xlane.xlu0 %2396
        %v2398 = vsel %vm2192, %v2211, -inf
        %2399 = vmax.xlane.f32.xlu0 %v2398
        %v2400 = vpop.xlane.xlu0 %2399
        %v2401 = vsel %vm2192, %v2235, -inf
        %2402 = vmax.xlane.f32.xlu0 %v2401
        %v2403 = vpop.xlane.xlu0 %2402
        %v2404 = vsel %vm2192, %v2237, -inf
        %2405 = vmax.xlane.f32.xlu0 %v2404
        %v2406 = vpop.xlane.xlu0 %2405
        %v2407 = vsel %vm2192, %v2261, -inf
        %2408 = vmax.xlane.f32.xlu0 %v2407
        %v2409 = vpop.xlane.xlu0 %2408
        %v2410 = vsel %vm2192, %v2263, -inf
        %2411 = vmax.xlane.f32.xlu0 %v2410
        %v2412 = vpop.xlane.xlu0 %2411
        %v2413 = vsel %vm2192, %v2287, -inf
        %2414 = vmax.xlane.f32.xlu0 %v2413
        %v2415 = vpop.xlane.xlu0 %2414
        %v2416 = vsel %vm2192, %v2289, -inf
        %2417 = vmax.xlane.f32.xlu0 %v2416
        %v2418 = vpop.xlane.xlu0 %2417
        %v2419 = vsel %vm2192, %v2313, -inf
        %2420 = vmax.xlane.f32.xlu0 %v2419
        %v2421 = vpop.xlane.xlu0 %2420
        %v2422 = vsel %vm2192, %v2315, -inf
        %2423 = vmax.xlane.f32.xlu0 %v2422
        %v2424 = vpop.xlane.xlu0 %2423
        %v2425 = vsel %vm2192, %v2339, -inf
        %2426 = vmax.xlane.f32.xlu0 %v2425
        %v2427 = vpop.xlane.xlu0 %2426
        %v2428 = vsel %vm2192, %v2341, -inf
        %2429 = vmax.xlane.f32.xlu0 %v2428
        %v2430 = vpop.xlane.xlu0 %2429
        %v2431 = vsel %vm2192, %v2365, -inf
        %2432 = vmax.xlane.f32.xlu0 %v2431
        %v2433 = vpop.xlane.xlu0 %2432
        %v2434 = vsel %vm2192, %v2367, -inf
        %2435 = vmax.xlane.f32.xlu0 %v2434
        %v2436 = vpop.xlane.xlu0 %2435
        %v2437 = vsel %vm2192, %v2391, -inf
        %2438 = vmax.xlane.f32.xlu0 %v2437
        %v2439 = vpop.xlane.xlu0 %2438
        %v2440 = vsel %vm2192, %v2393, -inf
        %2441 = vmax.xlane.f32.xlu0 %v2440
        %v2442 = vpop.xlane.xlu0 %2441
        %v2443 = vsub.f32 %v2209, %v2397
        %v2444 = vsub.f32 %v2211, %v2400
        %v2445 = vsub.f32 %v2235, %v2403
        %v2446 = vsub.f32 %v2237, %v2406
        %v2447 = vsub.f32 %v2261, %v2409
        %v2448 = vsub.f32 %v2263, %v2412
        %v2449 = vsub.f32 %v2287, %v2415
        %v2450 = vsub.f32 %v2289, %v2418
        %v2451 = vsub.f32 %v2313, %v2421
        %v2452 = vsub.f32 %v2315, %v2424
        %v2453 = vsub.f32 %v2339, %v2427
        %v2454 = vsub.f32 %v2341, %v2430
        %v2455 = vsub.f32 %v2365, %v2433
        %v2456 = vsub.f32 %v2367, %v2436
        %v2457 = vsub.f32 %v2391, %v2439
        %v2458 = vsub.f32 %v2393, %v2442
        %v2459 = vmul.f32 %v2443, 1.442695
        %v2460 = vpow.pop %v2459
        %v2461 = vmul.f32 %v2444, 1.442695
        %v2462 = vpow.pop %v2461
        %v2463 = vmul.f32 %v2445, 1.442695
        %v2464 = vpow.pop %v2463
        %v2465 = vmul.f32 %v2446, 1.442695
        %v2466 = vpow.pop %v2465
        %v2467 = vmul.f32 %v2447, 1.442695
        %v2468 = vpow.pop %v2467
        %v2469 = vmul.f32 %v2448, 1.442695
        %v2470 = vpow.pop %v2469
        %v2471 = vmul.f32 %v2449, 1.442695
        %v2472 = vpow.pop %v2471
        %v2473 = vmul.f32 %v2450, 1.442695
        %v2474 = vpow.pop %v2473
        %v2475 = vmul.f32 %v2451, 1.442695
        %v2476 = vpow.pop %v2475
        %v2477 = vmul.f32 %v2452, 1.442695
        %v2478 = vpow.pop %v2477
        %v2479 = vmul.f32 %v2453, 1.442695
        %v2480 = vpow.pop %v2479
        %v2481 = vmul.f32 %v2454, 1.442695
        %v2482 = vpow.pop %v2481
        %v2483 = vmul.f32 %v2455, 1.442695
        %v2484 = vpow.pop %v2483
        %v2485 = vmul.f32 %v2456, 1.442695
        %v2486 = vpow.pop %v2485
        %v2487 = vmul.f32 %v2457, 1.442695
        %v2488 = vpow.pop %v2487
        %v2489 = vmul.f32 %v2458, 1.442695
        %v2490 = vpow.pop %v2489
        %v2491 = vsel %vm2192, %v2460, 0.0
        %2492 = vadd.xlane.f32.xlu0 %v2491
        %v2493 = vpop.xlane.xlu0 %2492
        %v2494 = vsel %vm2192, %v2462, 0.0
        %2495 = vadd.xlane.f32.xlu0 %v2494
        %v2496 = vpop.xlane.xlu0 %2495
        %v2497 = vsel %vm2192, %v2464, 0.0
        %2498 = vadd.xlane.f32.xlu0 %v2497
        %v2499 = vpop.xlane.xlu0 %2498
        %v2500 = vsel %vm2192, %v2466, 0.0
        %2501 = vadd.xlane.f32.xlu0 %v2500
        %v2502 = vpop.xlane.xlu0 %2501
        %v2503 = vsel %vm2192, %v2468, 0.0
        %2504 = vadd.xlane.f32.xlu0 %v2503
        %v2505 = vpop.xlane.xlu0 %2504
        %v2506 = vsel %vm2192, %v2470, 0.0
        %2507 = vadd.xlane.f32.xlu0 %v2506
        %v2508 = vpop.xlane.xlu0 %2507
        %v2509 = vsel %vm2192, %v2472, 0.0
        %2510 = vadd.xlane.f32.xlu0 %v2509
        %v2511 = vpop.xlane.xlu0 %2510
        %v2512 = vsel %vm2192, %v2474, 0.0
        %2513 = vadd.xlane.f32.xlu0 %v2512
        %v2514 = vpop.xlane.xlu0 %2513
        %v2515 = vsel %vm2192, %v2476, 0.0
        %2516 = vadd.xlane.f32.xlu0 %v2515
        %v2517 = vpop.xlane.xlu0 %2516
        %v2518 = vsel %vm2192, %v2478, 0.0
        %2519 = vadd.xlane.f32.xlu0 %v2518
        %v2520 = vpop.xlane.xlu0 %2519
        %v2521 = vsel %vm2192, %v2480, 0.0
        %2522 = vadd.xlane.f32.xlu0 %v2521
        %v2523 = vpop.xlane.xlu0 %2522
        %v2524 = vsel %vm2192, %v2482, 0.0
        %2525 = vadd.xlane.f32.xlu0 %v2524
        %v2526 = vpop.xlane.xlu0 %2525
        %v2527 = vsel %vm2192, %v2484, 0.0
        %2528 = vadd.xlane.f32.xlu0 %v2527
        %v2529 = vpop.xlane.xlu0 %2528
        %v2530 = vsel %vm2192, %v2486, 0.0
        %2531 = vadd.xlane.f32.xlu0 %v2530
        %v2532 = vpop.xlane.xlu0 %2531
        %v2533 = vsel %vm2192, %v2488, 0.0
        %2534 = vadd.xlane.f32.xlu0 %v2533
        %v2535 = vpop.xlane.xlu0 %2534
        %v2536 = vsel %vm2192, %v2490, 0.0
        %2537 = vadd.xlane.f32.xlu0 %v2536
        %v2538 = vpop.xlane.xlu0 %2537
        %v2539 = vrcp.pop %v2493
        %v2540 = vrcp.pop %v2496
        %v2541 = vrcp.pop %v2499
        %v2542 = vrcp.pop %v2502
        %v2543 = vrcp.pop %v2505
        %v2544 = vrcp.pop %v2508
        %v2545 = vrcp.pop %v2511
        %v2546 = vrcp.pop %v2514
        %v2547 = vrcp.pop %v2517
        %v2548 = vrcp.pop %v2520
        %v2549 = vrcp.pop %v2523
        %v2550 = vrcp.pop %v2526
        %v2551 = vrcp.pop %v2529
        %v2552 = vrcp.pop %v2532
        %v2553 = vrcp.pop %v2535
        %v2554 = vrcp.pop %v2538
        %v2555 = vmul.f32 %v2460, %v2539
        %v2556 = vmul.f32 %v2462, %v2540
        %v2557 = vmul.f32 %v2464, %v2541
        %v2558 = vmul.f32 %v2466, %v2542
        %v2559 = vmul.f32 %v2468, %v2543
        %v2560 = vmul.f32 %v2470, %v2544
        %v2561 = vmul.f32 %v2472, %v2545
        %v2562 = vmul.f32 %v2474, %v2546
        %v2563 = vmul.f32 %v2476, %v2547
        %v2564 = vmul.f32 %v2478, %v2548
        %v2565 = vmul.f32 %v2480, %v2549
        %v2566 = vmul.f32 %v2482, %v2550
        %v2567 = vmul.f32 %v2484, %v2551
        %v2568 = vmul.f32 %v2486, %v2552
        %v2569 = vmul.f32 %v2488, %v2553
        %v2570 = vmul.f32 %v2490, %v2554
        %v2571 = vpack.c.bf16 %v2555, %v2555
        %v2572 = vpack.c.bf16 %v2556, %v2556
        %v2573 = vpack.c.bf16 %v2557, %v2557
        %v2574 = vpack.c.bf16 %v2558, %v2558
        %v2575 = vpack.c.bf16 %v2559, %v2559
        %v2576 = vpack.c.bf16 %v2560, %v2560
        %v2577 = vpack.c.bf16 %v2561, %v2561
        %v2578 = vpack.c.bf16 %v2562, %v2562
        %v2579 = vpack.c.bf16 %v2563, %v2563
        %v2580 = vpack.c.bf16 %v2564, %v2564
        %v2581 = vpack.c.bf16 %v2565, %v2565
        %v2582 = vpack.c.bf16 %v2566, %v2566
        %v2583 = vpack.c.bf16 %v2567, %v2567
        %v2584 = vpack.c.bf16 %v2568, %v2568
        %v2585 = vpack.c.bf16 %v2569, %v2569
        %v2586 = vpack.c.bf16 %v2570, %v2570
        %v2589 = vunpack.c.l.b16 %v2571
        %v2590 = vunpack.c.l.b16 %v2572
        %v2591 = vpack.c.b16 %v2590, %v2589
        %v2592 = vunpack.c.l.b16 %v2140
        %v2593 = vunpack.c.l.b16 %v2152
        %v2594 = vpack.c.b16 %v2593, %v2592
        %v2597 = vsel %vm2192, %v2591, 0
        %2599 = vmatpush.bf16.msra.mxu0 0
        %2600 = vmatpush.bf16.msra.mxu0 0
        %2601 = vmatpush.bf16.msra.mxu0 0
        %2602 = vmatpush.bf16.msra.mxu0 0
        %2603 = vmatpush.bf16.msra.mxu0 0
        %2604 = vmatpush.bf16.msra.mxu0 0
        %2605 = vmatpush.bf16.msra.mxu0 0
        %2606 = vmatpush.bf16.msra.mxu0 %v2594
        %2607 = vmatmul.bf16.gmra.mxu0 %v2597
        %v2608 = vpop.f32.mrf.mxu0
        %v2609 = vadd.f32 0.0, %v2608
        %v2610 = vpop.f32.mrf.mxu0
        %v2611 = vadd.f32 0.0, %v2610
        %2612 = vdwg.mxu0
        %v2615 = vunpack.c.l.b16 %v2573
        %v2616 = vunpack.c.l.b16 %v2574
        %v2617 = vpack.c.b16 %v2616, %v2615
        %v2618 = vunpack.c.l.b16 %v2143
        %v2619 = vunpack.c.l.b16 %v2155
        %v2620 = vpack.c.b16 %v2619, %v2618
        %v2623 = vsel %vm2192, %v2617, 0
        %2625 = vmatpush.bf16.msra.mxu0 0
        %2626 = vmatpush.bf16.msra.mxu0 0
        %2627 = vmatpush.bf16.msra.mxu0 0
        %2628 = vmatpush.bf16.msra.mxu0 0
        %2629 = vmatpush.bf16.msra.mxu0 0
        %2630 = vmatpush.bf16.msra.mxu0 0
        %2631 = vmatpush.bf16.msra.mxu0 0
        %2632 = vmatpush.bf16.msra.mxu0 %v2620
        %2633 = vmatmul.bf16.gmra.mxu0 %v2623
        %v2634 = vpop.f32.mrf.mxu0
        %v2635 = vadd.f32 0.0, %v2634
        %v2636 = vpop.f32.mrf.mxu0
        %v2637 = vadd.f32 0.0, %v2636
        %2638 = vdwg.mxu0
        %v2641 = vunpack.c.l.b16 %v2575
        %v2642 = vunpack.c.l.b16 %v2576
        %v2643 = vpack.c.b16 %v2642, %v2641
        %v2644 = vunpack.c.l.b16 %v2146
        %v2645 = vunpack.c.l.b16 %v2158
        %v2646 = vpack.c.b16 %v2645, %v2644
        %v2649 = vsel %vm2192, %v2643, 0
        %2651 = vmatpush.bf16.msra.mxu0 0
        %2652 = vmatpush.bf16.msra.mxu0 0
        %2653 = vmatpush.bf16.msra.mxu0 0
        %2654 = vmatpush.bf16.msra.mxu0 0
        %2655 = vmatpush.bf16.msra.mxu0 0
        %2656 = vmatpush.bf16.msra.mxu0 0
        %2657 = vmatpush.bf16.msra.mxu0 0
        %2658 = vmatpush.bf16.msra.mxu0 %v2646
        %2659 = vmatmul.bf16.gmra.mxu0 %v2649
        %v2660 = vpop.f32.mrf.mxu0
        %v2661 = vadd.f32 0.0, %v2660
        %v2662 = vpop.f32.mrf.mxu0
        %v2663 = vadd.f32 0.0, %v2662
        %2664 = vdwg.mxu0
        %v2667 = vunpack.c.l.b16 %v2577
        %v2668 = vunpack.c.l.b16 %v2578
        %v2669 = vpack.c.b16 %v2668, %v2667
        %v2670 = vunpack.c.l.b16 %v2149
        %v2671 = vunpack.c.l.b16 %v2161
        %v2672 = vpack.c.b16 %v2671, %v2670
        %v2675 = vsel %vm2192, %v2669, 0
        %2677 = vmatpush.bf16.msra.mxu0 0
        %2678 = vmatpush.bf16.msra.mxu0 0
        %2679 = vmatpush.bf16.msra.mxu0 0
        %2680 = vmatpush.bf16.msra.mxu0 0
        %2681 = vmatpush.bf16.msra.mxu0 0
        %2682 = vmatpush.bf16.msra.mxu0 0
        %2683 = vmatpush.bf16.msra.mxu0 0
        %2684 = vmatpush.bf16.msra.mxu0 %v2672
        %2685 = vmatmul.bf16.gmra.mxu0 %v2675
        %v2686 = vpop.f32.mrf.mxu0
        %v2687 = vadd.f32 0.0, %v2686
        %v2688 = vpop.f32.mrf.mxu0
        %v2689 = vadd.f32 0.0, %v2688
        %2690 = vdwg.mxu0
        %v2693 = vunpack.c.l.b16 %v2579
        %v2694 = vunpack.c.l.b16 %v2580
        %v2695 = vpack.c.b16 %v2694, %v2693
        %v2696 = vunpack.c.l.b16 %v2164
        %v2697 = vunpack.c.l.b16 %v2176
        %v2698 = vpack.c.b16 %v2697, %v2696
        %v2701 = vsel %vm2192, %v2695, 0
        %2703 = vmatpush.bf16.msra.mxu0 0
        %2704 = vmatpush.bf16.msra.mxu0 0
        %2705 = vmatpush.bf16.msra.mxu0 0
        %2706 = vmatpush.bf16.msra.mxu0 0
        %2707 = vmatpush.bf16.msra.mxu0 0
        %2708 = vmatpush.bf16.msra.mxu0 0
        %2709 = vmatpush.bf16.msra.mxu0 0
        %2710 = vmatpush.bf16.msra.mxu0 %v2698
        %2711 = vmatmul.bf16.gmra.mxu0 %v2701
        %v2712 = vpop.f32.mrf.mxu0
        %v2713 = vadd.f32 0.0, %v2712
        %v2714 = vpop.f32.mrf.mxu0
        %v2715 = vadd.f32 0.0, %v2714
        %2716 = vdwg.mxu0
        %v2719 = vunpack.c.l.b16 %v2581
        %v2720 = vunpack.c.l.b16 %v2582
        %v2721 = vpack.c.b16 %v2720, %v2719
        %v2722 = vunpack.c.l.b16 %v2167
        %v2723 = vunpack.c.l.b16 %v2179
        %v2724 = vpack.c.b16 %v2723, %v2722
        %v2727 = vsel %vm2192, %v2721, 0
        %2729 = vmatpush.bf16.msra.mxu0 0
        %2730 = vmatpush.bf16.msra.mxu0 0
        %2731 = vmatpush.bf16.msra.mxu0 0
        %2732 = vmatpush.bf16.msra.mxu0 0
        %2733 = vmatpush.bf16.msra.mxu0 0
        %2734 = vmatpush.bf16.msra.mxu0 0
        %2735 = vmatpush.bf16.msra.mxu0 0
        %2736 = vmatpush.bf16.msra.mxu0 %v2724
        %2737 = vmatmul.bf16.gmra.mxu0 %v2727
        %v2738 = vpop.f32.mrf.mxu0
        %v2739 = vadd.f32 0.0, %v2738
        %v2740 = vpop.f32.mrf.mxu0
        %v2741 = vadd.f32 0.0, %v2740
        %2742 = vdwg.mxu0
        %v2745 = vunpack.c.l.b16 %v2583
        %v2746 = vunpack.c.l.b16 %v2584
        %v2747 = vpack.c.b16 %v2746, %v2745
        %v2748 = vunpack.c.l.b16 %v2170
        %v2749 = vunpack.c.l.b16 %v2182
        %v2750 = vpack.c.b16 %v2749, %v2748
        %v2753 = vsel %vm2192, %v2747, 0
        %2755 = vmatpush.bf16.msra.mxu0 0
        %2756 = vmatpush.bf16.msra.mxu0 0
        %2757 = vmatpush.bf16.msra.mxu0 0
        %2758 = vmatpush.bf16.msra.mxu0 0
        %2759 = vmatpush.bf16.msra.mxu0 0
        %2760 = vmatpush.bf16.msra.mxu0 0
        %2761 = vmatpush.bf16.msra.mxu0 0
        %2762 = vmatpush.bf16.msra.mxu0 %v2750
        %2763 = vmatmul.bf16.gmra.mxu0 %v2753
        %v2764 = vpop.f32.mrf.mxu0
        %v2765 = vadd.f32 0.0, %v2764
        %v2766 = vpop.f32.mrf.mxu0
        %v2767 = vadd.f32 0.0, %v2766
        %2768 = vdwg.mxu0
        %v2771 = vunpack.c.l.b16 %v2585
        %v2772 = vunpack.c.l.b16 %v2586
        %v2773 = vpack.c.b16 %v2772, %v2771
        %v2774 = vunpack.c.l.b16 %v2173
        %v2775 = vunpack.c.l.b16 %v2185
        %v2776 = vpack.c.b16 %v2775, %v2774
        %v2779 = vsel %vm2192, %v2773, 0
        %2781 = vmatpush.bf16.msra.mxu0 0
        %2782 = vmatpush.bf16.msra.mxu0 0
        %2783 = vmatpush.bf16.msra.mxu0 0
        %2784 = vmatpush.bf16.msra.mxu0 0
        %2785 = vmatpush.bf16.msra.mxu0 0
        %2786 = vmatpush.bf16.msra.mxu0 0
        %2787 = vmatpush.bf16.msra.mxu0 0
        %2788 = vmatpush.bf16.msra.mxu0 %v2776
        %2789 = vmatmul.bf16.gmra.mxu0 %v2779
        %v2790 = vpop.f32.mrf.mxu0
        %v2791 = vadd.f32 0.0, %v2790
        %v2792 = vpop.f32.mrf.mxu0
        %v2793 = vadd.f32 0.0, %v2792
        %2794 = vdwg.mxu0
        %v2795 = vrot.slane %v2661, 4
        %vm2796 = vcmask 1047556
        %v2797 = vsel %vm2796, %v2795, %v2609
        %v2798 = vrot.slane %v2609, 4
        %v2799 = vsel %vm2796, %v2661, %v2798
        %v2801 = vunpack.c.l.s4 1983009808
        %v2802 = vunpack.c.0.s8 %v2801
        %v2803 = vperm.slane %v2797, %v2802
        %v2805 = vunpack.c.l.s4 1983009808
        %v2806 = vunpack.c.0.s8 %v2805
        %v2807 = vperm.slane %v2799, %v2806
        %v2808 = vrot.slane %v2687, 4
        %v2809 = vsel %vm2796, %v2808, %v2635
        %v2810 = vrot.slane %v2635, 4
        %v2811 = vsel %vm2796, %v2687, %v2810
        %v2813 = vunpack.c.l.s4 1983009808
        %v2814 = vunpack.c.0.s8 %v2813
        %v2815 = vperm.slane %v2809, %v2814
        %v2817 = vunpack.c.l.s4 1983009808
        %v2818 = vunpack.c.0.s8 %v2817
        %v2819 = vperm.slane %v2811, %v2818
        %v2820 = vrot.slane %v2815, 4
        %v2821 = vsel %vm2796, %v2820, %v2803
        %v2822 = vrot.slane %v2803, 4
        %v2823 = vsel %vm2796, %v2815, %v2822
        %v2825 = vunpack.c.l.s4 1934713408
        %v2826 = vunpack.c.0.s8 %v2825
        %v2827 = vperm.slane %v2821, %v2826
        %v2829 = vunpack.c.l.s4 1934713408
        %v2830 = vunpack.c.0.s8 %v2829
        %v2831 = vperm.slane %v2823, %v2830
        %v2832 = vrot.slane %v2819, 4
        %v2833 = vsel %vm2796, %v2832, %v2807
        %v2834 = vrot.slane %v2807, 4
        %v2835 = vsel %vm2796, %v2819, %v2834
        %v2837 = vunpack.c.l.s4 1934713408
        %v2838 = vunpack.c.0.s8 %v2837
        %v2839 = vperm.slane %v2833, %v2838
        %v2841 = vunpack.c.l.s4 1934713408
        %v2842 = vunpack.c.0.s8 %v2841
        %v2843 = vperm.slane %v2835, %v2842
        %v2844 = vrot.slane %v2827, 4
        %v2845 = vsel %vm2796, 0.0, %v2844
        %v2846 = vrot.slane %v2831, 4
        %v2847 = vsel %vm2796, 0.0, %v2846
        %v2848 = vrot.slane %v2839, 4
        %v2849 = vsel %vm2796, 0.0, %v2848
        %v2850 = vrot.slane %v2843, 4
        %v2851 = vsel %vm2796, 0.0, %v2850
        %v2852 = vrot.slane %v2663, 4
        %v2853 = vsel %vm2796, %v2852, %v2611
        %v2854 = vrot.slane %v2611, 4
        %v2855 = vsel %vm2796, %v2663, %v2854
        %v2857 = vunpack.c.l.s4 1983009808
        %v2858 = vunpack.c.0.s8 %v2857
        %v2859 = vperm.slane %v2853, %v2858
        %v2861 = vunpack.c.l.s4 1983009808
        %v2862 = vunpack.c.0.s8 %v2861
        %v2863 = vperm.slane %v2855, %v2862
        %v2864 = vrot.slane %v2689, 4
        %v2865 = vsel %vm2796, %v2864, %v2637
        %v2866 = vrot.slane %v2637, 4
        %v2867 = vsel %vm2796, %v2689, %v2866
        %v2869 = vunpack.c.l.s4 1983009808
        %v2870 = vunpack.c.0.s8 %v2869
        %v2871 = vperm.slane %v2865, %v2870
        %v2873 = vunpack.c.l.s4 1983009808
        %v2874 = vunpack.c.0.s8 %v2873
        %v2875 = vperm.slane %v2867, %v2874
        %v2876 = vrot.slane %v2871, 4
        %v2877 = vsel %vm2796, %v2876, %v2859
        %v2878 = vrot.slane %v2859, 4
        %v2879 = vsel %vm2796, %v2871, %v2878
        %v2881 = vunpack.c.l.s4 1934713408
        %v2882 = vunpack.c.0.s8 %v2881
        %v2883 = vperm.slane %v2877, %v2882
        %v2885 = vunpack.c.l.s4 1934713408
        %v2886 = vunpack.c.0.s8 %v2885
        %v2887 = vperm.slane %v2879, %v2886
        %v2888 = vrot.slane %v2875, 4
        %v2889 = vsel %vm2796, %v2888, %v2863
        %v2890 = vrot.slane %v2863, 4
        %v2891 = vsel %vm2796, %v2875, %v2890
        %v2893 = vunpack.c.l.s4 1934713408
        %v2894 = vunpack.c.0.s8 %v2893
        %v2895 = vperm.slane %v2889, %v2894
        %v2897 = vunpack.c.l.s4 1934713408
        %v2898 = vunpack.c.0.s8 %v2897
        %v2899 = vperm.slane %v2891, %v2898
        %v2900 = vrot.slane %v2883, 4
        %v2901 = vsel %vm2796, 0.0, %v2900
        %v2902 = vrot.slane %v2887, 4
        %v2903 = vsel %vm2796, 0.0, %v2902
        %v2904 = vrot.slane %v2895, 4
        %v2905 = vsel %vm2796, 0.0, %v2904
        %v2906 = vrot.slane %v2899, 4
        %v2907 = vsel %vm2796, 0.0, %v2906
        %v2908 = vrot.slane %v2765, 4
        %v2909 = vsel %vm2796, %v2908, %v2713
        %v2910 = vrot.slane %v2713, 4
        %v2911 = vsel %vm2796, %v2765, %v2910
        %v2913 = vunpack.c.l.s4 1983009808
        %v2914 = vunpack.c.0.s8 %v2913
        %v2915 = vperm.slane %v2909, %v2914
        %v2917 = vunpack.c.l.s4 1983009808
        %v2918 = vunpack.c.0.s8 %v2917
        %v2919 = vperm.slane %v2911, %v2918
        %v2920 = vrot.slane %v2791, 4
        %v2921 = vsel %vm2796, %v2920, %v2739
        %v2922 = vrot.slane %v2739, 4
        %v2923 = vsel %vm2796, %v2791, %v2922
        %v2925 = vunpack.c.l.s4 1983009808
        %v2926 = vunpack.c.0.s8 %v2925
        %v2927 = vperm.slane %v2921, %v2926
        %v2929 = vunpack.c.l.s4 1983009808
        %v2930 = vunpack.c.0.s8 %v2929
        %v2931 = vperm.slane %v2923, %v2930
        %v2932 = vrot.slane %v2927, 4
        %v2933 = vsel %vm2796, %v2932, %v2915
        %v2934 = vrot.slane %v2915, 4
        %v2935 = vsel %vm2796, %v2927, %v2934
        %v2937 = vunpack.c.l.s4 1934713408
        %v2938 = vunpack.c.0.s8 %v2937
        %v2939 = vperm.slane %v2933, %v2938
        %v2941 = vunpack.c.l.s4 1934713408
        %v2942 = vunpack.c.0.s8 %v2941
        %v2943 = vperm.slane %v2935, %v2942
        %v2944 = vrot.slane %v2931, 4
        %v2945 = vsel %vm2796, %v2944, %v2919
        %v2946 = vrot.slane %v2919, 4
        %v2947 = vsel %vm2796, %v2931, %v2946
        %v2949 = vunpack.c.l.s4 1934713408
        %v2950 = vunpack.c.0.s8 %v2949
        %v2951 = vperm.slane %v2945, %v2950
        %v2953 = vunpack.c.l.s4 1934713408
        %v2954 = vunpack.c.0.s8 %v2953
        %v2955 = vperm.slane %v2947, %v2954
        %v2956 = vrot.slane %v2939, 4
        %v2957 = vsel %vm2796, 0.0, %v2956
        %v2958 = vrot.slane %v2943, 4
        %v2959 = vsel %vm2796, 0.0, %v2958
        %v2960 = vrot.slane %v2951, 4
        %v2961 = vsel %vm2796, 0.0, %v2960
        %v2962 = vrot.slane %v2955, 4
        %v2963 = vsel %vm2796, 0.0, %v2962
        %v2964 = vrot.slane %v2767, 4
        %v2965 = vsel %vm2796, %v2964, %v2715
        %v2966 = vrot.slane %v2715, 4
        %v2967 = vsel %vm2796, %v2767, %v2966
        %v2969 = vunpack.c.l.s4 1983009808
        %v2970 = vunpack.c.0.s8 %v2969
        %v2971 = vperm.slane %v2965, %v2970
        %v2973 = vunpack.c.l.s4 1983009808
        %v2974 = vunpack.c.0.s8 %v2973
        %v2975 = vperm.slane %v2967, %v2974
        %v2976 = vrot.slane %v2793, 4
        %v2977 = vsel %vm2796, %v2976, %v2741
        %v2978 = vrot.slane %v2741, 4
        %v2979 = vsel %vm2796, %v2793, %v2978
        %v2981 = vunpack.c.l.s4 1983009808
        %v2982 = vunpack.c.0.s8 %v2981
        %v2983 = vperm.slane %v2977, %v2982
        %v2985 = vunpack.c.l.s4 1983009808
        %v2986 = vunpack.c.0.s8 %v2985
        %v2987 = vperm.slane %v2979, %v2986
        %v2988 = vrot.slane %v2983, 4
        %v2989 = vsel %vm2796, %v2988, %v2971
        %v2990 = vrot.slane %v2971, 4
        %v2991 = vsel %vm2796, %v2983, %v2990
        %v2993 = vunpack.c.l.s4 1934713408
        %v2994 = vunpack.c.0.s8 %v2993
        %v2995 = vperm.slane %v2989, %v2994
        %v2997 = vunpack.c.l.s4 1934713408
        %v2998 = vunpack.c.0.s8 %v2997
        %v2999 = vperm.slane %v2991, %v2998
        %v3000 = vrot.slane %v2987, 4
        %v3001 = vsel %vm2796, %v3000, %v2975
        %v3002 = vrot.slane %v2975, 4
        %v3003 = vsel %vm2796, %v2987, %v3002
        %v3005 = vunpack.c.l.s4 1934713408
        %v3006 = vunpack.c.0.s8 %v3005
        %v3007 = vperm.slane %v3001, %v3006
        %v3009 = vunpack.c.l.s4 1934713408
        %v3010 = vunpack.c.0.s8 %v3009
        %v3011 = vperm.slane %v3003, %v3010
        %v3012 = vrot.slane %v2995, 4
        %v3013 = vsel %vm2796, 0.0, %v3012
        %v3014 = vrot.slane %v2999, 4
        %v3015 = vsel %vm2796, 0.0, %v3014
        %v3016 = vrot.slane %v3007, 4
        %v3017 = vsel %vm2796, 0.0, %v3016
        %v3018 = vrot.slane %v3011, 4
        %v3019 = vsel %vm2796, 0.0, %v3018
        %v3020 = vsel %vm2796, %v2846, %v2827
        %v3022 = vunpack.c.l.s4 1983009808
        %v3023 = vunpack.c.0.s8 %v3022
        %v3024 = vperm.slane %v3020, %v3023
        %v3025 = vrot.slane %v2847, 4
        %v3026 = vsel %vm2796, %v3025, %v2845
        %v3028 = vunpack.c.l.s4 1983009808
        %v3029 = vunpack.c.0.s8 %v3028
        %v3030 = vperm.slane %v3026, %v3029
        %v3031 = vsel %vm2796, %v2850, %v2839
        %v3033 = vunpack.c.l.s4 1983009808
        %v3034 = vunpack.c.0.s8 %v3033
        %v3035 = vperm.slane %v3031, %v3034
        %v3036 = vrot.slane %v2851, 4
        %v3037 = vsel %vm2796, %v3036, %v2849
        %v3039 = vunpack.c.l.s4 1983009808
        %v3040 = vunpack.c.0.s8 %v3039
        %v3041 = vperm.slane %v3037, %v3040
        %v3042 = vrot.slane %v3030, 4
        %v3043 = vsel %vm2796, %v3042, %v3024
        %v3044 = vrot.slane %v3024, 4
        %v3045 = vsel %vm2796, %v3030, %v3044
        %v3047 = vunpack.c.l.s4 1934713408
        %v3048 = vunpack.c.0.s8 %v3047
        %v3049 = vperm.slane %v3043, %v3048
        %v3051 = vunpack.c.l.s4 1934713408
        %v3052 = vunpack.c.0.s8 %v3051
        %v3053 = vperm.slane %v3045, %v3052
        %v3054 = vrot.slane %v3041, 4
        %v3055 = vsel %vm2796, %v3054, %v3035
        %v3056 = vrot.slane %v3035, 4
        %v3057 = vsel %vm2796, %v3041, %v3056
        %v3059 = vunpack.c.l.s4 1934713408
        %v3060 = vunpack.c.0.s8 %v3059
        %v3061 = vperm.slane %v3055, %v3060
        %v3063 = vunpack.c.l.s4 1934713408
        %v3064 = vunpack.c.0.s8 %v3063
        %v3065 = vperm.slane %v3057, %v3064
        %v3066 = vrot.slane %v3061, 4
        %v3067 = vsel %vm2796, %v3066, %v3049
        %v3068 = vrot.slane %v3049, 4
        %v3069 = vsel %vm2796, %v3061, %v3068
        %v3070 = vrot.slane %v3065, 4
        %v3071 = vsel %vm2796, %v3070, %v3053
        %v3072 = vrot.slane %v3053, 4
        %v3073 = vsel %vm2796, %v3065, %v3072
        %v3074 = vsel %vm2796, %v2902, %v2883
        %v3076 = vunpack.c.l.s4 1983009808
        %v3077 = vunpack.c.0.s8 %v3076
        %v3078 = vperm.slane %v3074, %v3077
        %v3079 = vrot.slane %v2903, 4
        %v3080 = vsel %vm2796, %v3079, %v2901
        %v3082 = vunpack.c.l.s4 1983009808
        %v3083 = vunpack.c.0.s8 %v3082
        %v3084 = vperm.slane %v3080, %v3083
        %v3085 = vsel %vm2796, %v2906, %v2895
        %v3087 = vunpack.c.l.s4 1983009808
        %v3088 = vunpack.c.0.s8 %v3087
        %v3089 = vperm.slane %v3085, %v3088
        %v3090 = vrot.slane %v2907, 4
        %v3091 = vsel %vm2796, %v3090, %v2905
        %v3093 = vunpack.c.l.s4 1983009808
        %v3094 = vunpack.c.0.s8 %v3093
        %v3095 = vperm.slane %v3091, %v3094
        %v3096 = vrot.slane %v3084, 4
        %v3097 = vsel %vm2796, %v3096, %v3078
        %v3098 = vrot.slane %v3078, 4
        %v3099 = vsel %vm2796, %v3084, %v3098
        %v3101 = vunpack.c.l.s4 1934713408
        %v3102 = vunpack.c.0.s8 %v3101
        %v3103 = vperm.slane %v3097, %v3102
        %v3105 = vunpack.c.l.s4 1934713408
        %v3106 = vunpack.c.0.s8 %v3105
        %v3107 = vperm.slane %v3099, %v3106
        %v3108 = vrot.slane %v3095, 4
        %v3109 = vsel %vm2796, %v3108, %v3089
        %v3110 = vrot.slane %v3089, 4
        %v3111 = vsel %vm2796, %v3095, %v3110
        %v3113 = vunpack.c.l.s4 1934713408
        %v3114 = vunpack.c.0.s8 %v3113
        %v3115 = vperm.slane %v3109, %v3114
        %v3117 = vunpack.c.l.s4 1934713408
        %v3118 = vunpack.c.0.s8 %v3117
        %v3119 = vperm.slane %v3111, %v3118
        %v3120 = vrot.slane %v3115, 4
        %v3121 = vsel %vm2796, %v3120, %v3103
        %v3122 = vrot.slane %v3103, 4
        %v3123 = vsel %vm2796, %v3115, %v3122
        %v3124 = vrot.slane %v3119, 4
        %v3125 = vsel %vm2796, %v3124, %v3107
        %v3126 = vrot.slane %v3107, 4
        %v3127 = vsel %vm2796, %v3119, %v3126
        %v3128 = vsel %vm2796, %v2958, %v2939
        %v3130 = vunpack.c.l.s4 1983009808
        %v3131 = vunpack.c.0.s8 %v3130
        %v3132 = vperm.slane %v3128, %v3131
        %v3133 = vrot.slane %v2959, 4
        %v3134 = vsel %vm2796, %v3133, %v2957
        %v3136 = vunpack.c.l.s4 1983009808
        %v3137 = vunpack.c.0.s8 %v3136
        %v3138 = vperm.slane %v3134, %v3137
        %v3139 = vsel %vm2796, %v2962, %v2951
        %v3141 = vunpack.c.l.s4 1983009808
        %v3142 = vunpack.c.0.s8 %v3141
        %v3143 = vperm.slane %v3139, %v3142
        %v3144 = vrot.slane %v2963, 4
        %v3145 = vsel %vm2796, %v3144, %v2961
        %v3147 = vunpack.c.l.s4 1983009808
        %v3148 = vunpack.c.0.s8 %v3147
        %v3149 = vperm.slane %v3145, %v3148
        %v3150 = vrot.slane %v3138, 4
        %v3151 = vsel %vm2796, %v3150, %v3132
        %v3152 = vrot.slane %v3132, 4
        %v3153 = vsel %vm2796, %v3138, %v3152
        %v3155 = vunpack.c.l.s4 1934713408
        %v3156 = vunpack.c.0.s8 %v3155
        %v3157 = vperm.slane %v3151, %v3156
        %v3159 = vunpack.c.l.s4 1934713408
        %v3160 = vunpack.c.0.s8 %v3159
        %v3161 = vperm.slane %v3153, %v3160
        %v3162 = vrot.slane %v3149, 4
        %v3163 = vsel %vm2796, %v3162, %v3143
        %v3164 = vrot.slane %v3143, 4
        %v3165 = vsel %vm2796, %v3149, %v3164
        %v3167 = vunpack.c.l.s4 1934713408
        %v3168 = vunpack.c.0.s8 %v3167
        %v3169 = vperm.slane %v3163, %v3168
        %v3171 = vunpack.c.l.s4 1934713408
        %v3172 = vunpack.c.0.s8 %v3171
        %v3173 = vperm.slane %v3165, %v3172
        %v3174 = vrot.slane %v3169, 4
        %v3175 = vsel %vm2796, %v3174, %v3157
        %v3176 = vrot.slane %v3157, 4
        %v3177 = vsel %vm2796, %v3169, %v3176
        %v3178 = vrot.slane %v3173, 4
        %v3179 = vsel %vm2796, %v3178, %v3161
        %v3180 = vrot.slane %v3161, 4
        %v3181 = vsel %vm2796, %v3173, %v3180
        %v3182 = vsel %vm2796, %v3014, %v2995
        %v3184 = vunpack.c.l.s4 1983009808
        %v3185 = vunpack.c.0.s8 %v3184
        %v3186 = vperm.slane %v3182, %v3185
        %v3187 = vrot.slane %v3015, 4
        %v3188 = vsel %vm2796, %v3187, %v3013
        %v3190 = vunpack.c.l.s4 1983009808
        %v3191 = vunpack.c.0.s8 %v3190
        %v3192 = vperm.slane %v3188, %v3191
        %v3193 = vsel %vm2796, %v3018, %v3007
        %v3195 = vunpack.c.l.s4 1983009808
        %v3196 = vunpack.c.0.s8 %v3195
        %v3197 = vperm.slane %v3193, %v3196
        %v3198 = vrot.slane %v3019, 4
        %v3199 = vsel %vm2796, %v3198, %v3017
        %v3201 = vunpack.c.l.s4 1983009808
        %v3202 = vunpack.c.0.s8 %v3201
        %v3203 = vperm.slane %v3199, %v3202
        %v3204 = vrot.slane %v3192, 4
        %v3205 = vsel %vm2796, %v3204, %v3186
        %v3206 = vrot.slane %v3186, 4
        %v3207 = vsel %vm2796, %v3192, %v3206
        %v3209 = vunpack.c.l.s4 1934713408
        %v3210 = vunpack.c.0.s8 %v3209
        %v3211 = vperm.slane %v3205, %v3210
        %v3213 = vunpack.c.l.s4 1934713408
        %v3214 = vunpack.c.0.s8 %v3213
        %v3215 = vperm.slane %v3207, %v3214
        %v3216 = vrot.slane %v3203, 4
        %v3217 = vsel %vm2796, %v3216, %v3197
        %v3218 = vrot.slane %v3197, 4
        %v3219 = vsel %vm2796, %v3203, %v3218
        %v3221 = vunpack.c.l.s4 1934713408
        %v3222 = vunpack.c.0.s8 %v3221
        %v3223 = vperm.slane %v3217, %v3222
        %v3225 = vunpack.c.l.s4 1934713408
        %v3226 = vunpack.c.0.s8 %v3225
        %v3227 = vperm.slane %v3219, %v3226
        %v3228 = vrot.slane %v3223, 4
        %v3229 = vsel %vm2796, %v3228, %v3211
        %v3230 = vrot.slane %v3211, 4
        %v3231 = vsel %vm2796, %v3223, %v3230
        %v3232 = vrot.slane %v3227, 4
        %v3233 = vsel %vm2796, %v3232, %v3215
        %v3234 = vrot.slane %v3215, 4
        %v3235 = vsel %vm2796, %v3227, %v3234
        %3240 = vrot.lane.b32.xlu0 %v3069, 16
        %v3241 = vpop.permute.xlu0 %3240
        %3242 = vrot.lane.b32.xlu0 %v3123, 16
        %v3243 = vpop.permute.xlu0 %3242
        %3244 = vrot.lane.b32.xlu0 %v3177, 16
        %v3245 = vpop.permute.xlu0 %3244
        %3246 = vrot.lane.b32.xlu0 %v3231, 16
        %v3247 = vpop.permute.xlu0 %3246
        %3256 = vrot.lane.b32.xlu0 %v3071, 32
        %v3257 = vpop.permute.xlu0 %3256
        %3258 = vrot.lane.b32.xlu0 %v3125, 32
        %v3259 = vpop.permute.xlu0 %3258
        %3260 = vrot.lane.b32.xlu0 %v3179, 32
        %v3261 = vpop.permute.xlu0 %3260
        %3262 = vrot.lane.b32.xlu0 %v3233, 32
        %v3263 = vpop.permute.xlu0 %3262
        %3272 = vrot.lane.b32.xlu0 %v3073, 48
        %v3273 = vpop.permute.xlu0 %3272
        %3274 = vrot.lane.b32.xlu0 %v3127, 48
        %v3275 = vpop.permute.xlu0 %3274
        %3276 = vrot.lane.b32.xlu0 %v3181, 48
        %v3277 = vpop.permute.xlu0 %3276
        %3278 = vrot.lane.b32.xlu0 %v3235, 48
        %v3279 = vpop.permute.xlu0 %3278
        %v3284 = vsel %vm2192, %v3067, %v3241
        %v3285 = vsel %vm2192, %v3121, %v3243
        %v3286 = vsel %vm2192, %v3175, %v3245
        %v3287 = vsel %vm2192, %v3229, %v3247
        %vm3288 = vcmask 261120
        %v3289 = vsel %vm3288, %v3284, %v3257
        %v3290 = vsel %vm3288, %v3285, %v3259
        %v3291 = vsel %vm3288, %v3286, %v3261
        %v3292 = vsel %vm3288, %v3287, %v3263
        %vm3293 = vcmask 392192
        %v3294 = vsel %vm3293, %v3289, %v3273
        %v3295 = vsel %vm3293, %v3290, %v3275
        %v3296 = vsel %vm3293, %v3291, %v3277
        %v3297 = vsel %vm3293, %v3292, %v3279
        %v3298 = vpack.c.bf16 %v3295, %v3294
        %v3299 = vpack.c.bf16 %v3297, %v3296
        %v3300 = vld [vmem:[#allocation7] sm:$0xf]
        %v3301 = vld [vmem:[#allocation7 + $0x4] sm:$0xf]
        %v3302 = vld [vmem:[#allocation7 + $0x8] sm:$0xf]
        %v3303 = vld [vmem:[#allocation7 + $0xc] sm:$0xf]
        %v3304 = vld [vmem:[#allocation7 + $0x10] sm:$0xf]
        %v3305 = vld [vmem:[#allocation7 + $0x14] sm:$0xf]
        %v3306 = vld [vmem:[#allocation7 + $0x18] sm:$0xf]
        %v3307 = vld [vmem:[#allocation7 + $0x1c] sm:$0xf]
        %v3308 = vld [vmem:[%s6] sm:$0x1]
        %v3310 = vperm.slane %v3308, 0
        %v3320 = vunpack.c.l.b16 %v3300
        %v3321 = vunpack.c.l.b16 %v3301
        %v3322 = vunpack.c.l.b16 %v3302
        %v3323 = vunpack.c.l.b16 %v3303
        %v3324 = vunpack.c.l.b16 %v3304
        %v3325 = vunpack.c.l.b16 %v3305
        %v3326 = vunpack.c.l.b16 %v3306
        %v3327 = vunpack.c.l.b16 %v3307
        %v3328 = vpack.c.b16 %v3321, %v3320
        %v3329 = vpack.c.b16 %v3323, %v3322
        %v3330 = vpack.c.b16 %v3325, %v3324
        %v3331 = vpack.c.b16 %v3327, %v3326
        %v3337 = vsel %vm527, %v3298, 0
        %v3340 = vsel %vm527, %v3299, 0
        %3342 = vmatpush.bf16.msra.mxu0 0
        %3343 = vmatpush.bf16.msra.mxu0 0
        %3344 = vmatpush.bf16.msra.mxu0 0
        %3345 = vmatpush.bf16.msra.mxu0 0
        %3346 = vmatpush.bf16.msra.mxu0 %v3331
        %3347 = vmatpush.bf16.msra.mxu0 %v3330
        %3348 = vmatpush.bf16.msra.mxu0 %v3329
        %3349 = vmatpush.bf16.msra.mxu0 %v3328
        %3350 = vmatmul.bf16.gmra.mxu0 %v3337
        %v3351 = vpop.f32.mrf.mxu0
        %v3352 = vadd.f32 %v3310, %v3351
        %v3353 = vpop.f32.mrf.mxu0
        %v3354 = vadd.f32 %v3310, %v3353
        %3355 = vmatmul.bf16.gmra.mxu0 %v3340
        %v3356 = vpop.f32.mrf.mxu0
        %v3357 = vadd.f32 %v3310, %v3356
        %v3358 = vpop.f32.mrf.mxu0
        %v3359 = vadd.f32 %v3310, %v3358
        %3360 = vdwg.mxu0
        %v3361 = vadd.f32 %v521, %v3352
        %v3362 = vadd.f32 %v522, %v3354
        %v3363 = vadd.f32 %v523, %v3357
        %v3364 = vadd.f32 %v524, %v3359
        %v3365 = vld [vmem:[#allocation8] sm:$0x1]
        %v3366 = vld [vmem:[#allocation10] sm:$0x1]
        %v3367 = vsel %vm527, %v3361, 0.0
        %3368 = vadd.xlane.f32.xlu0 %v3367
        %v3369 = vpop.xlane.xlu0 %3368
        %v3370 = vsel %vm527, %v3362, 0.0
        %3371 = vadd.xlane.f32.xlu0 %v3370
        %v3372 = vpop.xlane.xlu0 %3371
        %v3373 = vsel %vm527, %v3363, 0.0
        %3374 = vadd.xlane.f32.xlu0 %v3373
        %v3375 = vpop.xlane.xlu0 %3374
        %v3376 = vsel %vm527, %v3364, 0.0
        %3377 = vadd.xlane.f32.xlu0 %v3376
        %v3378 = vpop.xlane.xlu0 %3377
        %v3379 = vmul.f32 %v3369, %v546
        %v3380 = vmul.f32 %v3372, %v546
        %v3381 = vmul.f32 %v3375, %v546
        %v3382 = vmul.f32 %v3378, %v546
        %v3383 = vsub.f32 %v3361, %v3379
        %v3384 = vsub.f32 %v3362, %v3380
        %v3385 = vsub.f32 %v3363, %v3381
        %v3386 = vsub.f32 %v3364, %v3382
        %v3387 = vmul.f32 %v3383, %v3383
        %v3388 = vmul.f32 %v3384, %v3384
        %v3389 = vmul.f32 %v3385, %v3385
        %v3390 = vmul.f32 %v3386, %v3386
        %v3391 = vsel %vm527, %v3387, 0.0
        %3392 = vadd.xlane.f32.xlu0 %v3391
        %v3393 = vpop.xlane.xlu0 %3392
        %v3394 = vsel %vm527, %v3388, 0.0
        %3395 = vadd.xlane.f32.xlu0 %v3394
        %v3396 = vpop.xlane.xlu0 %3395
        %v3397 = vsel %vm527, %v3389, 0.0
        %3398 = vadd.xlane.f32.xlu0 %v3397
        %v3399 = vpop.xlane.xlu0 %3398
        %v3400 = vsel %vm527, %v3390, 0.0
        %3401 = vadd.xlane.f32.xlu0 %v3400
        %v3402 = vpop.xlane.xlu0 %3401
        %v3403 = vmul.f32 %v3393, %v546
        %v3404 = vmul.f32 %v3396, %v546
        %v3405 = vmul.f32 %v3399, %v546
        %v3406 = vmul.f32 %v3402, %v546
        %v3407 = vadd.f32 %v3403, 1e-05
        %v3408 = vadd.f32 %v3404, 1e-05
        %v3409 = vadd.f32 %v3405, 1e-05
        %v3410 = vadd.f32 %v3406, 1e-05
        %v3411 = vrsqrt.pop %v3407
        %v3412 = vmul.f32 %v3411, %v3407
        %v3413 = vmul.f32 %v3412, %v3411
        %v3414 = vmul.f32 0.5, %v3413
        %v3415 = vsub.f32 1.5, %v3414
        %v3416 = vmul.f32 %v3411, %v3415
        %vm3417 = vweird.f32 %v3407
        %vm3418 = vweird.f32 %v3411
        %vm3419 = vmor %vm3417, %vm3418
        %v3420 = vsel %vm3419, %v3411, %v3416
        %v3421 = vrsqrt.pop %v3408
        %v3422 = vmul.f32 %v3421, %v3408
        %v3423 = vmul.f32 %v3422, %v3421
        %v3424 = vmul.f32 0.5, %v3423
        %v3425 = vsub.f32 1.5, %v3424
        %v3426 = vmul.f32 %v3421, %v3425
        %vm3427 = vweird.f32 %v3408
        %vm3428 = vweird.f32 %v3421
        %vm3429 = vmor %vm3427, %vm3428
        %v3430 = vsel %vm3429, %v3421, %v3426
        %v3431 = vrsqrt.pop %v3409
        %v3432 = vmul.f32 %v3431, %v3409
        %v3433 = vmul.f32 %v3432, %v3431
        %v3434 = vmul.f32 0.5, %v3433
        %v3435 = vsub.f32 1.5, %v3434
        %v3436 = vmul.f32 %v3431, %v3435
        %vm3437 = vweird.f32 %v3409
        %vm3438 = vweird.f32 %v3431
        %vm3439 = vmor %vm3437, %vm3438
        %v3440 = vsel %vm3439, %v3431, %v3436
        %v3441 = vrsqrt.pop %v3410
        %v3442 = vmul.f32 %v3441, %v3410
        %v3443 = vmul.f32 %v3442, %v3441
        %v3444 = vmul.f32 0.5, %v3443
        %v3445 = vsub.f32 1.5, %v3444
        %v3446 = vmul.f32 %v3441, %v3445
        %vm3447 = vweird.f32 %v3410
        %vm3448 = vweird.f32 %v3441
        %vm3449 = vmor %vm3447, %vm3448
        %v3450 = vsel %vm3449, %v3441, %v3446
        %v3451 = vmul.f32 %v3383, %v3420
        %v3452 = vmul.f32 %v3384, %v3430
        %v3453 = vmul.f32 %v3385, %v3440
        %v3454 = vmul.f32 %v3386, %v3450
        %v3456 = vperm.slane %v3365, 0
        %v3458 = vmul.f32 %v3451, %v3456
        %v3459 = vmul.f32 %v3452, %v3456
        %v3460 = vmul.f32 %v3453, %v3456
        %v3461 = vmul.f32 %v3454, %v3456
        %v3463 = vperm.slane %v3366, 0
        %v3465 = vadd.f32 %v3458, %v3463
        %v3466 = vadd.f32 %v3459, %v3463
        %v3467 = vadd.f32 %v3460, %v3463
        %v3468 = vadd.f32 %v3461, %v3463
        %v3469 = vpack.c.bf16 %v3466, %v3465
        %v3470 = vpack.c.bf16 %v3468, %v3467
        %v3471 = vld [vmem:[%s9] sm:$0xff]
        %v3472 = vld [vmem:[%s9 + $0x8] sm:$0xff]
        %v3473 = vld [vmem:[%s9 + $0x10] sm:$0xff]
        %v3474 = vld [vmem:[%s9 + $0x18] sm:$0xff]
        %v3475 = vld [vmem:[%s9 + $0x20] sm:$0xff]
        %v3476 = vld [vmem:[%s9 + $0x28] sm:$0xff]
        %v3477 = vld [vmem:[%s9 + $0x30] sm:$0xff]
        %v3478 = vld [vmem:[%s9 + $0x38] sm:$0xff]
        %v3479 = vld [vmem:[%s10] sm:$0x3]
        %v3481 = vperm.slane %v3479, 0
        %v3482 = vperm.slane %v3479, 1
        %v3493 = vunpack.c.l.b16 %v3471
        %v3494 = vunpack.c.h.b16 %v3471
        %v3495 = vunpack.c.l.b16 %v3472
        %v3496 = vunpack.c.h.b16 %v3472
        %v3497 = vunpack.c.l.b16 %v3473
        %v3498 = vunpack.c.h.b16 %v3473
        %v3499 = vunpack.c.l.b16 %v3474
        %v3500 = vunpack.c.h.b16 %v3474
        %v3501 = vunpack.c.l.b16 %v3475
        %v3502 = vunpack.c.h.b16 %v3475
        %v3503 = vunpack.c.l.b16 %v3476
        %v3504 = vunpack.c.h.b16 %v3476
        %v3505 = vunpack.c.l.b16 %v3477
        %v3506 = vunpack.c.h.b16 %v3477
        %v3507 = vunpack.c.l.b16 %v3478
        %v3508 = vunpack.c.h.b16 %v3478
        %v3509 = vpack.c.b16 %v3495, %v3493
        %v3510 = vpack.c.b16 %v3496, %v3494
        %v3511 = vpack.c.b16 %v3499, %v3497
        %v3512 = vpack.c.b16 %v3500, %v3498
        %v3513 = vpack.c.b16 %v3503, %v3501
        %v3514 = vpack.c.b16 %v3504, %v3502
        %v3515 = vpack.c.b16 %v3507, %v3505
        %v3516 = vpack.c.b16 %v3508, %v3506
        %v3526 = vsel %vm527, %v3469, 0
        %v3529 = vsel %vm527, %v3470, 0
        %3531 = vmatpush.bf16.msra.mxu0 0
        %3532 = vmatpush.bf16.msra.mxu0 0
        %3533 = vmatpush.bf16.msra.mxu0 0
        %3534 = vmatpush.bf16.msra.mxu0 0
        %3535 = vmatpush.bf16.msra.mxu0 %v3515
        %3536 = vmatpush.bf16.msra.mxu0 %v3513
        %3537 = vmatpush.bf16.msra.mxu0 %v3511
        %3538 = vmatpush.bf16.msra.mxu0 %v3509
        %3539 = vmatmul.bf16.gmra.mxu0 %v3526
        %v3540 = vpop.f32.mrf.mxu0
        %v3541 = vadd.f32 %v3481, %v3540
        %v3542 = vpop.f32.mrf.mxu0
        %v3543 = vadd.f32 %v3481, %v3542
        %3544 = vmatmul.bf16.gmra.mxu0 %v3529
        %v3545 = vpop.f32.mrf.mxu0
        %v3546 = vadd.f32 %v3481, %v3545
        %v3547 = vpop.f32.mrf.mxu0
        %v3548 = vadd.f32 %v3481, %v3547
        %3549 = vdwg.mxu0
        %3550 = vmatpush.bf16.msra.mxu0 0
        %3551 = vmatpush.bf16.msra.mxu0 0
        %3552 = vmatpush.bf16.msra.mxu0 0
        %3553 = vmatpush.bf16.msra.mxu0 0
        %3554 = vmatpush.bf16.msra.mxu0 %v3516
        %3555 = vmatpush.bf16.msra.mxu0 %v3514
        %3556 = vmatpush.bf16.msra.mxu0 %v3512
        %3557 = vmatpush.bf16.msra.mxu0 %v3510
        %3558 = vmatmul.bf16.gmra.mxu0 %v3526
        %v3559 = vpop.f32.mrf.mxu0
        %v3560 = vadd.f32 %v3482, %v3559
        %v3561 = vpop.f32.mrf.mxu0
        %v3562 = vadd.f32 %v3482, %v3561
        %3563 = vmatmul.bf16.gmra.mxu0 %v3529
        %v3564 = vpop.f32.mrf.mxu0
        %v3565 = vadd.f32 %v3482, %v3564
        %v3566 = vpop.f32.mrf.mxu0
        %v3567 = vadd.f32 %v3482, %v3566
        %3568 = vdwg.mxu0
        %v3569 = vmul.f32 %v3541, 1.702
        %v3570 = vmul.f32 %v3560, 1.702
        %v3571 = vmul.f32 %v3543, 1.702
        %v3572 = vmul.f32 %v3562, 1.702
        %v3573 = vmul.f32 %v3546, 1.702
        %v3574 = vmul.f32 %v3565, 1.702
        %v3575 = vmul.f32 %v3548, 1.702
        %v3576 = vmul.f32 %v3567, 1.702
        %v3577 = vxor.u32 %v3569, 2147483648
        %v3578 = vxor.u32 %v3570, 2147483648
        %v3579 = vxor.u32 %v3571, 2147483648
        %v3580 = vxor.u32 %v3572, 2147483648
        %v3581 = vxor.u32 %v3573, 2147483648
        %v3582 = vxor.u32 %v3574, 2147483648
        %v3583 = vxor.u32 %v3575, 2147483648
        %v3584 = vxor.u32 %v3576, 2147483648
        %v3585 = vmul.f32 %v3577, 1.442695
        %v3586 = vpow.pop %v3585
        %v3587 = vmul.f32 %v3578, 1.442695
        %v3588 = vpow.pop %v3587
        %v3589 = vmul.f32 %v3579, 1.442695
        %v3590 = vpow.pop %v3589
        %v3591 = vmul.f32 %v3580, 1.442695
        %v3592 = vpow.pop %v3591
        %v3593 = vmul.f32 %v3581, 1.442695
        %v3594 = vpow.pop %v3593
        %v3595 = vmul.f32 %v3582, 1.442695
        %v3596 = vpow.pop %v3595
        %v3597 = vmul.f32 %v3583, 1.442695
        %v3598 = vpow.pop %v3597
        %v3599 = vmul.f32 %v3584, 1.442695
        %v3600 = vpow.pop %v3599
        %v3601 = vadd.f32 %v3586, 1.0
        %v3602 = vadd.f32 %v3588, 1.0
        %v3603 = vadd.f32 %v3590, 1.0
        %v3604 = vadd.f32 %v3592, 1.0
        %v3605 = vadd.f32 %v3594, 1.0
        %v3606 = vadd.f32 %v3596, 1.0
        %v3607 = vadd.f32 %v3598, 1.0
        %v3608 = vadd.f32 %v3600, 1.0
        %v3609 = vrcp.pop %v3601
        %v3610 = vmul.f32 %v3601, %v3609
        %v3611 = vsub.f32 1.0, %v3610
        %v3612 = vmul.f32 %v3609, %v3611
        %v3613 = vadd.f32 %v3609, %v3612
        %vm3614 = vweird.f32 %v3601
        %vm3615 = vweird.f32 %v3609
        %vm3616 = vmor %vm3614, %vm3615
        %v3617 = vsel %vm3616, %v3609, %v3613
        %v3618 = vand.u32 2147483647, %v3601
        %vm3619 = vcmp.eq.f32.partialorder %v3618, 8.507059e+37
        %v3620 = vand.u32 %v3601, 2147483648
        %v3621 = vor.u32 1.1754944e-38, %v3620
        %v3622 = vsel %vm3619, %v3621, %v3617
        %v3623 = vmul.f32 1.0, %v3622
        %v3624 = vrcp.pop %v3602
        %v3625 = vmul.f32 %v3602, %v3624
        %v3626 = vsub.f32 1.0, %v3625
        %v3627 = vmul.f32 %v3624, %v3626
        %v3628 = vadd.f32 %v3624, %v3627
        %vm3629 = vweird.f32 %v3602
        %vm3630 = vweird.f32 %v3624
        %vm3631 = vmor %vm3629, %vm3630
        %v3632 = vsel %vm3631, %v3624, %v3628
        %v3633 = vand.u32 2147483647, %v3602
        %vm3634 = vcmp.eq.f32.partialorder %v3633, 8.507059e+37
        %v3635 = vand.u32 %v3602, 2147483648
        %v3636 = vor.u32 1.1754944e-38, %v3635
        %v3637 = vsel %vm3634, %v3636, %v3632
        %v3638 = vmul.f32 1.0, %v3637
        %v3639 = vrcp.pop %v3603
        %v3640 = vmul.f32 %v3603, %v3639
        %v3641 = vsub.f32 1.0, %v3640
        %v3642 = vmul.f32 %v3639, %v3641
        %v3643 = vadd.f32 %v3639, %v3642
        %vm3644 = vweird.f32 %v3603
        %vm3645 = vweird.f32 %v3639
        %vm3646 = vmor %vm3644, %vm3645
        %v3647 = vsel %vm3646, %v3639, %v3643
        %v3648 = vand.u32 2147483647, %v3603
        %vm3649 = vcmp.eq.f32.partialorder %v3648, 8.507059e+37
        %v3650 = vand.u32 %v3603, 2147483648
        %v3651 = vor.u32 1.1754944e-38, %v3650
        %v3652 = vsel %vm3649, %v3651, %v3647
        %v3653 = vmul.f32 1.0, %v3652
        %v3654 = vrcp.pop %v3604
        %v3655 = vmul.f32 %v3604, %v3654
        %v3656 = vsub.f32 1.0, %v3655
        %v3657 = vmul.f32 %v3654, %v3656
        %v3658 = vadd.f32 %v3654, %v3657
        %vm3659 = vweird.f32 %v3604
        %vm3660 = vweird.f32 %v3654
        %vm3661 = vmor %vm3659, %vm3660
        %v3662 = vsel %vm3661, %v3654, %v3658
        %v3663 = vand.u32 2147483647, %v3604
        %vm3664 = vcmp.eq.f32.partialorder %v3663, 8.507059e+37
        %v3665 = vand.u32 %v3604, 2147483648
        %v3666 = vor.u32 1.1754944e-38, %v3665
        %v3667 = vsel %vm3664, %v3666, %v3662
        %v3668 = vmul.f32 1.0, %v3667
        %v3669 = vrcp.pop %v3605
        %v3670 = vmul.f32 %v3605, %v3669
        %v3671 = vsub.f32 1.0, %v3670
        %v3672 = vmul.f32 %v3669, %v3671
        %v3673 = vadd.f32 %v3669, %v3672
        %vm3674 = vweird.f32 %v3605
        %vm3675 = vweird.f32 %v3669
        %vm3676 = vmor %vm3674, %vm3675
        %v3677 = vsel %vm3676, %v3669, %v3673
        %v3678 = vand.u32 2147483647, %v3605
        %vm3679 = vcmp.eq.f32.partialorder %v3678, 8.507059e+37
        %v3680 = vand.u32 %v3605, 2147483648
        %v3681 = vor.u32 1.1754944e-38, %v3680
        %v3682 = vsel %vm3679, %v3681, %v3677
        %v3683 = vmul.f32 1.0, %v3682
        %v3684 = vrcp.pop %v3606
        %v3685 = vmul.f32 %v3606, %v3684
        %v3686 = vsub.f32 1.0, %v3685
        %v3687 = vmul.f32 %v3684, %v3686
        %v3688 = vadd.f32 %v3684, %v3687
        %vm3689 = vweird.f32 %v3606
        %vm3690 = vweird.f32 %v3684
        %vm3691 = vmor %vm3689, %vm3690
        %v3692 = vsel %vm3691, %v3684, %v3688
        %v3693 = vand.u32 2147483647, %v3606
        %vm3694 = vcmp.eq.f32.partialorder %v3693, 8.507059e+37
        %v3695 = vand.u32 %v3606, 2147483648
        %v3696 = vor.u32 1.1754944e-38, %v3695
        %v3697 = vsel %vm3694, %v3696, %v3692
        %v3698 = vmul.f32 1.0, %v3697
        %v3699 = vrcp.pop %v3607
        %v3700 = vmul.f32 %v3607, %v3699
        %v3701 = vsub.f32 1.0, %v3700
        %v3702 = vmul.f32 %v3699, %v3701
        %v3703 = vadd.f32 %v3699, %v3702
        %vm3704 = vweird.f32 %v3607
        %vm3705 = vweird.f32 %v3699
        %vm3706 = vmor %vm3704, %vm3705
        %v3707 = vsel %vm3706, %v3699, %v3703
        %v3708 = vand.u32 2147483647, %v3607
        %vm3709 = vcmp.eq.f32.partialorder %v3708, 8.507059e+37
        %v3710 = vand.u32 %v3607, 2147483648
        %v3711 = vor.u32 1.1754944e-38, %v3710
        %v3712 = vsel %vm3709, %v3711, %v3707
        %v3713 = vmul.f32 1.0, %v3712
        %v3714 = vrcp.pop %v3608
        %v3715 = vmul.f32 %v3608, %v3714
        %v3716 = vsub.f32 1.0, %v3715
        %v3717 = vmul.f32 %v3714, %v3716
        %v3718 = vadd.f32 %v3714, %v3717
        %vm3719 = vweird.f32 %v3608
        %vm3720 = vweird.f32 %v3714
        %vm3721 = vmor %vm3719, %vm3720
        %v3722 = vsel %vm3721, %v3714, %v3718
        %v3723 = vand.u32 2147483647, %v3608
        %vm3724 = vcmp.eq.f32.partialorder %v3723, 8.507059e+37
        %v3725 = vand.u32 %v3608, 2147483648
        %v3726 = vor.u32 1.1754944e-38, %v3725
        %v3727 = vsel %vm3724, %v3726, %v3722
        %v3728 = vmul.f32 1.0, %v3727
        %v3729 = vmul.f32 %v3541, %v3623
        %v3730 = vmul.f32 %v3560, %v3638
        %v3731 = vmul.f32 %v3543, %v3653
        %v3732 = vmul.f32 %v3562, %v3668
        %v3733 = vmul.f32 %v3546, %v3683
        %v3734 = vmul.f32 %v3565, %v3698
        %v3735 = vmul.f32 %v3548, %v3713
        %v3736 = vmul.f32 %v3567, %v3728
        %v3737 = vpack.c.bf16 %v3731, %v3729
        %v3738 = vpack.c.bf16 %v3732, %v3730
        %v3739 = vpack.c.bf16 %v3735, %v3733
        %v3740 = vpack.c.bf16 %v3736, %v3734
        %v3741 = vld [vmem:[%s11] sm:$0xf]
        %v3742 = vld [vmem:[%s11 + $0x4] sm:$0xf]
        %v3743 = vld [vmem:[%s11 + $0x8] sm:$0xf]
        %v3744 = vld [vmem:[%s11 + $0xc] sm:$0xf]
        %v3745 = vld [vmem:[%s11 + $0x10] sm:$0xf]
        %v3746 = vld [vmem:[%s11 + $0x14] sm:$0xf]
        %v3747 = vld [vmem:[%s11 + $0x18] sm:$0xf]
        %v3748 = vld [vmem:[%s11 + $0x1c] sm:$0xf]
        %v3749 = vld [vmem:[%s11 + $0x20] sm:$0xf]
        %v3750 = vld [vmem:[%s11 + $0x24] sm:$0xf]
        %v3751 = vld [vmem:[%s11 + $0x28] sm:$0xf]
        %v3752 = vld [vmem:[%s11 + $0x2c] sm:$0xf]
        %v3753 = vld [vmem:[%s11 + $0x30] sm:$0xf]
        %v3754 = vld [vmem:[%s11 + $0x34] sm:$0xf]
        %v3755 = vld [vmem:[%s11 + $0x38] sm:$0xf]
        %v3756 = vld [vmem:[%s11 + $0x3c] sm:$0xf]
        %v3757 = vld [vmem:[%s11 + $0x40] sm:$0xf]
        %v3758 = vld [vmem:[%s11 + $0x44] sm:$0xf]
        %v3759 = vld [vmem:[%s11 + $0x48] sm:$0xf]
        %v3760 = vld [vmem:[%s11 + $0x4c] sm:$0xf]
        %v3761 = vld [vmem:[%s11 + $0x50] sm:$0xf]
        %v3762 = vld [vmem:[%s11 + $0x54] sm:$0xf]
        %v3763 = vld [vmem:[%s11 + $0x58] sm:$0xf]
        %v3764 = vld [vmem:[%s11 + $0x5c] sm:$0xf]
        %v3765 = vld [vmem:[%s11 + $0x60] sm:$0xf]
        %v3766 = vld [vmem:[%s11 + $0x64] sm:$0xf]
        %v3767 = vld [vmem:[%s11 + $0x68] sm:$0xf]
        %v3768 = vld [vmem:[%s11 + $0x6c] sm:$0xf]
        %v3769 = vld [vmem:[%s11 + $0x70] sm:$0xf]
        %v3770 = vld [vmem:[%s11 + $0x74] sm:$0xf]
        %v3771 = vld [vmem:[%s11 + $0x78] sm:$0xf]
        %v3772 = vld [vmem:[%s11 + $0x7c] sm:$0xf]
        %v3773 = vld [vmem:[%s12] sm:$0x1]
        %v3775 = vperm.slane %v3773, 0
        %v3809 = vunpack.c.l.b16 %v3741
        %v3810 = vunpack.c.l.b16 %v3742
        %v3811 = vunpack.c.l.b16 %v3743
        %v3812 = vunpack.c.l.b16 %v3744
        %v3813 = vunpack.c.l.b16 %v3745
        %v3814 = vunpack.c.l.b16 %v3746
        %v3815 = vunpack.c.l.b16 %v3747
        %v3816 = vunpack.c.l.b16 %v3748
        %v3817 = vunpack.c.l.b16 %v3749
        %v3818 = vunpack.c.l.b16 %v3750
        %v3819 = vunpack.c.l.b16 %v3751
        %v3820 = vunpack.c.l.b16 %v3752
        %v3821 = vunpack.c.l.b16 %v3753
        %v3822 = vunpack.c.l.b16 %v3754
        %v3823 = vunpack.c.l.b16 %v3755
        %v3824 = vunpack.c.l.b16 %v3756
        %v3825 = vunpack.c.l.b16 %v3757
        %v3826 = vunpack.c.l.b16 %v3758
        %v3827 = vunpack.c.l.b16 %v3759
        %v3828 = vunpack.c.l.b16 %v3760
        %v3829 = vunpack.c.l.b16 %v3761
        %v3830 = vunpack.c.l.b16 %v3762
        %v3831 = vunpack.c.l.b16 %v3763
        %v3832 = vunpack.c.l.b16 %v3764
        %v3833 = vunpack.c.l.b16 %v3765
        %v3834 = vunpack.c.l.b16 %v3766
        %v3835 = vunpack.c.l.b16 %v3767
        %v3836 = vunpack.c.l.b16 %v3768
        %v3837 = vunpack.c.l.b16 %v3769
        %v3838 = vunpack.c.l.b16 %v3770
        %v3839 = vunpack.c.l.b16 %v3771
        %v3840 = vunpack.c.l.b16 %v3772
        %v3841 = vpack.c.b16 %v3810, %v3809
        %v3842 = vpack.c.b16 %v3812, %v3811
        %v3843 = vpack.c.b16 %v3814, %v3813
        %v3844 = vpack.c.b16 %v3816, %v3815
        %v3845 = vpack.c.b16 %v3818, %v3817
        %v3846 = vpack.c.b16 %v3820, %v3819
        %v3847 = vpack.c.b16 %v3822, %v3821
        %v3848 = vpack.c.b16 %v3824, %v3823
        %v3849 = vpack.c.b16 %v3826, %v3825
        %v3850 = vpack.c.b16 %v3828, %v3827
        %v3851 = vpack.c.b16 %v3830, %v3829
        %v3852 = vpack.c.b16 %v3832, %v3831
        %v3853 = vpack.c.b16 %v3834, %v3833
        %v3854 = vpack.c.b16 %v3836, %v3835
        %v3855 = vpack.c.b16 %v3838, %v3837
        %v3856 = vpack.c.b16 %v3840, %v3839
        %3873 = vmatpush.bf16.msra.mxu0 %v3848
        %3874 = vmatpush.bf16.msra.mxu0 %v3847
        %3875 = vmatpush.bf16.msra.mxu0 %v3846
        %3876 = vmatpush.bf16.msra.mxu0 %v3845
        %3877 = vmatpush.bf16.msra.mxu0 %v3844
        %3878 = vmatpush.bf16.msra.mxu0 %v3843
        %3879 = vmatpush.bf16.msra.mxu0 %v3842
        %3880 = vmatpush.bf16.msra.mxu0 %v3841
        %3881 = vmatmul.bf16.gmra.mxu0 %v3737
        %v3882 = vpop.f32.mrf.mxu0
        %v3883 = vadd.f32 %v3775, %v3882
        %v3884 = vpop.f32.mrf.mxu0
        %v3885 = vadd.f32 %v3775, %v3884
        %3886 = vmatmul.bf16.gmra.mxu0 %v3739
        %v3887 = vpop.f32.mrf.mxu0
        %v3888 = vadd.f32 %v3775, %v3887
        %v3889 = vpop.f32.mrf.mxu0
        %v3890 = vadd.f32 %v3775, %v3889
        %3891 = vdwg.mxu0
        %3892 = vmatpush.bf16.msra.mxu0 %v3856
        %3893 = vmatpush.bf16.msra.mxu0 %v3855
        %3894 = vmatpush.bf16.msra.mxu0 %v3854
        %3895 = vmatpush.bf16.msra.mxu0 %v3853
        %3896 = vmatpush.bf16.msra.mxu0 %v3852
        %3897 = vmatpush.bf16.msra.mxu0 %v3851
        %3898 = vmatpush.bf16.msra.mxu0 %v3850
        %3899 = vmatpush.bf16.msra.mxu0 %v3849
        %3900 = vmatmul.bf16.gmra.mxu0 %v3738
        %v3901 = vpop.f32.mrf.mxu0
        %v3902 = vadd.f32 %v3883, %v3901
        %v3903 = vpop.f32.mrf.mxu0
        %v3904 = vadd.f32 %v3885, %v3903
        %3905 = vmatmul.bf16.gmra.mxu0 %v3740
        %v3906 = vpop.f32.mrf.mxu0
        %v3907 = vadd.f32 %v3888, %v3906
        %v3908 = vpop.f32.mrf.mxu0
        %v3909 = vadd.f32 %v3890, %v3908
        %3910 = vdwg.mxu0
        %v3911 = vadd.f32 %v3361, %v3902
        %v3912 = vadd.f32 %v3362, %v3904
        %v3913 = vadd.f32 %v3363, %v3907
        %v3914 = vadd.f32 %v3364, %v3909
        %3915 = vst.msk [vmem:[%s511] sm:$0xff] %vm527, %v3911
        %3916 = vst.msk [vmem:[%s511 + $0x8] sm:$0xff] %vm527, %v3912
        %3917 = vst.msk [vmem:[%s511 + $0x10] sm:$0xff] %vm527, %v3913
        %3918 = vst.msk [vmem:[%s511 + $0x18] sm:$0xff] %vm527, %v3914
        %s3919 = sand.u32 %s316, 1
        %s3920 = scalar_lea.sflag [#allocation4], %s3919
        %s3921 = sand.u32 %s316, 1
        %s3922 = smul.addr %s3921, 32
        %s3923 = scalar_lea.vmem [#allocation11], %s3922
        // Predicated region
        $region93: #{tpu_custom_call.1} parent=71 // pred_check
          %p3924 = pneg %p326
        $region94: #{tpu_custom_call.1} parent=71 // pred_check_branch
          %3926 = sbr.rel (%p3924) target = $region96
        $region95: #{tpu_custom_call.1} parent=71 // pred_region
          %s3927 = smul.u32 2, %s30
          %3929 = vsyncadd %s3920, 0
          %s3930 = smul.addr %s3927, 2
          %s3931 = smul.addr %s3930, 8
          %s3932 = scalar_lea.hbm %s13, %s3931
          %s3933 = sshll.u32 %s3923, 4
          %s3934 = int_to_ptr.vmem [resolvable:$true] %s3933
          %s3935 = sshll.u32 %s3932, 4
          %s3936 = int_to_ptr.hbm [resolvable:$true] %s3935
          %3941 = dma.vmem_to_hbm [thread:$0]  %s3934, 512, %s3936, %s3920, 128, 128, 8
        $region96: #{tpu_custom_call.1} parent=71 // pred_fallthru
          _
      $region72: #{tpu_custom_call.1} parent=5 // pred_fallthru
        _
      %p3942 = scmp.le.s32.totalorder 2, %s25
      // Predicated region
      $region97: #{tpu_custom_call.1} parent=5 // pred_check
        %p3943 = pneg %p3942
      $region98: #{tpu_custom_call.1} parent=5 // pred_check_branch
        %3945 = sbr.rel (%p3943) target = $region100
      $region99: #{tpu_custom_call.1} parent=5 // pred_region
        %s3946 = ssub.s32 %s25, 2
        // Predicated region
        $region101: #{tpu_custom_call.1} parent=99 // pred_check
          %p3947 = pneg %p332
        $region102: #{tpu_custom_call.1} parent=99 // pred_check_branch
          %3949 = sbr.rel (%p3947) target = $region104
        $region103: #{tpu_custom_call.1} parent=99 // pred_region
          %s3950 = sand.u32 %s317, 1
          %s3951 = scalar_lea.sflag [#allocation4], %s3950
          %s3952 = sand.u32 %s317, 1
          %s3953 = smul.addr %s3952, 32
          %s3954 = scalar_lea.vmem [#allocation11], %s3953
          %3956 = dma.done %s3951, 512
        $region104: #{tpu_custom_call.1} parent=99 // pred_fallthru
          _
      $region100: #{tpu_custom_call.1} parent=5 // pred_fallthru
        _
    $region6: #{tpu_custom_call.1} parent=1 // loop_footer
      %s29 = sadd.s32 1, %s25
    $region7: #{tpu_custom_call.1} parent=1 // loop_footer_branch
      %24 = sbr.rel target = $region3
    $region8: #{tpu_custom_call.1} parent=1 // loop_exit
      _
    %3957 = vsyncpa [#allocation3], 1
    %s3958 = scalar_lea.sflag [#allocation3], 1
    %3959 = vsyncpa %s3958, 1
    %3960 = vsyncpa [#allocation6], 1
    %3961 = vsyncpa [#allocation9], 1
    %3962 = vsyncpa [#allocation4], 1
    %s3963 = scalar_lea.sflag [#allocation4], 1
    %3964 = vsyncpa %s3963, 1

</llo_original>
